<compile_context>
chip_gen: v7x
topology: tpu7x:2x2x1
jax: 0.10.0
libtpu: 0.0.40
codegen_flags: <defaults>
</compile_context>

<pallas_src>
import functools

import jax
import jax.numpy as jnp
from jax.experimental import pallas as pl
from jax.experimental.pallas import tpu as pltpu


# Conservative per-kernel VMEM budget: v7x has only 64 MiB VMEM per TensorCore
# (v5e/v6e have 128 MiB) — size tiles against ~40 MiB and request 48 MiB scoped.
VMEM_BUDGET = 40 * 1024 * 1024
VMEM_LIMIT = 48 * 1024 * 1024


def _largest_divisor_tile(n, cap, mult=8):
    """Largest multiple of `mult` that divides n and is <= cap; falls back to n
    (a full-extent block is always legal)."""
    best = None
    cap = max(mult, min(cap, n))
    d = mult
    while d <= cap:
        if n % d == 0:
            best = d
        d += mult
    return best if best is not None else n


# ----------------------------------------------------------------------------
# Kernel A: fused conv(im2col matmul) + bias + ReLU + global average pool.
#   grid = (frame_blocks, spatial_tiles); spatial axis reduces into VMEM scratch.
# ----------------------------------------------------------------------------
def _conv_relu_gap_kernel(p_ref, w_ref, b_ref, o_ref, acc_ref, *, inv_hw):
    s = pl.program_id(1)

    @pl.when(s == 0)
    def _init():
        acc_ref[...] = jnp.zeros_like(acc_ref)

    fb, ts, ck = p_ref.shape
    # (FB*ts, Ck) bf16 patches  @  (Ck, F) bf16 weights  ->  f32 on the MXU.
    p = p_ref[...].reshape(fb * ts, ck)
    y = jnp.dot(p, w_ref[...], preferred_element_type=jnp.float32)
    y = jnp.maximum(y + b_ref[...], 0.0)                 # conv bias + ReLU (per pixel)
    acc_ref[...] += jnp.sum(y.reshape(fb, ts, -1), axis=1)   # spatial sum per frame

    @pl.when(s == pl.num_programs(1) - 1)
    def _finalize():
        o_ref[...] = (acc_ref[...] * inv_hw).astype(o_ref.dtype)   # mean over H'*W'


def conv_relu_gap(patches, w, b, fb=8):
    """patches: (N, HW, Ck) bf16 ; w: (Ck, F) bf16 ; b: (F,) f32 -> (N, F) f32."""
    N, HW, Ck = patches.shape
    F = w.shape[1]
    # Block FB frames per grid step (unmasked (8,128) stores, fewer grid steps).
    n_pad = (-N) % fb
    if n_pad:
        patches = jnp.pad(patches, ((0, n_pad), (0, 0), (0, 0)))
    Np = N + n_pad
    # Spatial tile: grid-overhead bound, so go big (cap 4096 rows) within VMEM.
    row_bytes = fb * Ck * 2                                # bf16 rows across FB frames
    cap = min(4096, max(8, VMEM_BUDGET // (4 * row_bytes)))
    ts = _largest_divisor_tile(HW, cap)
    grid = (Np // fb, HW // ts)
    out = pl.pallas_call(
        functools.partial(_conv_relu_gap_kernel, inv_hw=1.0 / HW),
        out_shape=jax.ShapeDtypeStruct((Np, F), jnp.float32),
        grid=grid,
        in_specs=[
            pl.BlockSpec((fb, ts, Ck), lambda n, s: (n, s, 0)),
            pl.BlockSpec((Ck, F), lambda n, s: (0, 0)),
            pl.BlockSpec((1, F), lambda n, s: (0, 0)),
        ],
        out_specs=pl.BlockSpec((fb, F), lambda n, s: (n, 0)),
        scratch_shapes=[pltpu.VMEM((fb, F), jnp.float32)],
        compiler_params=pltpu.CompilerParams(
            dimension_semantics=("parallel", "arbitrary"),
            vmem_limit_bytes=VMEM_LIMIT,
        ),
    )(patches, w, b.reshape(1, F))
    return out[:N]


# ----------------------------------------------------------------------------
# Kernel B: encoder FC (ReLU) fused with the GRU input projection, batched over
#   all B*T frames (already in (T, B) row order) and tiled/pipelined over M.
#   gi = relu(pooled @ enc_w + enc_b) @ W_ih + b_ih      (stored bf16)
# ----------------------------------------------------------------------------
def _encoder_fc_gi_kernel(a_ref, w1_ref, b1_ref, w2_ref, b2_ref, o_ref):
    feats = jnp.dot(a_ref[...], w1_ref[...], preferred_element_type=jnp.float32)
    feats = jnp.maximum(feats + b1_ref[...], 0.0)
    gi = jnp.dot(feats.astype(jnp.bfloat16), w2_ref[...],
                 preferred_element_type=jnp.float32)
    o_ref[...] = (gi + b2_ref[...]).astype(o_ref.dtype)


def encoder_fc_gi(pooled, enc_w, enc_b, w_ih, b_ih):
    """pooled: (M, F) bf16 -> gi: (M, 3H) bf16 (GRU input projection, all frames)."""
    M, F = pooled.shape
    D = enc_w.shape[1]
    H3 = w_ih.shape[1]
    tm = _largest_divisor_tile(M, 1024)        # weights resident; big M tiles are cheap
    return pl.pallas_call(
        _encoder_fc_gi_kernel,
        out_shape=jax.ShapeDtypeStruct((M, H3), jnp.bfloat16),
        grid=(M // tm,),
        in_specs=[
            pl.BlockSpec((tm, F), lambda i: (i, 0)),
            pl.BlockSpec((F, D), lambda i: (0, 0)),
            pl.BlockSpec((1, D), lambda i: (0, 0)),
            pl.BlockSpec((D, H3), lambda i: (0, 0)),
            pl.BlockSpec((1, H3), lambda i: (0, 0)),
        ],
        out_specs=pl.BlockSpec((tm, H3), lambda i: (i, 0)),
        compiler_params=pltpu.CompilerParams(
            dimension_semantics=("parallel",),
            vmem_limit_bytes=VMEM_LIMIT,
        ),
    )(pooled, enc_w, enc_b.reshape(1, D), w_ih, b_ih.reshape(1, H3))


# ----------------------------------------------------------------------------
# Kernel C: GRU recurrence streamed over T on the grid (h carried in VMEM
#   scratch; gi[t] block pipelined per step) fused with the final Linear(H, 2).
#   Single (B,H) @ (H,3H) recurrent matmul per step; 128-aligned gate slices.
# ----------------------------------------------------------------------------
def _gru_step_head_kernel(gi_ref, whh_ref, bhh_ref, wfc_ref, bfc_ref, o_ref, h_ref):
    t = pl.program_id(0)
    H = whh_ref.shape[0]

    @pl.when(t == 0)
    def _init():
        h_ref[...] = jnp.zeros_like(h_ref)

    h = h_ref[...]                                            # (B, H) f32 carried state
    g = gi_ref[0].astype(jnp.float32)                         # (B, 3H) input projection
    hp = jnp.dot(h.astype(jnp.bfloat16), whh_ref[...],
                 preferred_element_type=jnp.float32) + bhh_ref[...]   # (B, 3H)
    # Gate elementwise math stays f32 (v5e VPU/EUP have no bf16 path).
    r = jax.nn.sigmoid(g[:, 0:H] + hp[:, 0:H])
    z = jax.nn.sigmoid(g[:, H:2 * H] + hp[:, H:2 * H])
    n = jnp.tanh(g[:, 2 * H:3 * H] + r * hp[:, 2 * H:3 * H])  # b_hn inside r*(...)
    h_new = (1.0 - z) * n + z * h                              # PyTorch GRU update
    h_ref[...] = h_new

    @pl.when(t == pl.num_programs(0) - 1)
    def _finalize():
        out = jnp.dot(h_new, wfc_ref[...], preferred_element_type=jnp.float32)
        o_ref[...] = (out + bfc_ref[...]).astype(o_ref.dtype)


def gru_head(gi_tbh, w_hh, b_hh, w_fc, b_fc):
    """gi_tbh: (T, B, 3H) bf16 ; w_hh: (H, 3H) bf16 -> (B, 2) f32."""
    T, B, H3 = gi_tbh.shape
    H = w_hh.shape[0]
    O = w_fc.shape[1]
    return pl.pallas_call(
        _gru_step_head_kernel,
        out_shape=jax.ShapeDtypeStruct((B, O), jnp.float32),
        grid=(T,),
        in_specs=[
            pl.BlockSpec((1, B, H3), lambda t: (t, 0, 0)),    # streamed per timestep
            pl.BlockSpec((H, H3), lambda t: (0, 0)),
            pl.BlockSpec((1, H3), lambda t: (0, 0)),
            pl.BlockSpec((H, O), lambda t: (0, 0)),
            pl.BlockSpec((1, O), lambda t: (0, 0)),
        ],
        out_specs=pl.BlockSpec((B, O), lambda t: (0, 0)),
        scratch_shapes=[pltpu.VMEM((B, H), jnp.float32)],     # carried hidden state
        compiler_params=pltpu.CompilerParams(
            dimension_semantics=("arbitrary",),
            vmem_limit_bytes=VMEM_LIMIT,
        ),
    )(gi_tbh, w_hh, b_hh.reshape(1, H3), w_fc, b_fc.reshape(1, O))


# ----------------------------------------------------------------------------
# Glue: im2col for the conv (NCHW input, bf16) — plain-JAX layout plumbing.
# ----------------------------------------------------------------------------
def im2col(x, kh, kw, stride, pad):
    N, C, H, W = x.shape
    xp = jnp.pad(x, ((0, 0), (0, 0), (pad, pad), (pad, pad)))
    Ho = (H + 2 * pad - kh) // stride + 1
    Wo = (W + 2 * pad - kw) // stride + 1
    cols = []
    for i in range(kh):
        for j in range(kw):
            cols.append(xp[:, :, i:i + stride * Ho:stride, j:j + stride * Wo:stride])
    patches = jnp.stack(cols, axis=2)                # (N, C, kh*kw, Ho, Wo)
    patches = patches.transpose(0, 3, 4, 1, 2)       # (N, Ho, Wo, C, kh*kw)
    return patches.reshape(N, Ho * Wo, C * kh * kw), Ho, Wo


# ----------------------------------------------------------------------------
# Model forward
# ----------------------------------------------------------------------------
def gaze_model_forward(x, params):
    B, T, C, H, W = x.shape
    # Cast to bf16 BEFORE im2col so the 9x-inflated patches blob in HBM is bf16.
    x = x.reshape(B * T, C, H, W).astype(jnp.bfloat16)

    # --- conv(3->F, k3, s2, p1) + ReLU + global-average-pool, fused in Pallas.
    patches, Ho, Wo = im2col(x, 3, 3, stride=2, pad=1)                    # (BT, HW, C*9) bf16
    F = params["conv_w"].shape[0]
    w_conv = params["conv_w"].reshape(F, -1).T.astype(jnp.bfloat16)       # (C*9, F)
    pooled = conv_relu_gap(patches, w_conv, params["conv_b"])             # (BT, F) f32

    # (B,T) -> (T,B) reorder on the small pooled tensor (not on the 3x-larger gi).
    pooled_tb = pooled.reshape(B, T, F).transpose(1, 0, 2).reshape(T * B, F)

    # --- encoder FC (F->D, ReLU) fused with the GRU input projection (D->3H),
    #     batched over all T*B frames (hoisted out of the recurrence), bf16 out.
    gi = encoder_fc_gi(pooled_tb.astype(jnp.bfloat16),
                       params["enc_w"].astype(jnp.bfloat16), params["enc_b"],
                       params["gru_w_ih"].astype(jnp.bfloat16),
                       params["gru_b_ih"])                                # (T*B, 3H) bf16

    Hd = params["gru_w_hh"].shape[0]
    gi = gi.reshape(T, B, 3 * Hd)                                         # no transpose

    # --- GRU recurrence over T (streamed on the grid) + final Linear(hidden, 2).
    out = gru_head(gi, params["gru_w_hh"].astype(jnp.bfloat16),
                   params["gru_b_hh"], params["fc_w"], params["fc_b"])    # (B, 2)
    return out


# ----------------------------------------------------------------------------
# Deterministic synthetic parameters (lane-dense: F, D, H are multiples of 128).
# NOTE: real PyTorch GRU/Linear weights are (3H, in)/(3H, H)/(out, in) and must be
# transposed (preserving the [r|z|n] gate grouping along the 3H axis) to match
# the (in, 3H)/(H, 3H)/(in, out) layouts used here.
# ----------------------------------------------------------------------------
def make_params(key, conv_f=128, cnn_out_dim=128, gru_hidden=128):
    ks = jax.random.split(key, 10)
    s = 0.1
    return {
        "conv_w":   s * jax.random.normal(ks[0], (conv_f, 3, 3, 3), jnp.float32),
        "conv_b":   s * jax.random.normal(ks[1], (conv_f,), jnp.float32),
        "enc_w":    s * jax.random.normal(ks[2], (conv_f, cnn_out_dim), jnp.float32),
        "enc_b":    s * jax.random.normal(ks[3], (cnn_out_dim,), jnp.float32),
        "gru_w_ih": s * jax.random.normal(ks[4], (cnn_out_dim, 3 * gru_hidden), jnp.float32),
        "gru_w_hh": s * jax.random.normal(ks[5], (gru_hidden, 3 * gru_hidden), jnp.float32),
        "gru_b_ih": s * jax.random.normal(ks[6], (3 * gru_hidden,), jnp.float32),
        "gru_b_hh": s * jax.random.normal(ks[7], (3 * gru_hidden,), jnp.float32),
        "fc_w":     s * jax.random.normal(ks[8], (gru_hidden, 2), jnp.float32),
        "fc_b":     jnp.zeros((2,), jnp.float32),
    }


if __name__ == "__main__":
    # Small shapes consistent with the module's (B, T, C, H, W) contract.
    B, T, C, H, W = 2, 6, 3, 32, 32
    key = jax.random.PRNGKey(0)
    kx, kp = jax.random.split(key)
    x = jax.random.normal(kx, (B, T, C, H, W), jnp.float32)
    params = make_params(kp)

    out = jax.jit(gaze_model_forward)(x, params)
    out = jax.block_until_ready(out)
    assert out.shape == (B, 2), out.shape
    print("KERNEL_OK")
</pallas_src>

<mosaic_0001>
module attributes {stable_mosaic.version = 11 : i64} {
  func.func @_conv_relu_gap_kernel(%arg0: i32, %arg1: i32, %arg2: memref<8x256x27xbf16, #tpu.memory_space<vmem>>, %arg3: memref<27x128xbf16, #tpu.memory_space<vmem>>, %arg4: memref<1x128xf32, #tpu.memory_space<vmem>>, %arg5: memref<8x128xf32, #tpu.memory_space<vmem>>, %arg6: memref<8x128xf32, #tpu.memory_space<vmem>>) attributes {dimension_semantics = [#tpu.dimension_semantics<parallel>, #tpu.dimension_semantics<arbitrary>], iteration_bounds = array<i64: 2, 1>, scalar_prefetch = 0 : i64, scratch_operands = 1 : i64, tpu.core_type = #tpu.core_type<tc>, window_params = [{transform_indices = @transform_0, window_bounds = array<i64: 8, 256, 27>}, {pipeline_mode = #tpu.pipeline_mode<synchronous>, transform_indices = @transform_1, window_bounds = array<i64: 27, 128>}, {pipeline_mode = #tpu.pipeline_mode<synchronous>, transform_indices = @transform_2, window_bounds = array<i64: 1, 128>}, {transform_indices = @transform_3, window_bounds = array<i64: 8, 128>}]} {
    %c0_i32 = arith.constant 0 : i32
    %0 = arith.cmpi eq, %arg1, %c0_i32 : i32
    %1 = arith.extui %0 : i1 to i32
    %c0_i32_0 = arith.constant 0 : i32
    %2 = arith.cmpi ne, %1, %c0_i32_0 : i32
    scf.if %2 {
      %cst_15 = arith.constant 0.000000e+00 : f32
      %20 = vector.broadcast %cst_15 : f32 to vector<8x128xf32>
      %c0_16 = arith.constant 0 : index
      %c0_17 = arith.constant 0 : index
      %21 = vector.load %arg6[%c0_16, %c0_17] : memref<8x128xf32, #tpu.memory_space<vmem>>, vector<8x128xf32>
      tpu.vector_store %arg6[%c0_16, %c0_17], %20 {strides = array<i32>} : memref<8x128xf32, #tpu.memory_space<vmem>>, vector<8x128xf32>,
    } else {
    }
    %c0 = arith.constant 0 : index
    %c0_1 = arith.constant 0 : index
    %c0_2 = arith.constant 0 : index
    %3 = vector.load %arg2[%c0, %c0_1, %c0_2] : memref<8x256x27xbf16, #tpu.memory_space<vmem>>, vector<8x256x27xbf16>
    %4 = vector.shape_cast %3 : vector<8x256x27xbf16> to vector<2048x27xbf16>
    %c0_3 = arith.constant 0 : index
    %c0_4 = arith.constant 0 : index
    %5 = vector.load %arg3[%c0_3, %c0_4] : memref<27x128xbf16, #tpu.memory_space<vmem>>, vector<27x128xbf16>
    %cst = arith.constant dense<0.000000e+00> : vector<2048x128xf32>
    %6 = tpu.matmul %4, %5, %cst {dimension_numbers = #tpu.dot_dimension_numbers<[1], [0], [0], [1], [0, 0, 1, 1], [], []>} : vector<2048x27xbf16>, vector<27x128xbf16>, vector<2048x128xf32> -> vector<2048x128xf32>
    %c0_5 = arith.constant 0 : index
    %c0_6 = arith.constant 0 : index
    %7 = vector.load %arg4[%c0_5, %c0_6] : memref<1x128xf32, #tpu.memory_space<vmem>>, vector<1x128xf32>
    %8 = vector.broadcast %7 : vector<1x128xf32> to vector<2048x128xf32>
    %9 = arith.addf %6, %8 : vector<2048x128xf32>
    %cst_7 = arith.constant 0.000000e+00 : f32
    %10 = vector.broadcast %cst_7 : f32 to vector<2048x128xf32>
    %11 = arith.maximumf %9, %10 : vector<2048x128xf32>
    %c0_8 = arith.constant 0 : index
    %c0_9 = arith.constant 0 : index
    %12 = vector.load %arg6[%c0_8, %c0_9] : memref<8x128xf32, #tpu.memory_space<vmem>>, vector<8x128xf32>
    %13 = vector.shape_cast %11 : vector<2048x128xf32> to vector<8x256x128xf32>
    %cst_10 = arith.constant dense<0.000000e+00> : vector<8x128xf32>
    %14 = vector.multi_reduction <add>, %13, %cst_10 [1] : vector<8x256x128xf32> to vector<8x128xf32>
    %15 = arith.addf %12, %14 : vector<8x128xf32>
    %c0_11 = arith.constant 0 : index
    %c0_12 = arith.constant 0 : index
    %16 = vector.load %arg6[%c0_11, %c0_12] : memref<8x128xf32, #tpu.memory_space<vmem>>, vector<8x128xf32>
    tpu.vector_store %arg6[%c0_11, %c0_12], %15 {strides = array<i32>} : memref<8x128xf32, #tpu.memory_space<vmem>>, vector<8x128xf32>,
    %c0_i32_13 = arith.constant 0 : i32
    %17 = arith.cmpi eq, %arg1, %c0_i32_13 : i32
    %18 = arith.extui %17 : i1 to i32
    %c0_i32_14 = arith.constant 0 : i32
    %19 = arith.cmpi ne, %18, %c0_i32_14 : i32
    scf.if %19 {
      %c0_15 = arith.constant 0 : index
      %c0_16 = arith.constant 0 : index
      %20 = vector.load %arg6[%c0_15, %c0_16] : memref<8x128xf32, #tpu.memory_space<vmem>>, vector<8x128xf32>
      %cst_17 = arith.constant 3.906250e-03 : f32
      %21 = vector.broadcast %cst_17 : f32 to vector<8x128xf32>
      %22 = arith.mulf %20, %21 : vector<8x128xf32>
      %c0_18 = arith.constant 0 : index
      %c0_19 = arith.constant 0 : index
      %23 = vector.load %arg5[%c0_18, %c0_19] : memref<8x128xf32, #tpu.memory_space<vmem>>, vector<8x128xf32>
      tpu.vector_store %arg5[%c0_18, %c0_19], %22 {strides = array<i32>} : memref<8x128xf32, #tpu.memory_space<vmem>>, vector<8x128xf32>,
    } else {
    }
    return
  }
  func.func @transform_0(%arg0: i32, %arg1: i32) -> (i32, i32, i32) {
    %c0_i32 = arith.constant 0 : i32
    %c0_i32_0 = arith.constant 0 : i32
    return %arg0, %arg1, %c0_i32 : i32, i32, i32
  }
  func.func @transform_1(%arg0: i32, %arg1: i32) -> (i32, i32) {
    %c0_i32 = arith.constant 0 : i32
    %c0_i32_0 = arith.constant 0 : i32
    %c0_i32_1 = arith.constant 0 : i32
    return %c0_i32, %c0_i32_0 : i32, i32
  }
  func.func @transform_2(%arg0: i32, %arg1: i32) -> (i32, i32) {
    %c0_i32 = arith.constant 0 : i32
    %c0_i32_0 = arith.constant 0 : i32
    %c0_i32_1 = arith.constant 0 : i32
    return %c0_i32, %c0_i32_0 : i32, i32
  }
  func.func @transform_3(%arg0: i32, %arg1: i32) -> (i32, i32) {
    %c0_i32 = arith.constant 0 : i32
    %c0_i32_0 = arith.constant 0 : i32
    return %arg0, %c0_i32 : i32, i32
  }
}

module attributes {stable_mosaic.version = 11 : i64} {
  func.func @_encoder_fc_gi_kernel(%arg0: i32, %arg1: memref<12x128xbf16, #tpu.memory_space<vmem>>, %arg2: memref<128x128xbf16, #tpu.memory_space<vmem>>, %arg3: memref<1x128xf32, #tpu.memory_space<vmem>>, %arg4: memref<128x384xbf16, #tpu.memory_space<vmem>>, %arg5: memref<1x384xf32, #tpu.memory_space<vmem>>, %arg6: memref<12x384xbf16, #tpu.memory_space<vmem>>) attributes {dimension_semantics = [#tpu.dimension_semantics<parallel>], iteration_bounds = array<i64: 1>, scalar_prefetch = 0 : i64, scratch_operands = 0 : i64, tpu.core_type = #tpu.core_type<tc>, window_params = [{transform_indices = @transform_0, window_bounds = array<i64: 12, 128>}, {pipeline_mode = #tpu.pipeline_mode<synchronous>, transform_indices = @transform_1, window_bounds = array<i64: 128, 128>}, {pipeline_mode = #tpu.pipeline_mode<synchronous>, transform_indices = @transform_2, window_bounds = array<i64: 1, 128>}, {pipeline_mode = #tpu.pipeline_mode<synchronous>, transform_indices = @transform_3, window_bounds = array<i64: 128, 384>}, {pipeline_mode = #tpu.pipeline_mode<synchronous>, transform_indices = @transform_4, window_bounds = array<i64: 1, 384>}, {transform_indices = @transform_5, window_bounds = array<i64: 12, 384>}]} {
    %c0 = arith.constant 0 : index
    %c0_0 = arith.constant 0 : index
    %0 = vector.load %arg1[%c0, %c0_0] : memref<12x128xbf16, #tpu.memory_space<vmem>>, vector<12x128xbf16>
    %c0_1 = arith.constant 0 : index
    %c0_2 = arith.constant 0 : index
    %1 = vector.load %arg2[%c0_1, %c0_2] : memref<128x128xbf16, #tpu.memory_space<vmem>>, vector<128x128xbf16>
    %cst = arith.constant dense<0.000000e+00> : vector<12x128xf32>
    %2 = tpu.matmul %0, %1, %cst {dimension_numbers = #tpu.dot_dimension_numbers<[1], [0], [0], [1], [0, 0, 1, 1], [], []>} : vector<12x128xbf16>, vector<128x128xbf16>, vector<12x128xf32> -> vector<12x128xf32>
    %c0_3 = arith.constant 0 : index
    %c0_4 = arith.constant 0 : index
    %3 = vector.load %arg3[%c0_3, %c0_4] : memref<1x128xf32, #tpu.memory_space<vmem>>, vector<1x128xf32>
    %4 = vector.broadcast %3 : vector<1x128xf32> to vector<12x128xf32>
    %5 = arith.addf %2, %4 : vector<12x128xf32>
    %cst_5 = arith.constant 0.000000e+00 : f32
    %6 = vector.broadcast %cst_5 : f32 to vector<12x128xf32>
    %7 = arith.maximumf %5, %6 : vector<12x128xf32>
    %8 = arith.truncf %7 : vector<12x128xf32> to vector<12x128xbf16>
    %c0_6 = arith.constant 0 : index
    %c0_7 = arith.constant 0 : index
    %9 = vector.load %arg4[%c0_6, %c0_7] : memref<128x384xbf16, #tpu.memory_space<vmem>>, vector<128x384xbf16>
    %cst_8 = arith.constant dense<0.000000e+00> : vector<12x384xf32>
    %10 = tpu.matmul %8, %9, %cst_8 {dimension_numbers = #tpu.dot_dimension_numbers<[1], [0], [0], [1], [0, 0, 1, 1], [], []>} : vector<12x128xbf16>, vector<128x384xbf16>, vector<12x384xf32> -> vector<12x384xf32>
    %c0_9 = arith.constant 0 : index
    %c0_10 = arith.constant 0 : index
    %11 = vector.load %arg5[%c0_9, %c0_10] : memref<1x384xf32, #tpu.memory_space<vmem>>, vector<1x384xf32>
    %12 = vector.broadcast %11 : vector<1x384xf32> to vector<12x384xf32>
    %13 = arith.addf %10, %12 : vector<12x384xf32>
    %14 = arith.truncf %13 : vector<12x384xf32> to vector<12x384xbf16>
    %c0_11 = arith.constant 0 : index
    %c0_12 = arith.constant 0 : index
    %15 = vector.load %arg6[%c0_11, %c0_12] : memref<12x384xbf16, #tpu.memory_space<vmem>>, vector<12x384xbf16>
    tpu.vector_store %arg6[%c0_11, %c0_12], %14 {strides = array<i32>} : memref<12x384xbf16, #tpu.memory_space<vmem>>, vector<12x384xbf16>,
    return
  }
  func.func @transform_0(%arg0: i32) -> (i32, i32) {
    %c0_i32 = arith.constant 0 : i32
    %c0_i32_0 = arith.constant 0 : i32
    return %arg0, %c0_i32 : i32, i32
  }
  func.func @transform_1(%arg0: i32) -> (i32, i32) {
    %c0_i32 = arith.constant 0 : i32
    %c0_i32_0 = arith.constant 0 : i32
    %c0_i32_1 = arith.constant 0 : i32
    return %c0_i32, %c0_i32_0 : i32, i32
  }
  func.func @transform_2(%arg0: i32) -> (i32, i32) {
    %c0_i32 = arith.constant 0 : i32
    %c0_i32_0 = arith.constant 0 : i32
    %c0_i32_1 = arith.constant 0 : i32
    return %c0_i32, %c0_i32_0 : i32, i32
  }
  func.func @transform_3(%arg0: i32) -> (i32, i32) {
    %c0_i32 = arith.constant 0 : i32
    %c0_i32_0 = arith.constant 0 : i32
    %c0_i32_1 = arith.constant 0 : i32
    return %c0_i32, %c0_i32_0 : i32, i32
  }
  func.func @transform_4(%arg0: i32) -> (i32, i32) {
    %c0_i32 = arith.constant 0 : i32
    %c0_i32_0 = arith.constant 0 : i32
    %c0_i32_1 = arith.constant 0 : i32
    return %c0_i32, %c0_i32_0 : i32, i32
  }
  func.func @transform_5(%arg0: i32) -> (i32, i32) {
    %c0_i32 = arith.constant 0 : i32
    %c0_i32_0 = arith.constant 0 : i32
    return %arg0, %c0_i32 : i32, i32
  }
}

module attributes {stable_mosaic.version = 11 : i64} {
  func.func @_gru_step_head_kernel(%arg0: i32, %arg1: memref<1x2x384xbf16, #tpu.memory_space<vmem>>, %arg2: memref<128x384xbf16, #tpu.memory_space<vmem>>, %arg3: memref<1x384xf32, #tpu.memory_space<vmem>>, %arg4: memref<128x2xf32, #tpu.memory_space<vmem>>, %arg5: memref<1x2xf32, #tpu.memory_space<vmem>>, %arg6: memref<2x2xf32, #tpu.memory_space<vmem>>, %arg7: memref<2x128xf32, #tpu.memory_space<vmem>>) attributes {dimension_semantics = [#tpu.dimension_semantics<arbitrary>], iteration_bounds = array<i64: 6>, scalar_prefetch = 0 : i64, scratch_operands = 1 : i64, tpu.core_type = #tpu.core_type<tc>, window_params = [{transform_indices = @transform_0, window_bounds = array<i64: 1, 2, 384>}, {pipeline_mode = #tpu.pipeline_mode<synchronous>, transform_indices = @transform_1, window_bounds = array<i64: 128, 384>}, {pipeline_mode = #tpu.pipeline_mode<synchronous>, transform_indices = @transform_2, window_bounds = array<i64: 1, 384>}, {pipeline_mode = #tpu.pipeline_mode<synchronous>, transform_indices = @transform_3, window_bounds = array<i64: 128, 2>}, {pipeline_mode = #tpu.pipeline_mode<synchronous>, transform_indices = @transform_4, window_bounds = array<i64: 1, 2>}, {pipeline_mode = #tpu.pipeline_mode<synchronous>, transform_indices = @transform_5, window_bounds = array<i64: 2, 2>}]} {
    %c0_i32 = arith.constant 0 : i32
    %0 = arith.cmpi eq, %arg0, %c0_i32 : i32
    %1 = arith.extui %0 : i1 to i32
    %c0_i32_0 = arith.constant 0 : i32
    %2 = arith.cmpi ne, %1, %c0_i32_0 : i32
    scf.if %2 {
      %cst_15 = arith.constant 0.000000e+00 : f32
      %43 = vector.broadcast %cst_15 : f32 to vector<2x128xf32>
      %c0_16 = arith.constant 0 : index
      %c0_17 = arith.constant 0 : index
      %44 = vector.load %arg7[%c0_16, %c0_17] : memref<2x128xf32, #tpu.memory_space<vmem>>, vector<2x128xf32>
      tpu.vector_store %arg7[%c0_16, %c0_17], %43 {strides = array<i32>} : memref<2x128xf32, #tpu.memory_space<vmem>>, vector<2x128xf32>,
    } else {
    }
    %c0 = arith.constant 0 : index
    %c0_1 = arith.constant 0 : index
    %3 = vector.load %arg7[%c0, %c0_1] : memref<2x128xf32, #tpu.memory_space<vmem>>, vector<2x128xf32>
    %c0_2 = arith.constant 0 : index
    %c0_3 = arith.constant 0 : index
    %c0_4 = arith.constant 0 : index
    %4 = vector.load %arg1[%c0_2, %c0_3, %c0_4] : memref<1x2x384xbf16, #tpu.memory_space<vmem>>, vector<1x2x384xbf16>
    %5 = vector.shape_cast %4 : vector<1x2x384xbf16> to vector<2x384xbf16>
    %6 = arith.extf %5 : vector<2x384xbf16> to vector<2x384xf32>
    %7 = arith.truncf %3 : vector<2x128xf32> to vector<2x128xbf16>
    %c0_5 = arith.constant 0 : index
    %c0_6 = arith.constant 0 : index
    %8 = vector.load %arg2[%c0_5, %c0_6] : memref<128x384xbf16, #tpu.memory_space<vmem>>, vector<128x384xbf16>
    %cst = arith.constant dense<0.000000e+00> : vector<2x384xf32>
    %9 = tpu.matmul %7, %8, %cst {dimension_numbers = #tpu.dot_dimension_numbers<[1], [0], [0], [1], [0, 0, 1, 1], [], []>} : vector<2x128xbf16>, vector<128x384xbf16>, vector<2x384xf32> -> vector<2x384xf32>
    %c0_7 = arith.constant 0 : index
    %c0_8 = arith.constant 0 : index
    %10 = vector.load %arg3[%c0_7, %c0_8] : memref<1x384xf32, #tpu.memory_space<vmem>>, vector<1x384xf32>
    %11 = vector.broadcast %10 : vector<1x384xf32> to vector<2x384xf32>
    %12 = arith.addf %9, %11 : vector<2x384xf32>
    %13 = vector.extract_strided_slice %6 {offsets = [0, 0], sizes = [2, 128], strides = [1, 1]} : vector<2x384xf32> to vector<2x128xf32>
    %14 = vector.extract_strided_slice %12 {offsets = [0, 0], sizes = [2, 128], strides = [1, 1]} : vector<2x384xf32> to vector<2x128xf32>
    %15 = arith.addf %13, %14 : vector<2x128xf32>
    %16 = arith.negf %15 : vector<2x128xf32>
    %17 = math.exp %16 : vector<2x128xf32>
    %cst_9 = arith.constant 1.000000e+00 : f32
    %18 = vector.broadcast %cst_9 : f32 to vector<2x128xf32>
    %19 = arith.addf %18, %17 : vector<2x128xf32>
    %20 = arith.divf %18, %19 : vector<2x128xf32>
    %21 = vector.extract_strided_slice %6 {offsets = [0, 128], sizes = [2, 128], strides = [1, 1]} : vector<2x384xf32> to vector<2x128xf32>
    %22 = vector.extract_strided_slice %12 {offsets = [0, 128], sizes = [2, 128], strides = [1, 1]} : vector<2x384xf32> to vector<2x128xf32>
    %23 = arith.addf %21, %22 : vector<2x128xf32>
    %24 = arith.negf %23 : vector<2x128xf32>
    %25 = math.exp %24 : vector<2x128xf32>
    %cst_10 = arith.constant 1.000000e+00 : f32
    %26 = vector.broadcast %cst_10 : f32 to vector<2x128xf32>
    %27 = arith.addf %26, %25 : vector<2x128xf32>
    %28 = arith.divf %26, %27 : vector<2x128xf32>
    %29 = vector.extract_strided_slice %6 {offsets = [0, 256], sizes = [2, 128], strides = [1, 1]} : vector<2x384xf32> to vector<2x128xf32>
    %30 = vector.extract_strided_slice %12 {offsets = [0, 256], sizes = [2, 128], strides = [1, 1]} : vector<2x384xf32> to vector<2x128xf32>
    %31 = arith.mulf %20, %30 : vector<2x128xf32>
    %32 = arith.addf %29, %31 : vector<2x128xf32>
    %33 = math.tanh %32 : vector<2x128xf32>
    %cst_11 = arith.constant 1.000000e+00 : f32
    %34 = vector.broadcast %cst_11 : f32 to vector<2x128xf32>
    %35 = arith.subf %34, %28 : vector<2x128xf32>
    %36 = arith.mulf %35, %33 : vector<2x128xf32>
    %37 = arith.mulf %28, %3 : vector<2x128xf32>
    %38 = arith.addf %36, %37 : vector<2x128xf32>
    %c0_12 = arith.constant 0 : index
    %c0_13 = arith.constant 0 : index
    %39 = vector.load %arg7[%c0_12, %c0_13] : memref<2x128xf32, #tpu.memory_space<vmem>>, vector<2x128xf32>
    tpu.vector_store %arg7[%c0_12, %c0_13], %38 {strides = array<i32>} : memref<2x128xf32, #tpu.memory_space<vmem>>, vector<2x128xf32>,
    %c5_i32 = arith.constant 5 : i32
    %40 = arith.cmpi eq, %arg0, %c5_i32 : i32
    %41 = arith.extui %40 : i1 to i32
    %c0_i32_14 = arith.constant 0 : i32
    %42 = arith.cmpi ne, %41, %c0_i32_14 : i32
    scf.if %42 {
      %c0_15 = arith.constant 0 : index
      %c0_16 = arith.constant 0 : index
      %43 = vector.load %arg4[%c0_15, %c0_16] : memref<128x2xf32, #tpu.memory_space<vmem>>, vector<128x2xf32>
      %cst_17 = arith.constant dense<0.000000e+00> : vector<2x2xf32>
      %44 = tpu.matmul %38, %43, %cst_17 {dimension_numbers = #tpu.dot_dimension_numbers<[1], [0], [0], [1], [0, 0, 1, 1], [], []>} : vector<2x128xf32>, vector<128x2xf32>, vector<2x2xf32> -> vector<2x2xf32>
      %c0_18 = arith.constant 0 : index
      %c0_19 = arith.constant 0 : index
      %45 = vector.load %arg5[%c0_18, %c0_19] : memref<1x2xf32, #tpu.memory_space<vmem>>, vector<1x2xf32>
      %46 = vector.broadcast %45 : vector<1x2xf32> to vector<2x2xf32>
      %47 = arith.addf %44, %46 : vector<2x2xf32>
      %c0_20 = arith.constant 0 : index
      %c0_21 = arith.constant 0 : index
      %48 = vector.load %arg6[%c0_20, %c0_21] : memref<2x2xf32, #tpu.memory_space<vmem>>, vector<2x2xf32>
      tpu.vector_store %arg6[%c0_20, %c0_21], %47 {strides = array<i32>} : memref<2x2xf32, #tpu.memory_space<vmem>>, vector<2x2xf32>,
    } else {
    }
    return
  }
  func.func @transform_0(%arg0: i32) -> (i32, i32, i32) {
    %c0_i32 = arith.constant 0 : i32
    %c0_i32_0 = arith.constant 0 : i32
    %c0_i32_1 = arith.constant 0 : i32
    return %arg0, %c0_i32, %c0_i32_0 : i32, i32, i32
  }
  func.func @transform_1(%arg0: i32) -> (i32, i32) {
    %c0_i32 = arith.constant 0 : i32
    %c0_i32_0 = arith.constant 0 : i32
    %c0_i32_1 = arith.constant 0 : i32
    return %c0_i32, %c0_i32_0 : i32, i32
  }
  func.func @transform_2(%arg0: i32) -> (i32, i32) {
    %c0_i32 = arith.constant 0 : i32
    %c0_i32_0 = arith.constant 0 : i32
    %c0_i32_1 = arith.constant 0 : i32
    return %c0_i32, %c0_i32_0 : i32, i32
  }
  func.func @transform_3(%arg0: i32) -> (i32, i32) {
    %c0_i32 = arith.constant 0 : i32
    %c0_i32_0 = arith.constant 0 : i32
    %c0_i32_1 = arith.constant 0 : i32
    return %c0_i32, %c0_i32_0 : i32, i32
  }
  func.func @transform_4(%arg0: i32) -> (i32, i32) {
    %c0_i32 = arith.constant 0 : i32
    %c0_i32_0 = arith.constant 0 : i32
    %c0_i32_1 = arith.constant 0 : i32
    return %c0_i32, %c0_i32_0 : i32, i32
  }
  func.func @transform_5(%arg0: i32) -> (i32, i32) {
    %c0_i32 = arith.constant 0 : i32
    %c0_i32_0 = arith.constant 0 : i32
    %c0_i32_1 = arith.constant 0 : i32
    return %c0_i32, %c0_i32_0 : i32, i32
  }
}

</mosaic_0001>

<llo_original>
// kernel: gaze_model_forward.5
$region0: #{gaze_model_forward.5}
  #allocation0 [shape = 'u32[]', space=smem, size = 0x4, offset = 0x4, fixed_abs, tag = 'smem constant byte address 0x4 - core index']
  #allocation1 [shape = 'u32[144,128]{1,0:T(1,128)}', space=vmem, size = 0x12000, scoped, tag = 'internal scratch']
  #allocation2 [shape = 'f32[2,128]{1,0:T(2,128)}', space=vmem, size = 0x400, scoped, tag = 'scratch operand']
  %s0 = inlined_call_operand.vmem [shape: bf16[6,2,384], index: 0, kind: input, shape index: {}]
  %s1 = inlined_call_operand.vmem [shape: bf16[128,384], index: 1, kind: input, shape index: {}]
  %s2 = inlined_call_operand.vmem [shape: f32[1,384], index: 2, kind: input, shape index: {}]
  %s3 = inlined_call_operand.vmem [shape: f32[128,2], index: 3, kind: input, shape index: {}]
  %s4 = inlined_call_operand.vmem [shape: f32[1,2], index: 4, kind: input, shape index: {}]
  %s5 = inlined_call_operand.hbm [shape: f32[2,2], index: 5, kind: output, shape index: {}]
  %s6 = sld [smem:[#allocation0]]
  $region61: #{gaze_model_forward.5} parent=0
    _
  %s8 = ssub.s32 1, %s6
  %s9 = scalar_select 0, %s8, %s6
  $region1: #{gaze_model_forward.5} parent=0
    #allocation3 [shape = 'u8[1024]{0}', space=vmem, size = 0x400, scoped, tag = 'output window, operand 0, single buffered']
    #allocation4 [shape = 's32[2]{0}', space=sflag, size = 0x8, scoped, tag = 'scoped memory for gaze_model_forward.5']
    %10 = vsyncpa [#allocation4], 0
    loop: start=0, step=1, limit=8
    $region2: #{gaze_model_forward.5} parent=1 // loop_pre_header
      _
    $region3: #{gaze_model_forward.5} parent=1 // loop_header
      %s12 = sphi 0, %s16
      %p13 = scmp.ge.s32.totalorder %s12, 8
      %s22 = sphi 0, %s24
      %s25 = sphi 0, %s22
      %s26 = sphi 0, %s25
      %s42 = sphi 0, %s26
      %s46 = sphi 0, %s46
      %s48 = sphi 0, %s46
      %s49 = sphi 0, %s48
      %s63 = sphi 0, %s49
      %s67 = sphi 0, %s67
      %s69 = sphi 0, %s67
      %s70 = sphi 0, %s69
      %s84 = sphi 0, %s70
      %s88 = sphi 0, %s88
      %s90 = sphi 0, %s88
      %s91 = sphi 0, %s90
      %s105 = sphi 0, %s91
      %s109 = sphi 0, %s109
      %s111 = sphi 0, %s109
      %s112 = sphi 0, %s111
      %s126 = sphi 0, %s112
      %s130 = sphi 0, %s130
      %s132 = sphi 0, %s130
      %s133 = sphi 0, %s132
      %s147 = sphi 0, %s133
    $region4: #{gaze_model_forward.5} parent=1 // loop_header_branch
      %15 = sbr.rel (%p13) target = $region8
    $region5: #{gaze_model_forward.5} parent=1 // loop_body
      %s17 = ssub.s32 %s12, 1
      %s18 = ssub.s32 %s12, 2
      %s19 = sadd.s32 %s12, 1
      %s20 = ssub.s32 %s12, %s19
      %p21 = scmp.eq.s32.totalorder %s20, 0
      %s23 = sadd.s32 %s22, 1
      %s24 = scalar_select %p21, %s22, %s23
      %p27 = pneg %p21
      %p28 = scmp.eq.s32.totalorder %s12, 5
      %p29 = por %p27, %p28
      %p30 = scmp.ne.s32.totalorder %s22, %s25
      %p31 = scmp.eq.s32.totalorder %s12, 0
      %p32 = por %p30, %p31
      %p33 = scmp.ne.s32.totalorder %s22, %s25
      %p34 = scmp.eq.s32.totalorder %s17, 5
      %p35 = por %p33, %p34
      %p36 = scmp.ne.s32.totalorder %s25, %s26
      %p37 = scmp.eq.s32.totalorder %s17, 0
      %p38 = por %p36, %p37
      %p39 = scmp.ne.s32.totalorder %s25, %s26
      %p40 = scmp.eq.s32.totalorder %s18, 5
      %p41 = por %p39, %p40
      %p43 = scmp.ne.s32.totalorder %s26, %s42
      %p44 = scmp.eq.s32.totalorder %s18, 0
      %p45 = por %p43, %p44
      %s47 = sadd.s32 %s46, 1
      %p50 = scmp.eq.s32.totalorder %s12, 5
      %p51 = scmp.ne.s32.totalorder %s46, %s48
      %p52 = scmp.eq.s32.totalorder %s12, 0
      %p53 = por %p51, %p52
      %p54 = scmp.ne.s32.totalorder %s46, %s48
      %p55 = scmp.eq.s32.totalorder %s17, 5
      %p56 = por %p54, %p55
      %p57 = scmp.ne.s32.totalorder %s48, %s49
      %p58 = scmp.eq.s32.totalorder %s17, 0
      %p59 = por %p57, %p58
      %p60 = scmp.ne.s32.totalorder %s48, %s49
      %p61 = scmp.eq.s32.totalorder %s18, 5
      %p62 = por %p60, %p61
      %p64 = scmp.ne.s32.totalorder %s49, %s63
      %p65 = scmp.eq.s32.totalorder %s18, 0
      %p66 = por %p64, %p65
      %s68 = sadd.s32 %s67, 1
      %p71 = scmp.eq.s32.totalorder %s12, 5
      %p72 = scmp.ne.s32.totalorder %s67, %s69
      %p73 = scmp.eq.s32.totalorder %s12, 0
      %p74 = por %p72, %p73
      %p75 = scmp.ne.s32.totalorder %s67, %s69
      %p76 = scmp.eq.s32.totalorder %s17, 5
      %p77 = por %p75, %p76
      %p78 = scmp.ne.s32.totalorder %s69, %s70
      %p79 = scmp.eq.s32.totalorder %s17, 0
      %p80 = por %p78, %p79
      %p81 = scmp.ne.s32.totalorder %s69, %s70
      %p82 = scmp.eq.s32.totalorder %s18, 5
      %p83 = por %p81, %p82
      %p85 = scmp.ne.s32.totalorder %s70, %s84
      %p86 = scmp.eq.s32.totalorder %s18, 0
      %p87 = por %p85, %p86
      %s89 = sadd.s32 %s88, 1
      %p92 = scmp.eq.s32.totalorder %s12, 5
      %p93 = scmp.ne.s32.totalorder %s88, %s90
      %p94 = scmp.eq.s32.totalorder %s12, 0
      %p95 = por %p93, %p94
      %p96 = scmp.ne.s32.totalorder %s88, %s90
      %p97 = scmp.eq.s32.totalorder %s17, 5
      %p98 = por %p96, %p97
      %p99 = scmp.ne.s32.totalorder %s90, %s91
      %p100 = scmp.eq.s32.totalorder %s17, 0
      %p101 = por %p99, %p100
      %p102 = scmp.ne.s32.totalorder %s90, %s91
      %p103 = scmp.eq.s32.totalorder %s18, 5
      %p104 = por %p102, %p103
      %p106 = scmp.ne.s32.totalorder %s91, %s105
      %p107 = scmp.eq.s32.totalorder %s18, 0
      %p108 = por %p106, %p107
      %s110 = sadd.s32 %s109, 1
      %p113 = scmp.eq.s32.totalorder %s12, 5
      %p114 = scmp.ne.s32.totalorder %s109, %s111
      %p115 = scmp.eq.s32.totalorder %s12, 0
      %p116 = por %p114, %p115
      %p117 = scmp.ne.s32.totalorder %s109, %s111
      %p118 = scmp.eq.s32.totalorder %s17, 5
      %p119 = por %p117, %p118
      %p120 = scmp.ne.s32.totalorder %s111, %s112
      %p121 = scmp.eq.s32.totalorder %s17, 0
      %p122 = por %p120, %p121
      %p123 = scmp.ne.s32.totalorder %s111, %s112
      %p124 = scmp.eq.s32.totalorder %s18, 5
      %p125 = por %p123, %p124
      %p127 = scmp.ne.s32.totalorder %s112, %s126
      %p128 = scmp.eq.s32.totalorder %s18, 0
      %p129 = por %p127, %p128
      %s131 = sadd.s32 %s130, 1
      %p134 = scmp.eq.s32.totalorder %s12, 5
      %p135 = scmp.ne.s32.totalorder %s130, %s132
      %p136 = scmp.eq.s32.totalorder %s12, 0
      %p137 = por %p135, %p136
      %p138 = scmp.ne.s32.totalorder %s130, %s132
      %p139 = scmp.eq.s32.totalorder %s17, 5
      %p140 = por %p138, %p139
      %p141 = scmp.ne.s32.totalorder %s132, %s133
      %p142 = scmp.eq.s32.totalorder %s17, 0
      %p143 = por %p141, %p142
      %p144 = scmp.ne.s32.totalorder %s132, %s133
      %p145 = scmp.eq.s32.totalorder %s18, 5
      %p146 = por %p144, %p145
      %p148 = scmp.ne.s32.totalorder %s133, %s147
      %p149 = scmp.eq.s32.totalorder %s18, 0
      %p150 = por %p148, %p149
      %p151 = scmp.le.s32.totalorder 1, %s12
      %p152 = scmp.lt.s32.totalorder %s12, 7
      %p153 = pnand %p151, %p152
      %p154 = pneg %p153
      // Predicated region
      $region9: #{gaze_model_forward.5} parent=5 // pred_check
        _
      $region10: #{gaze_model_forward.5} parent=5 // pred_check_branch
        %156 = sbr.rel (%p153) target = $region12
      $region11: #{gaze_model_forward.5} parent=5 // pred_region
        %s157 = ssub.s32 %s12, 1
        // Predicated region
        $region13: #{gaze_model_forward.5} parent=11 // pred_check
          %p158 = pneg %p59
        $region14: #{gaze_model_forward.5} parent=11 // pred_check_branch
          %160 = sbr.rel (%p158) target = $region16
        $region15: #{gaze_model_forward.5} parent=11 // pred_region
          _
        $region16: #{gaze_model_forward.5} parent=11 // pred_fallthru
          _
        // Predicated region
        $region17: #{gaze_model_forward.5} parent=11 // pred_check
          %p161 = pneg %p80
        $region18: #{gaze_model_forward.5} parent=11 // pred_check_branch
          %163 = sbr.rel (%p161) target = $region20
        $region19: #{gaze_model_forward.5} parent=11 // pred_region
          _
        $region20: #{gaze_model_forward.5} parent=11 // pred_fallthru
          _
        // Predicated region
        $region21: #{gaze_model_forward.5} parent=11 // pred_check
          %p164 = pneg %p101
        $region22: #{gaze_model_forward.5} parent=11 // pred_check_branch
          %166 = sbr.rel (%p164) target = $region24
        $region23: #{gaze_model_forward.5} parent=11 // pred_region
          _
        $region24: #{gaze_model_forward.5} parent=11 // pred_fallthru
          _
        // Predicated region
        $region25: #{gaze_model_forward.5} parent=11 // pred_check
          %p167 = pneg %p122
        $region26: #{gaze_model_forward.5} parent=11 // pred_check_branch
          %169 = sbr.rel (%p167) target = $region28
        $region27: #{gaze_model_forward.5} parent=11 // pred_region
          _
        $region28: #{gaze_model_forward.5} parent=11 // pred_fallthru
          _
      $region12: #{gaze_model_forward.5} parent=5 // pred_fallthru
        _
      %p170 = scmp.lt.s32.totalorder %s12, 6
      // Predicated region
      $region29: #{gaze_model_forward.5} parent=5 // pred_check
        %p171 = pneg %p170
      $region30: #{gaze_model_forward.5} parent=5 // pred_check_branch
        %173 = sbr.rel (%p171) target = $region32
      $region31: #{gaze_model_forward.5} parent=5 // pred_region
        // Predicated region
        $region33: #{gaze_model_forward.5} parent=31 // pred_check
          %p174 = pneg %p32
        $region34: #{gaze_model_forward.5} parent=31 // pred_check_branch
          %176 = sbr.rel (%p174) target = $region36
        $region35: #{gaze_model_forward.5} parent=31 // pred_region
          %p177 = scmp.lt.s32.totalorder %s12, 5
          %s178 = scalar_select %p177, %s12, 5
          %s179 = smul.addr %s178, 3
          %s180 = scalar_lea.vmem %s0, %s179
        $region36: #{gaze_model_forward.5} parent=31 // pred_fallthru
          _
      $region32: #{gaze_model_forward.5} parent=5 // pred_fallthru
        _
      %p181 = scmp.le.s32.totalorder 1, %s12
      %p182 = scmp.lt.s32.totalorder %s12, 7
      %p183 = pnand %p181, %p182
      %p184 = pneg %p183
      // Predicated region
      $region37: #{gaze_model_forward.5} parent=5 // pred_check
        _
      $region38: #{gaze_model_forward.5} parent=5 // pred_check_branch
        %186 = sbr.rel (%p183) target = $region40
      $region39: #{gaze_model_forward.5} parent=5 // pred_region
        %s187 = ssub.s32 %s12, 1
        %p188 = scmp.lt.s32.totalorder %s17, 5
        %s189 = scalar_select %p188, %s17, 5
        %s190 = smul.addr %s189, 3
        %s191 = scalar_lea.vmem %s0, %s190
        %p192 = pneg %p38
        %p193 = pneg %p35
        %p194 = pneg %p59
        %p195 = pneg %p56
        %p196 = pneg %p80
        %p197 = pneg %p77
        %p198 = pneg %p101
        %p199 = pneg %p98
        %p200 = pneg %p122
        %p201 = pneg %p119
        %p202 = pneg %p143
        %p203 = pneg %p140
        %p204 = scmp.lt.s32.totalorder %s17, 5
        %s205 = scalar_select %p204, %s17, 5
        %s206 = smul.addr %s205, 3
        %s207 = scalar_lea.vmem %s0, %s206
        %p209 = scmp.eq.s32.totalorder %s17, 0
        // Predicated region
        $region41: #{gaze_model_forward.5} parent=39 // pred_check
          %p210 = pneg %p209
        $region42: #{gaze_model_forward.5} parent=39 // pred_check_branch
          %212 = sbr.rel (%p210) target = $region44
        $region43: #{gaze_model_forward.5} parent=39 // pred_region
          %213 = vst [vmem:[#allocation2] sm:$0x3] 0.0
        $region44: #{gaze_model_forward.5} parent=39 // pred_fallthru
          _
        %v214 = vld [vmem:[#allocation2] sm:$0x3]
        %v215 = vld [vmem:[%s207] sm:$0x7]
        %v216 = vunpack.c.l.bf16 %v215
        %v217 = vpack.c.bf16 %v214, %v214
        %v218 = vld [vmem:[%s1] sm:$0xff]
        %v219 = vld [vmem:[%s1 + $0x8] sm:$0xf]
        %v220 = vld [vmem:[%s1 + $0xc] sm:$0xff]
        %v221 = vld [vmem:[%s1 + $0x14] sm:$0xf]
        %v222 = vld [vmem:[%s1 + $0x18] sm:$0xff]
        %v223 = vld [vmem:[%s1 + $0x20] sm:$0xf]
        %v224 = vld [vmem:[%s1 + $0x24] sm:$0xff]
        %v225 = vld [vmem:[%s1 + $0x2c] sm:$0xf]
        %v226 = vld [vmem:[%s1 + $0x30] sm:$0xff]
        %v227 = vld [vmem:[%s1 + $0x38] sm:$0xf]
        %v228 = vld [vmem:[%s1 + $0x3c] sm:$0xff]
        %v229 = vld [vmem:[%s1 + $0x44] sm:$0xf]
        %v230 = vld [vmem:[%s1 + $0x48] sm:$0xff]
        %v231 = vld [vmem:[%s1 + $0x50] sm:$0xf]
        %v232 = vld [vmem:[%s1 + $0x54] sm:$0xff]
        %v233 = vld [vmem:[%s1 + $0x5c] sm:$0xf]
        %v234 = vld [vmem:[%s1 + $0x60] sm:$0xff]
        %v235 = vld [vmem:[%s1 + $0x68] sm:$0xf]
        %v236 = vld [vmem:[%s1 + $0x6c] sm:$0xff]
        %v237 = vld [vmem:[%s1 + $0x74] sm:$0xf]
        %v238 = vld [vmem:[%s1 + $0x78] sm:$0xff]
        %v239 = vld [vmem:[%s1 + $0x80] sm:$0xf]
        %v240 = vld [vmem:[%s1 + $0x84] sm:$0xff]
        %v241 = vld [vmem:[%s1 + $0x8c] sm:$0xf]
        %v242 = vld [vmem:[%s1 + $0x90] sm:$0xff]
        %v243 = vld [vmem:[%s1 + $0x98] sm:$0xf]
        %v244 = vld [vmem:[%s1 + $0x9c] sm:$0xff]
        %v245 = vld [vmem:[%s1 + $0xa4] sm:$0xf]
        %v246 = vld [vmem:[%s1 + $0xa8] sm:$0xff]
        %v247 = vld [vmem:[%s1 + $0xb0] sm:$0xf]
        %v248 = vld [vmem:[%s1 + $0xb4] sm:$0xff]
        %v249 = vld [vmem:[%s1 + $0xbc] sm:$0xf]
        %v250 = vld [vmem:[%s2] sm:$0x7]
        %v252 = vlaneseq
        %v253 = vshrl.u32 %v252, 7
        %v254 = vsub.s32 0, %v253
        %v255 = vrot.slane %v250, %v254
        %v256 = vlaneseq
        %v257 = vshrl.u32 %v256, 7
        %v258 = vsub.s32 1, %v257
        %v259 = vrot.slane %v250, %v258
        %v260 = vlaneseq
        %v261 = vshrl.u32 %v260, 7
        %v262 = vsub.s32 2, %v261
        %v263 = vrot.slane %v250, %v262
        %v299 = vunpack.c.l.b16 %v218
        %v300 = vunpack.c.h.b16 %v218
        %v301 = vunpack.c.l.b16 %v219
        %v302 = vunpack.c.l.b16 %v220
        %v303 = vunpack.c.h.b16 %v220
        %v304 = vunpack.c.l.b16 %v221
        %v305 = vunpack.c.l.b16 %v222
        %v306 = vunpack.c.h.b16 %v222
        %v307 = vunpack.c.l.b16 %v223
        %v308 = vunpack.c.l.b16 %v224
        %v309 = vunpack.c.h.b16 %v224
        %v310 = vunpack.c.l.b16 %v225
        %v311 = vunpack.c.l.b16 %v226
        %v312 = vunpack.c.h.b16 %v226
        %v313 = vunpack.c.l.b16 %v227
        %v314 = vunpack.c.l.b16 %v228
        %v315 = vunpack.c.h.b16 %v228
        %v316 = vunpack.c.l.b16 %v229
        %v317 = vunpack.c.l.b16 %v230
        %v318 = vunpack.c.h.b16 %v230
        %v319 = vunpack.c.l.b16 %v231
        %v320 = vunpack.c.l.b16 %v232
        %v321 = vunpack.c.h.b16 %v232
        %v322 = vunpack.c.l.b16 %v233
        %v323 = vunpack.c.l.b16 %v234
        %v324 = vunpack.c.h.b16 %v234
        %v325 = vunpack.c.l.b16 %v235
        %v326 = vunpack.c.l.b16 %v236
        %v327 = vunpack.c.h.b16 %v236
        %v328 = vunpack.c.l.b16 %v237
        %v329 = vunpack.c.l.b16 %v238
        %v330 = vunpack.c.h.b16 %v238
        %v331 = vunpack.c.l.b16 %v239
        %v332 = vunpack.c.l.b16 %v240
        %v333 = vunpack.c.h.b16 %v240
        %v334 = vunpack.c.l.b16 %v241
        %v335 = vunpack.c.l.b16 %v242
        %v336 = vunpack.c.h.b16 %v242
        %v337 = vunpack.c.l.b16 %v243
        %v338 = vunpack.c.l.b16 %v244
        %v339 = vunpack.c.h.b16 %v244
        %v340 = vunpack.c.l.b16 %v245
        %v341 = vunpack.c.l.b16 %v246
        %v342 = vunpack.c.h.b16 %v246
        %v343 = vunpack.c.l.b16 %v247
        %v344 = vunpack.c.l.b16 %v248
        %v345 = vunpack.c.h.b16 %v248
        %v346 = vunpack.c.l.b16 %v249
        %v347 = vpack.c.b16 %v302, %v299
        %v348 = vpack.c.b16 %v303, %v300
        %v349 = vpack.c.b16 %v304, %v301
        %v350 = vpack.c.b16 %v308, %v305
        %v351 = vpack.c.b16 %v309, %v306
        %v352 = vpack.c.b16 %v310, %v307
        %v353 = vpack.c.b16 %v314, %v311
        %v354 = vpack.c.b16 %v315, %v312
        %v355 = vpack.c.b16 %v316, %v313
        %v356 = vpack.c.b16 %v320, %v317
        %v357 = vpack.c.b16 %v321, %v318
        %v358 = vpack.c.b16 %v322, %v319
        %v359 = vpack.c.b16 %v326, %v323
        %v360 = vpack.c.b16 %v327, %v324
        %v361 = vpack.c.b16 %v328, %v325
        %v362 = vpack.c.b16 %v332, %v329
        %v363 = vpack.c.b16 %v333, %v330
        %v364 = vpack.c.b16 %v334, %v331
        %v365 = vpack.c.b16 %v338, %v335
        %v366 = vpack.c.b16 %v339, %v336
        %v367 = vpack.c.b16 %v340, %v337
        %v368 = vpack.c.b16 %v344, %v341
        %v369 = vpack.c.b16 %v345, %v342
        %v370 = vpack.c.b16 %v346, %v343
        %395 = vmatprep.subr.bf16.mxu0 %v348
        %396 = vmatpush1.bf16.msra.mxu0 %v347
        %397 = vmatprep.subr.bf16.mxu0 %v351
        %398 = vmatpush1.bf16.msra.mxu0 %v350
        %399 = vmatprep.subr.bf16.mxu0 %v354
        %400 = vmatpush1.bf16.msra.mxu0 %v353
        %401 = vmatprep.subr.bf16.mxu0 %v357
        %402 = vmatpush1.bf16.msra.mxu0 %v356
        %403 = vmatprep.subr.bf16.mxu0 %v360
        %404 = vmatpush1.bf16.msra.mxu0 %v359
        %405 = vmatprep.subr.bf16.mxu0 %v363
        %406 = vmatpush1.bf16.msra.mxu0 %v362
        %407 = vmatprep.subr.bf16.mxu0 %v366
        %408 = vmatpush1.bf16.msra.mxu0 %v365
        %409 = vmatprep.subr.bf16.mxu0 %v369
        %410 = vmatpush1.bf16.msra.mxu0 %v368
        %411 = vmatprep.subr.bf16.mxu0 0
        %412 = vmatpush1.bf16.msra.mxu0 0
        %413 = vmatprep.subr.bf16.mxu0 0
        %414 = vmatpush1.bf16.msra.mxu0 0
        %415 = vmatprep.subr.bf16.mxu0 0
        %416 = vmatpush1.bf16.msra.mxu0 0
        %417 = vmatprep.subr.bf16.mxu0 0
        %418 = vmatpush1.bf16.msra.mxu0 0
        %419 = vmatprep.subr.bf16.mxu0 0
        %420 = vmatpush1.bf16.msra.mxu0 0
        %421 = vmatprep.subr.bf16.mxu0 0
        %422 = vmatpush1.bf16.msra.mxu0 0
        %423 = vmatprep.subr.bf16.mxu0 0
        %424 = vmatpush1.bf16.msra.mxu0 0
        %425 = vmatprep.subr.bf16.mxu0 0
        %426 = vmatpush1.bf16.msra.mxu0 0
        %427 = vmatprep.mubr.bf16.mxu0 0
        %428 = vmatmul.mubr.bf16.gmra.mrb[0].mxu0 %v217
        %v429 = vpop.f32.mrb[0].mxu0
        %v430 = vadd.f32 %v255, %v429
        %v431 = vpop.f32.mrb[0].mxu0
        %v432 = vadd.f32 %v259, %v431
        %v433 = vpop.f32.mrb[0].mxu0
        %v434 = vpop.f32.mrb[0].mxu0
        %435 = vdwg.mxu0
        %436 = vmatprep.subr.bf16.mxu0 0
        %437 = vmatpush1.bf16.msra.mxu0 %v349
        %438 = vmatprep.subr.bf16.mxu0 0
        %439 = vmatpush1.bf16.msra.mxu0 %v352
        %440 = vmatprep.subr.bf16.mxu0 0
        %441 = vmatpush1.bf16.msra.mxu0 %v355
        %442 = vmatprep.subr.bf16.mxu0 0
        %443 = vmatpush1.bf16.msra.mxu0 %v358
        %444 = vmatprep.subr.bf16.mxu0 0
        %445 = vmatpush1.bf16.msra.mxu0 %v361
        %446 = vmatprep.subr.bf16.mxu0 0
        %447 = vmatpush1.bf16.msra.mxu0 %v364
        %448 = vmatprep.subr.bf16.mxu0 0
        %449 = vmatpush1.bf16.msra.mxu0 %v367
        %450 = vmatprep.subr.bf16.mxu0 0
        %451 = vmatpush1.bf16.msra.mxu0 %v370
        %452 = vmatprep.subr.bf16.mxu0 0
        %453 = vmatpush1.bf16.msra.mxu0 0
        %454 = vmatprep.subr.bf16.mxu0 0
        %455 = vmatpush1.bf16.msra.mxu0 0
        %456 = vmatprep.subr.bf16.mxu0 0
        %457 = vmatpush1.bf16.msra.mxu0 0
        %458 = vmatprep.subr.bf16.mxu0 0
        %459 = vmatpush1.bf16.msra.mxu0 0
        %460 = vmatprep.subr.bf16.mxu0 0
        %461 = vmatpush1.bf16.msra.mxu0 0
        %462 = vmatprep.subr.bf16.mxu0 0
        %463 = vmatpush1.bf16.msra.mxu0 0
        %464 = vmatprep.subr.bf16.mxu0 0
        %465 = vmatpush1.bf16.msra.mxu0 0
        %466 = vmatprep.subr.bf16.mxu0 0
        %467 = vmatpush1.bf16.msra.mxu0 0
        %468 = vmatprep.mubr.bf16.mxu0 0
        %469 = vmatmul.mubr.bf16.gmra.mrb[0].mxu0 %v217
        %v470 = vpop.f32.mrb[0].mxu0
        %v471 = vadd.f32 %v263, %v470
        %v472 = vpop.f32.mrb[0].mxu0
        %v473 = vpop.f32.mrb[0].mxu0
        %v474 = vpop.f32.mrb[0].mxu0
        %475 = vdwg.mxu0
        %v476 = vadd.f32 %v216, %v430
        %v477 = vxor.u32 %v476, 2147483648
        %v478 = vmul.f32 %v477, 1.442695
        %v479 = vpow.pop %v478
        %v480 = vadd.f32 %v479, 1.0
        %v481 = vrcp.pop %v480
        %v482 = vmul.f32 1.0, %v481
        %v484 = vrot.slane %v216, 2
        %v486 = vadd.f32 %v484, %v432
        %v487 = vxor.u32 %v486, 2147483648
        %v488 = vmul.f32 %v487, 1.442695
        %v489 = vpow.pop %v488
        %v490 = vadd.f32 %v489, 1.0
        %v491 = vrcp.pop %v490
        %v492 = vmul.f32 1.0, %v491
        %v493 = vmul.f32 %v482, %v471
        %v494 = vrot.slane %v216, 4
        %v496 = vadd.f32 %v494, %v493
        %v497 = vtanh.pop %v496
        %v498 = vsub.f32 1.0, %v492
        %v499 = vmul.f32 %v498, %v497
        %v500 = vmul.f32 %v492, %v214
        %v501 = vadd.f32 %v499, %v500
        %502 = vst [vmem:[#allocation2] sm:$0x3] %v501
        %p503 = scmp.eq.s32.totalorder %s17, 5
        // Predicated region
        $region45: #{gaze_model_forward.5} parent=39 // pred_check
          %p504 = pneg %p503
        $region46: #{gaze_model_forward.5} parent=39 // pred_check_branch
          %506 = sbr.rel (%p504) target = $region48
        $region47: #{gaze_model_forward.5} parent=39 // pred_region
          %v507 = vld [vmem:[%s3] sm:$0xff]
          %v508 = vld [vmem:[%s3 + $0x8] sm:$0xff]
          %v509 = vld [vmem:[%s3 + $0x10] sm:$0xff]
          %v510 = vld [vmem:[%s3 + $0x18] sm:$0xff]
          %v511 = vld [vmem:[%s3 + $0x20] sm:$0xff]
          %v512 = vld [vmem:[%s3 + $0x28] sm:$0xff]
          %v513 = vld [vmem:[%s3 + $0x30] sm:$0xff]
          %v514 = vld [vmem:[%s3 + $0x38] sm:$0xff]
          %v515 = vld [vmem:[%s3 + $0x40] sm:$0xff]
          %v516 = vld [vmem:[%s3 + $0x48] sm:$0xff]
          %v517 = vld [vmem:[%s3 + $0x50] sm:$0xff]
          %v518 = vld [vmem:[%s3 + $0x58] sm:$0xff]
          %v519 = vld [vmem:[%s3 + $0x60] sm:$0xff]
          %v520 = vld [vmem:[%s3 + $0x68] sm:$0xff]
          %v521 = vld [vmem:[%s3 + $0x70] sm:$0xff]
          %v522 = vld [vmem:[%s3 + $0x78] sm:$0xff]
          %v523 = vld [vmem:[%s4] sm:$0x1]
          %v525 = vlaneseq
          %v526 = vshrl.u32 %v525, 7
          %v527 = vsub.s32 0, %v526
          %v528 = vrot.slane %v523, %v527
          %530 = vmatprep.subr.mxu0 0.0
          %531 = vmatpush1.msra.mxu0 %v507
          %532 = vmatprep.subr.mxu0 0.0
          %533 = vmatpush1.msra.mxu0 %v508
          %534 = vmatprep.subr.mxu0 0.0
          %535 = vmatpush1.msra.mxu0 %v509
          %536 = vmatprep.subr.mxu0 0.0
          %537 = vmatpush1.msra.mxu0 %v510
          %538 = vmatprep.subr.mxu0 0.0
          %539 = vmatpush1.msra.mxu0 %v511
          %540 = vmatprep.subr.mxu0 0.0
          %541 = vmatpush1.msra.mxu0 %v512
          %542 = vmatprep.subr.mxu0 0.0
          %543 = vmatpush1.msra.mxu0 %v513
          %544 = vmatprep.subr.mxu0 0.0
          %545 = vmatpush1.msra.mxu0 %v514
          %546 = vmatprep.subr.mxu0 0.0
          %547 = vmatpush1.msra.mxu0 %v515
          %548 = vmatprep.subr.mxu0 0.0
          %549 = vmatpush1.msra.mxu0 %v516
          %550 = vmatprep.subr.mxu0 0.0
          %551 = vmatpush1.msra.mxu0 %v517
          %552 = vmatprep.subr.mxu0 0.0
          %553 = vmatpush1.msra.mxu0 %v518
          %554 = vmatprep.subr.mxu0 0.0
          %555 = vmatpush1.msra.mxu0 %v519
          %556 = vmatprep.subr.mxu0 0.0
          %557 = vmatpush1.msra.mxu0 %v520
          %558 = vmatprep.subr.mxu0 0.0
          %559 = vmatpush1.msra.mxu0 %v521
          %560 = vmatprep.subr.mxu0 0.0
          %561 = vmatpush1.msra.mxu0 %v522
          %562 = vmatprep.subr.mxu0 0.0
          %563 = vmatpush1.msra.mxu0 0.0
          %564 = vmatprep.subr.mxu0 0.0
          %565 = vmatpush1.msra.mxu0 0.0
          %566 = vmatprep.subr.mxu0 0.0
          %567 = vmatpush1.msra.mxu0 0.0
          %568 = vmatprep.subr.mxu0 0.0
          %569 = vmatpush1.msra.mxu0 0.0
          %570 = vmatprep.subr.mxu0 0.0
          %571 = vmatpush1.msra.mxu0 0.0
          %572 = vmatprep.subr.mxu0 0.0
          %573 = vmatpush1.msra.mxu0 0.0
          %574 = vmatprep.subr.mxu0 0.0
          %575 = vmatpush1.msra.mxu0 0.0
          %576 = vmatprep.subr.mxu0 0.0
          %577 = vmatpush1.msra.mxu0 0.0
          %578 = vmatprep.subr.mxu0 0.0
          %579 = vmatpush1.msra.mxu0 0.0
          %580 = vmatprep.subr.mxu0 0.0
          %581 = vmatpush1.msra.mxu0 0.0
          %582 = vmatprep.subr.mxu0 0.0
          %583 = vmatpush1.msra.mxu0 0.0
          %584 = vmatprep.subr.mxu0 0.0
          %585 = vmatpush1.msra.mxu0 0.0
          %586 = vmatprep.subr.mxu0 0.0
          %587 = vmatpush1.msra.mxu0 0.0
          %588 = vmatprep.subr.mxu0 0.0
          %589 = vmatpush1.msra.mxu0 0.0
          %590 = vmatprep.subr.mxu0 0.0
          %591 = vmatpush1.msra.mxu0 0.0
          %592 = vmatprep.subr.mxu0 0.0
          %593 = vmatpush1.msra.mxu0 0.0
          %594 = vmatprep.mubr.f32.mxu0 0.0
          %595 = vmatmul.mubr.f32.gmra.mrb[0].mxu0 %v501
          %v596 = vpop.f32.mrb[0].mxu0
          %v597 = vadd.f32 %v528, %v596
          %v598 = vpop.f32.mrb[0].mxu0
          %599 = vdwg.mxu0
          %vm600 = vcmask 9216
          %601 = vst.msk [vmem:[#allocation3] sm:$0x3] %vm600, %v597
        $region48: #{gaze_model_forward.5} parent=39 // pred_fallthru
          _
        // Predicated region
        $region49: #{gaze_model_forward.5} parent=39 // pred_check
          %p602 = pneg %p140
        $region50: #{gaze_model_forward.5} parent=39 // pred_check_branch
          %604 = sbr.rel (%p602) target = $region52
        $region51: #{gaze_model_forward.5} parent=39 // pred_region
          %s606 = ssub.s32 32, 32
          %607 = vsyncadd [#allocation4], %s606
          %s609 = sshll.u32 [#allocation3], 4
          %s610 = int_to_ptr.vmem [resolvable:$true] %s609
          %612 = dma.vmem_to_hbm [thread:$0]  %s610, 32, %s5, [#allocation4]
        $region52: #{gaze_model_forward.5} parent=39 // pred_fallthru
          _
        // Predicated region
        $region53: #{gaze_model_forward.5} parent=39 // pred_check
          %p613 = pneg %p140
        $region54: #{gaze_model_forward.5} parent=39 // pred_check_branch
          %615 = sbr.rel (%p613) target = $region56
        $region55: #{gaze_model_forward.5} parent=39 // pred_region
          %616 = dma.done [#allocation4], 32
        $region56: #{gaze_model_forward.5} parent=39 // pred_fallthru
          _
      $region40: #{gaze_model_forward.5} parent=5 // pred_fallthru
        _
      %p617 = scmp.le.s32.totalorder 2, %s12
      // Predicated region
      $region57: #{gaze_model_forward.5} parent=5 // pred_check
        %p618 = pneg %p617
      $region58: #{gaze_model_forward.5} parent=5 // pred_check_branch
        %620 = sbr.rel (%p618) target = $region60
      $region59: #{gaze_model_forward.5} parent=5 // pred_region
        %s621 = ssub.s32 %s12, 2
      $region60: #{gaze_model_forward.5} parent=5 // pred_fallthru
        _
    $region6: #{gaze_model_forward.5} parent=1 // loop_footer
      %s16 = sadd.s32 1, %s12
    $region7: #{gaze_model_forward.5} parent=1 // loop_footer_branch
      %11 = sbr.rel target = $region3
    $region8: #{gaze_model_forward.5} parent=1 // loop_exit
      _
    %622 = vsyncpa [#allocation4], 1
    %s623 = scalar_lea.sflag [#allocation4], 1
    %624 = vsyncpa %s623, 1

// kernel: gaze_model_forward.4
$region0: #{gaze_model_forward.4}
  #allocation0 [shape = 'u32[]', space=smem, size = 0x4, offset = 0x4, fixed_abs, tag = 'smem constant byte address 0x4 - core index']
  #allocation1 [shape = 'u32[144,128]{1,0:T(1,128)}', space=vmem, size = 0x12000, scoped, tag = 'internal scratch']
  %s0 = inlined_call_operand.vmem [shape: bf16[12,128], index: 0, kind: input, shape index: {}]
  %s1 = inlined_call_operand.vmem [shape: bf16[128,128], index: 1, kind: input, shape index: {}]
  %s2 = inlined_call_operand.vmem [shape: f32[1,128], index: 2, kind: input, shape index: {}]
  %s3 = inlined_call_operand.vmem [shape: bf16[128,384], index: 3, kind: input, shape index: {}]
  %s4 = inlined_call_operand.vmem [shape: f32[1,384], index: 4, kind: input, shape index: {}]
  %s5 = inlined_call_operand.vmem [shape: bf16[12,384], index: 5, kind: output, shape index: {}]
  %s6 = sld [smem:[#allocation0]]
  $region30: #{gaze_model_forward.4} parent=0
    _
  %s8 = ssub.s32 1, %s6
  %s9 = scalar_select 0, %s8, %s6
  // Predicated region
  $region2: #{gaze_model_forward.4} parent=0 // pred_check
    _
  $region3: #{gaze_model_forward.4} parent=0 // pred_check_branch
    %11 = sbr.rel (0) target = $region5
  $region4: #{gaze_model_forward.4} parent=0 // pred_region
    _
  $region5: #{gaze_model_forward.4} parent=0 // pred_fallthru
    _
  // Predicated region
  $region6: #{gaze_model_forward.4} parent=0 // pred_check
    _
  $region7: #{gaze_model_forward.4} parent=0 // pred_check_branch
    %13 = sbr.rel (0) target = $region9
  $region8: #{gaze_model_forward.4} parent=0 // pred_region
    _
  $region9: #{gaze_model_forward.4} parent=0 // pred_fallthru
    _
  // Predicated region
  $region10: #{gaze_model_forward.4} parent=0 // pred_check
    _
  $region11: #{gaze_model_forward.4} parent=0 // pred_check_branch
    %15 = sbr.rel (0) target = $region13
  $region12: #{gaze_model_forward.4} parent=0 // pred_region
    _
  $region13: #{gaze_model_forward.4} parent=0 // pred_fallthru
    _
  // Predicated region
  $region14: #{gaze_model_forward.4} parent=0 // pred_check
    _
  $region15: #{gaze_model_forward.4} parent=0 // pred_check_branch
    %17 = sbr.rel (0) target = $region17
  $region16: #{gaze_model_forward.4} parent=0 // pred_region
    _
  $region17: #{gaze_model_forward.4} parent=0 // pred_fallthru
    _
  // Predicated region
  $region18: #{gaze_model_forward.4} parent=0 // pred_check
    _
  $region19: #{gaze_model_forward.4} parent=0 // pred_check_branch
    %19 = sbr.rel (0) target = $region21
  $region20: #{gaze_model_forward.4} parent=0 // pred_region
    _
  $region21: #{gaze_model_forward.4} parent=0 // pred_fallthru
    _
  %v21 = vld [vmem:[%s0] sm:$0xf]
  %v22 = vld [vmem:[%s0 + $0x4] sm:$0x3]
  %v23 = vld [vmem:[%s1] sm:$0xf]
  %v24 = vld [vmem:[%s1 + $0x4] sm:$0xf]
  %v25 = vld [vmem:[%s1 + $0x8] sm:$0xf]
  %v26 = vld [vmem:[%s1 + $0xc] sm:$0xf]
  %v27 = vld [vmem:[%s1 + $0x10] sm:$0xf]
  %v28 = vld [vmem:[%s1 + $0x14] sm:$0xf]
  %v29 = vld [vmem:[%s1 + $0x18] sm:$0xf]
  %v30 = vld [vmem:[%s1 + $0x1c] sm:$0xf]
  %v31 = vld [vmem:[%s1 + $0x20] sm:$0xf]
  %v32 = vld [vmem:[%s1 + $0x24] sm:$0xf]
  %v33 = vld [vmem:[%s1 + $0x28] sm:$0xf]
  %v34 = vld [vmem:[%s1 + $0x2c] sm:$0xf]
  %v35 = vld [vmem:[%s1 + $0x30] sm:$0xf]
  %v36 = vld [vmem:[%s1 + $0x34] sm:$0xf]
  %v37 = vld [vmem:[%s1 + $0x38] sm:$0xf]
  %v38 = vld [vmem:[%s1 + $0x3c] sm:$0xf]
  %v39 = vld [vmem:[%s2] sm:$0x1]
  %v41 = vlaneseq
  %v42 = vshrl.u32 %v41, 7
  %v43 = vsub.s32 0, %v42
  %v44 = vrot.slane %v39, %v43
  %v48 = vunpack.c.l.b16 %v21
  %v49 = vunpack.c.l.b16 %v22
  %v50 = vpack.c.b16 %v49, %v48
  %v68 = vunpack.c.l.b16 %v23
  %v69 = vunpack.c.l.b16 %v24
  %v70 = vunpack.c.l.b16 %v25
  %v71 = vunpack.c.l.b16 %v26
  %v72 = vunpack.c.l.b16 %v27
  %v73 = vunpack.c.l.b16 %v28
  %v74 = vunpack.c.l.b16 %v29
  %v75 = vunpack.c.l.b16 %v30
  %v76 = vunpack.c.l.b16 %v31
  %v77 = vunpack.c.l.b16 %v32
  %v78 = vunpack.c.l.b16 %v33
  %v79 = vunpack.c.l.b16 %v34
  %v80 = vunpack.c.l.b16 %v35
  %v81 = vunpack.c.l.b16 %v36
  %v82 = vunpack.c.l.b16 %v37
  %v83 = vunpack.c.l.b16 %v38
  %v84 = vpack.c.b16 %v69, %v68
  %v85 = vpack.c.b16 %v71, %v70
  %v86 = vpack.c.b16 %v73, %v72
  %v87 = vpack.c.b16 %v75, %v74
  %v88 = vpack.c.b16 %v77, %v76
  %v89 = vpack.c.b16 %v79, %v78
  %v90 = vpack.c.b16 %v81, %v80
  %v91 = vpack.c.b16 %v83, %v82
  %100 = vmatprep.subr.bf16.mxu0 0
  %101 = vmatpush1.bf16.msra.mxu0 %v84
  %102 = vmatprep.subr.bf16.mxu0 0
  %103 = vmatpush1.bf16.msra.mxu0 %v85
  %104 = vmatprep.subr.bf16.mxu0 0
  %105 = vmatpush1.bf16.msra.mxu0 %v86
  %106 = vmatprep.subr.bf16.mxu0 0
  %107 = vmatpush1.bf16.msra.mxu0 %v87
  %108 = vmatprep.subr.bf16.mxu0 0
  %109 = vmatpush1.bf16.msra.mxu0 %v88
  %110 = vmatprep.subr.bf16.mxu0 0
  %111 = vmatpush1.bf16.msra.mxu0 %v89
  %112 = vmatprep.subr.bf16.mxu0 0
  %113 = vmatpush1.bf16.msra.mxu0 %v90
  %114 = vmatprep.subr.bf16.mxu0 0
  %115 = vmatpush1.bf16.msra.mxu0 %v91
  %116 = vmatprep.subr.bf16.mxu0 0
  %117 = vmatpush1.bf16.msra.mxu0 0
  %118 = vmatprep.subr.bf16.mxu0 0
  %119 = vmatpush1.bf16.msra.mxu0 0
  %120 = vmatprep.subr.bf16.mxu0 0
  %121 = vmatpush1.bf16.msra.mxu0 0
  %122 = vmatprep.subr.bf16.mxu0 0
  %123 = vmatpush1.bf16.msra.mxu0 0
  %124 = vmatprep.subr.bf16.mxu0 0
  %125 = vmatpush1.bf16.msra.mxu0 0
  %126 = vmatprep.subr.bf16.mxu0 0
  %127 = vmatpush1.bf16.msra.mxu0 0
  %128 = vmatprep.subr.bf16.mxu0 0
  %129 = vmatpush1.bf16.msra.mxu0 0
  %130 = vmatprep.subr.bf16.mxu0 0
  %131 = vmatpush1.bf16.msra.mxu0 0
  %132 = vmatprep.mubr.bf16.mxu0 0
  %133 = vmatmul.mubr.bf16.gmra.mrb[0].mxu0 %v50
  %v134 = vpop.f32.mrb[0].mxu0
  %v135 = vadd.f32 %v44, %v134
  %v136 = vpop.f32.mrb[0].mxu0
  %v137 = vpop.f32.mrb[0].mxu0
  %v138 = vadd.f32 %v44, %v137
  %v139 = vpop.f32.mrb[0].mxu0
  %140 = vdwg.mxu0
  %v141 = vmax.f32 %v135, 0.0
  %v142 = vmax.f32 %v138, 0.0
  %v143 = vpack.c.bf16 %v142, %v141
  %v144 = vld [vmem:[%s3] sm:$0xff]
  %v145 = vld [vmem:[%s3 + $0x8] sm:$0xf]
  %v146 = vld [vmem:[%s3 + $0xc] sm:$0xff]
  %v147 = vld [vmem:[%s3 + $0x14] sm:$0xf]
  %v148 = vld [vmem:[%s3 + $0x18] sm:$0xff]
  %v149 = vld [vmem:[%s3 + $0x20] sm:$0xf]
  %v150 = vld [vmem:[%s3 + $0x24] sm:$0xff]
  %v151 = vld [vmem:[%s3 + $0x2c] sm:$0xf]
  %v152 = vld [vmem:[%s3 + $0x30] sm:$0xff]
  %v153 = vld [vmem:[%s3 + $0x38] sm:$0xf]
  %v154 = vld [vmem:[%s3 + $0x3c] sm:$0xff]
  %v155 = vld [vmem:[%s3 + $0x44] sm:$0xf]
  %v156 = vld [vmem:[%s3 + $0x48] sm:$0xff]
  %v157 = vld [vmem:[%s3 + $0x50] sm:$0xf]
  %v158 = vld [vmem:[%s3 + $0x54] sm:$0xff]
  %v159 = vld [vmem:[%s3 + $0x5c] sm:$0xf]
  %v160 = vld [vmem:[%s3 + $0x60] sm:$0xff]
  %v161 = vld [vmem:[%s3 + $0x68] sm:$0xf]
  %v162 = vld [vmem:[%s3 + $0x6c] sm:$0xff]
  %v163 = vld [vmem:[%s3 + $0x74] sm:$0xf]
  %v164 = vld [vmem:[%s3 + $0x78] sm:$0xff]
  %v165 = vld [vmem:[%s3 + $0x80] sm:$0xf]
  %v166 = vld [vmem:[%s3 + $0x84] sm:$0xff]
  %v167 = vld [vmem:[%s3 + $0x8c] sm:$0xf]
  %v168 = vld [vmem:[%s3 + $0x90] sm:$0xff]
  %v169 = vld [vmem:[%s3 + $0x98] sm:$0xf]
  %v170 = vld [vmem:[%s3 + $0x9c] sm:$0xff]
  %v171 = vld [vmem:[%s3 + $0xa4] sm:$0xf]
  %v172 = vld [vmem:[%s3 + $0xa8] sm:$0xff]
  %v173 = vld [vmem:[%s3 + $0xb0] sm:$0xf]
  %v174 = vld [vmem:[%s3 + $0xb4] sm:$0xff]
  %v175 = vld [vmem:[%s3 + $0xbc] sm:$0xf]
  %v176 = vld [vmem:[%s4] sm:$0x7]
  %v178 = vlaneseq
  %v179 = vshrl.u32 %v178, 7
  %v180 = vsub.s32 0, %v179
  %v181 = vrot.slane %v176, %v180
  %v182 = vlaneseq
  %v183 = vshrl.u32 %v182, 7
  %v184 = vsub.s32 1, %v183
  %v185 = vrot.slane %v176, %v184
  %v186 = vlaneseq
  %v187 = vshrl.u32 %v186, 7
  %v188 = vsub.s32 2, %v187
  %v189 = vrot.slane %v176, %v188
  %v225 = vunpack.c.l.b16 %v144
  %v226 = vunpack.c.h.b16 %v144
  %v227 = vunpack.c.l.b16 %v145
  %v228 = vunpack.c.l.b16 %v146
  %v229 = vunpack.c.h.b16 %v146
  %v230 = vunpack.c.l.b16 %v147
  %v231 = vunpack.c.l.b16 %v148
  %v232 = vunpack.c.h.b16 %v148
  %v233 = vunpack.c.l.b16 %v149
  %v234 = vunpack.c.l.b16 %v150
  %v235 = vunpack.c.h.b16 %v150
  %v236 = vunpack.c.l.b16 %v151
  %v237 = vunpack.c.l.b16 %v152
  %v238 = vunpack.c.h.b16 %v152
  %v239 = vunpack.c.l.b16 %v153
  %v240 = vunpack.c.l.b16 %v154
  %v241 = vunpack.c.h.b16 %v154
  %v242 = vunpack.c.l.b16 %v155
  %v243 = vunpack.c.l.b16 %v156
  %v244 = vunpack.c.h.b16 %v156
  %v245 = vunpack.c.l.b16 %v157
  %v246 = vunpack.c.l.b16 %v158
  %v247 = vunpack.c.h.b16 %v158
  %v248 = vunpack.c.l.b16 %v159
  %v249 = vunpack.c.l.b16 %v160
  %v250 = vunpack.c.h.b16 %v160
  %v251 = vunpack.c.l.b16 %v161
  %v252 = vunpack.c.l.b16 %v162
  %v253 = vunpack.c.h.b16 %v162
  %v254 = vunpack.c.l.b16 %v163
  %v255 = vunpack.c.l.b16 %v164
  %v256 = vunpack.c.h.b16 %v164
  %v257 = vunpack.c.l.b16 %v165
  %v258 = vunpack.c.l.b16 %v166
  %v259 = vunpack.c.h.b16 %v166
  %v260 = vunpack.c.l.b16 %v167
  %v261 = vunpack.c.l.b16 %v168
  %v262 = vunpack.c.h.b16 %v168
  %v263 = vunpack.c.l.b16 %v169
  %v264 = vunpack.c.l.b16 %v170
  %v265 = vunpack.c.h.b16 %v170
  %v266 = vunpack.c.l.b16 %v171
  %v267 = vunpack.c.l.b16 %v172
  %v268 = vunpack.c.h.b16 %v172
  %v269 = vunpack.c.l.b16 %v173
  %v270 = vunpack.c.l.b16 %v174
  %v271 = vunpack.c.h.b16 %v174
  %v272 = vunpack.c.l.b16 %v175
  %v273 = vpack.c.b16 %v228, %v225
  %v274 = vpack.c.b16 %v229, %v226
  %v275 = vpack.c.b16 %v230, %v227
  %v276 = vpack.c.b16 %v234, %v231
  %v277 = vpack.c.b16 %v235, %v232
  %v278 = vpack.c.b16 %v236, %v233
  %v279 = vpack.c.b16 %v240, %v237
  %v280 = vpack.c.b16 %v241, %v238
  %v281 = vpack.c.b16 %v242, %v239
  %v282 = vpack.c.b16 %v246, %v243
  %v283 = vpack.c.b16 %v247, %v244
  %v284 = vpack.c.b16 %v248, %v245
  %v285 = vpack.c.b16 %v252, %v249
  %v286 = vpack.c.b16 %v253, %v250
  %v287 = vpack.c.b16 %v254, %v251
  %v288 = vpack.c.b16 %v258, %v255
  %v289 = vpack.c.b16 %v259, %v256
  %v290 = vpack.c.b16 %v260, %v257
  %v291 = vpack.c.b16 %v264, %v261
  %v292 = vpack.c.b16 %v265, %v262
  %v293 = vpack.c.b16 %v266, %v263
  %v294 = vpack.c.b16 %v270, %v267
  %v295 = vpack.c.b16 %v271, %v268
  %v296 = vpack.c.b16 %v272, %v269
  %321 = vmatprep.subr.bf16.mxu0 %v274
  %322 = vmatpush1.bf16.msra.mxu0 %v273
  %323 = vmatprep.subr.bf16.mxu0 %v277
  %324 = vmatpush1.bf16.msra.mxu0 %v276
  %325 = vmatprep.subr.bf16.mxu0 %v280
  %326 = vmatpush1.bf16.msra.mxu0 %v279
  %327 = vmatprep.subr.bf16.mxu0 %v283
  %328 = vmatpush1.bf16.msra.mxu0 %v282
  %329 = vmatprep.subr.bf16.mxu0 %v286
  %330 = vmatpush1.bf16.msra.mxu0 %v285
  %331 = vmatprep.subr.bf16.mxu0 %v289
  %332 = vmatpush1.bf16.msra.mxu0 %v288
  %333 = vmatprep.subr.bf16.mxu0 %v292
  %334 = vmatpush1.bf16.msra.mxu0 %v291
  %335 = vmatprep.subr.bf16.mxu0 %v295
  %336 = vmatpush1.bf16.msra.mxu0 %v294
  %337 = vmatprep.subr.bf16.mxu0 0
  %338 = vmatpush1.bf16.msra.mxu0 0
  %339 = vmatprep.subr.bf16.mxu0 0
  %340 = vmatpush1.bf16.msra.mxu0 0
  %341 = vmatprep.subr.bf16.mxu0 0
  %342 = vmatpush1.bf16.msra.mxu0 0
  %343 = vmatprep.subr.bf16.mxu0 0
  %344 = vmatpush1.bf16.msra.mxu0 0
  %345 = vmatprep.subr.bf16.mxu0 0
  %346 = vmatpush1.bf16.msra.mxu0 0
  %347 = vmatprep.subr.bf16.mxu0 0
  %348 = vmatpush1.bf16.msra.mxu0 0
  %349 = vmatprep.subr.bf16.mxu0 0
  %350 = vmatpush1.bf16.msra.mxu0 0
  %351 = vmatprep.subr.bf16.mxu0 0
  %352 = vmatpush1.bf16.msra.mxu0 0
  %353 = vmatprep.mubr.bf16.mxu0 0
  %354 = vmatmul.mubr.bf16.gmra.mrb[0].mxu0 %v143
  %v355 = vpop.f32.mrb[0].mxu0
  %v356 = vadd.f32 %v181, %v355
  %v357 = vpop.f32.mrb[0].mxu0
  %v358 = vadd.f32 %v185, %v357
  %v359 = vpop.f32.mrb[0].mxu0
  %v360 = vadd.f32 %v181, %v359
  %v361 = vpop.f32.mrb[0].mxu0
  %v362 = vadd.f32 %v185, %v361
  %363 = vdwg.mxu0
  %364 = vmatprep.subr.bf16.mxu0 0
  %365 = vmatpush1.bf16.msra.mxu0 %v275
  %366 = vmatprep.subr.bf16.mxu0 0
  %367 = vmatpush1.bf16.msra.mxu0 %v278
  %368 = vmatprep.subr.bf16.mxu0 0
  %369 = vmatpush1.bf16.msra.mxu0 %v281
  %370 = vmatprep.subr.bf16.mxu0 0
  %371 = vmatpush1.bf16.msra.mxu0 %v284
  %372 = vmatprep.subr.bf16.mxu0 0
  %373 = vmatpush1.bf16.msra.mxu0 %v287
  %374 = vmatprep.subr.bf16.mxu0 0
  %375 = vmatpush1.bf16.msra.mxu0 %v290
  %376 = vmatprep.subr.bf16.mxu0 0
  %377 = vmatpush1.bf16.msra.mxu0 %v293
  %378 = vmatprep.subr.bf16.mxu0 0
  %379 = vmatpush1.bf16.msra.mxu0 %v296
  %380 = vmatprep.subr.bf16.mxu0 0
  %381 = vmatpush1.bf16.msra.mxu0 0
  %382 = vmatprep.subr.bf16.mxu0 0
  %383 = vmatpush1.bf16.msra.mxu0 0
  %384 = vmatprep.subr.bf16.mxu0 0
  %385 = vmatpush1.bf16.msra.mxu0 0
  %386 = vmatprep.subr.bf16.mxu0 0
  %387 = vmatpush1.bf16.msra.mxu0 0
  %388 = vmatprep.subr.bf16.mxu0 0
  %389 = vmatpush1.bf16.msra.mxu0 0
  %390 = vmatprep.subr.bf16.mxu0 0
  %391 = vmatpush1.bf16.msra.mxu0 0
  %392 = vmatprep.subr.bf16.mxu0 0
  %393 = vmatpush1.bf16.msra.mxu0 0
  %394 = vmatprep.subr.bf16.mxu0 0
  %395 = vmatpush1.bf16.msra.mxu0 0
  %396 = vmatprep.mubr.bf16.mxu0 0
  %397 = vmatmul.mubr.bf16.gmra.mrb[0].mxu0 %v143
  %v398 = vpop.f32.mrb[0].mxu0
  %v399 = vadd.f32 %v189, %v398
  %v400 = vpop.f32.mrb[0].mxu0
  %v401 = vpop.f32.mrb[0].mxu0
  %v402 = vadd.f32 %v189, %v401
  %v403 = vpop.f32.mrb[0].mxu0
  %404 = vdwg.mxu0
  %v405 = vpack.c.bf16 %v360, %v356
  %v406 = vpack.c.bf16 %v362, %v358
  %v407 = vpack.c.bf16 %v402, %v399
  %v411 = vunpack.c.l.b16 %v405
  %v412 = vunpack.c.l.b16 %v406
  %v413 = vunpack.c.l.b16 %v407
  %v414 = vunpack.c.h.b16 %v405
  %v415 = vunpack.c.h.b16 %v406
  %v416 = vunpack.c.h.b16 %v407
  %v417 = vpack.c.b16 %v412, %v411
  %v418 = vpack.c.b16 %v413, %v413
  %v419 = vpack.c.b16 %v415, %v414
  %v420 = vpack.c.b16 %v416, %v416
  %425 = vst [vmem:[%s5] sm:$0xff] %v417
  %426 = vst [vmem:[%s5 + $0x8] sm:$0xf] %v418
  %427 = vst [vmem:[%s5 + $0xc] sm:$0x33] %v419
  %428 = vst [vmem:[%s5 + $0x14] sm:$0x3] %v420
  // Predicated region
  $region22: #{gaze_model_forward.4} parent=0 // pred_check
    _
  $region23: #{gaze_model_forward.4} parent=0 // pred_check_branch
    %430 = sbr.rel (0) target = $region25
  $region24: #{gaze_model_forward.4} parent=0 // pred_region
    _
  $region25: #{gaze_model_forward.4} parent=0 // pred_fallthru
    _
  // Predicated region
  $region26: #{gaze_model_forward.4} parent=0 // pred_check
    _
  $region27: #{gaze_model_forward.4} parent=0 // pred_check_branch
    %432 = sbr.rel (0) target = $region29
  $region28: #{gaze_model_forward.4} parent=0 // pred_region
    _
  $region29: #{gaze_model_forward.4} parent=0 // pred_fallthru
    _

// kernel: gaze_model_forward.3
$region0: #{gaze_model_forward.3}
  #allocation0 [shape = 'u32[]', space=smem, size = 0x4, offset = 0x4, fixed_abs, tag = 'smem constant byte address 0x4 - core index']
  #allocation1 [shape = 'u32[144,128]{1,0:T(1,128)}', space=vmem, size = 0x12000, scoped, tag = 'internal scratch']
  #allocation2 [shape = 'f32[8,128]{1,0:T(8,128)}', space=vmem, size = 0x1000, scoped, tag = 'scratch operand']
  %s0 = inlined_call_operand.vmem [shape: bf16[16,256,27], index: 0, kind: input, shape index: {}]
  %s1 = inlined_call_operand.vmem [shape: bf16[27,128], index: 1, kind: input, shape index: {}]
  %s2 = inlined_call_operand.vmem [shape: f32[1,128], index: 2, kind: input, shape index: {}]
  %s3 = inlined_call_operand.vmem [shape: f32[16,128], index: 3, kind: output, shape index: {}]
  %s4 = sld [smem:[#allocation0]]
  $region53: #{gaze_model_forward.3} parent=0
    _
  %s6 = ssub.s32 1, %s4
  %s7 = scalar_select 0, %s6, %s4
  loop: start=0, step=1, limit=4
  $region2: #{gaze_model_forward.3} parent=0 // loop_pre_header
    _
  $region3: #{gaze_model_forward.3} parent=0 // loop_header
    %s9 = sphi 0, %s13
    %p10 = scmp.ge.s32.totalorder %s9, 4
    %s16 = sphi 0, %s28
    %s17 = sphi 0, %s24
    %s18 = sphi 0, %s16
    %s19 = sphi 0, %s17
    %s20 = sphi 0, %s18
    %s21 = sphi 0, %s19
    %s33 = sphi 0, %s35
    %s36 = sphi 0, %s33
    %s37 = sphi 0, %s36
    %s53 = sphi 0, %s37
    %s57 = sphi 0, %s57
    %s59 = sphi 0, %s57
    %s60 = sphi 0, %s59
    %s74 = sphi 0, %s60
    %s78 = sphi 0, %s78
    %s80 = sphi 0, %s78
    %s81 = sphi 0, %s80
    %s95 = sphi 0, %s81
    %s101 = sphi 0, %s103
    %s104 = sphi 0, %s101
    %s105 = sphi 0, %s104
    %s121 = sphi 0, %s105
  $region4: #{gaze_model_forward.3} parent=0 // loop_header_branch
    %12 = sbr.rel (%p10) target = $region8
  $region5: #{gaze_model_forward.3} parent=0 // loop_body
    %s14 = ssub.s32 %s9, 1
    %s15 = ssub.s32 %s9, 2
    %s22 = sadd.s32 1, %s17
    %p23 = scmp.ge.s32.totalorder %s22, 1
    %s24 = scalar_select %p23, 0, %s22
    %s25 = sadd.s32 1, %s16
    %s26 = scalar_select %p23, %s25, %s16
    %p27 = scmp.ge.s32.totalorder %s26, 2
    %s28 = scalar_select %p27, 0, %s26
    %s29 = ssub.s32 %s16, %s28
    %s30 = ssub.s32 %s17, %s24
    %s31 = sor.u32 %s29, %s30
    %p32 = scmp.eq.s32.totalorder %s31, 0
    %s34 = sadd.s32 %s33, 1
    %s35 = scalar_select %p32, %s33, %s34
    %p38 = pneg %p32
    %p39 = scmp.eq.s32.totalorder %s9, 1
    %p40 = por %p38, %p39
    %p41 = scmp.ne.s32.totalorder %s33, %s36
    %p42 = scmp.eq.s32.totalorder %s9, 0
    %p43 = por %p41, %p42
    %p44 = scmp.ne.s32.totalorder %s33, %s36
    %p45 = scmp.eq.s32.totalorder %s14, 1
    %p46 = por %p44, %p45
    %p47 = scmp.ne.s32.totalorder %s36, %s37
    %p48 = scmp.eq.s32.totalorder %s14, 0
    %p49 = por %p47, %p48
    %p50 = scmp.ne.s32.totalorder %s36, %s37
    %p51 = scmp.eq.s32.totalorder %s15, 1
    %p52 = por %p50, %p51
    %p54 = scmp.ne.s32.totalorder %s37, %s53
    %p55 = scmp.eq.s32.totalorder %s15, 0
    %p56 = por %p54, %p55
    %s58 = sadd.s32 %s57, 1
    %p61 = scmp.eq.s32.totalorder %s9, 1
    %p62 = scmp.ne.s32.totalorder %s57, %s59
    %p63 = scmp.eq.s32.totalorder %s9, 0
    %p64 = por %p62, %p63
    %p65 = scmp.ne.s32.totalorder %s57, %s59
    %p66 = scmp.eq.s32.totalorder %s14, 1
    %p67 = por %p65, %p66
    %p68 = scmp.ne.s32.totalorder %s59, %s60
    %p69 = scmp.eq.s32.totalorder %s14, 0
    %p70 = por %p68, %p69
    %p71 = scmp.ne.s32.totalorder %s59, %s60
    %p72 = scmp.eq.s32.totalorder %s15, 1
    %p73 = por %p71, %p72
    %p75 = scmp.ne.s32.totalorder %s60, %s74
    %p76 = scmp.eq.s32.totalorder %s15, 0
    %p77 = por %p75, %p76
    %s79 = sadd.s32 %s78, 1
    %p82 = scmp.eq.s32.totalorder %s9, 1
    %p83 = scmp.ne.s32.totalorder %s78, %s80
    %p84 = scmp.eq.s32.totalorder %s9, 0
    %p85 = por %p83, %p84
    %p86 = scmp.ne.s32.totalorder %s78, %s80
    %p87 = scmp.eq.s32.totalorder %s14, 1
    %p88 = por %p86, %p87
    %p89 = scmp.ne.s32.totalorder %s80, %s81
    %p90 = scmp.eq.s32.totalorder %s14, 0
    %p91 = por %p89, %p90
    %p92 = scmp.ne.s32.totalorder %s80, %s81
    %p93 = scmp.eq.s32.totalorder %s15, 1
    %p94 = por %p92, %p93
    %p96 = scmp.ne.s32.totalorder %s81, %s95
    %p97 = scmp.eq.s32.totalorder %s15, 0
    %p98 = por %p96, %p97
    %s99 = ssub.s32 %s16, %s28
    %p100 = scmp.eq.s32.totalorder %s99, 0
    %s102 = sadd.s32 %s101, 1
    %s103 = scalar_select %p100, %s101, %s102
    %p106 = pneg %p100
    %p107 = scmp.eq.s32.totalorder %s9, 1
    %p108 = por %p106, %p107
    %p109 = scmp.ne.s32.totalorder %s101, %s104
    %p110 = scmp.eq.s32.totalorder %s9, 0
    %p111 = por %p109, %p110
    %p112 = scmp.ne.s32.totalorder %s101, %s104
    %p113 = scmp.eq.s32.totalorder %s14, 1
    %p114 = por %p112, %p113
    %p115 = scmp.ne.s32.totalorder %s104, %s105
    %p116 = scmp.eq.s32.totalorder %s14, 0
    %p117 = por %p115, %p116
    %p118 = scmp.ne.s32.totalorder %s104, %s105
    %p119 = scmp.eq.s32.totalorder %s15, 1
    %p120 = por %p118, %p119
    %p122 = scmp.ne.s32.totalorder %s105, %s121
    %p123 = scmp.eq.s32.totalorder %s15, 0
    %p124 = por %p122, %p123
    %p125 = scmp.le.s32.totalorder 1, %s9
    %p126 = scmp.lt.s32.totalorder %s9, 3
    %p127 = pnand %p125, %p126
    %p128 = pneg %p127
    // Predicated region
    $region9: #{gaze_model_forward.3} parent=5 // pred_check
      _
    $region10: #{gaze_model_forward.3} parent=5 // pred_check_branch
      %130 = sbr.rel (%p127) target = $region12
    $region11: #{gaze_model_forward.3} parent=5 // pred_region
      %s131 = ssub.s32 %s9, 1
      // Predicated region
      $region13: #{gaze_model_forward.3} parent=11 // pred_check
        %p132 = pneg %p70
      $region14: #{gaze_model_forward.3} parent=11 // pred_check_branch
        %134 = sbr.rel (%p132) target = $region16
      $region15: #{gaze_model_forward.3} parent=11 // pred_region
        _
      $region16: #{gaze_model_forward.3} parent=11 // pred_fallthru
        _
      // Predicated region
      $region17: #{gaze_model_forward.3} parent=11 // pred_check
        %p135 = pneg %p91
      $region18: #{gaze_model_forward.3} parent=11 // pred_check_branch
        %137 = sbr.rel (%p135) target = $region20
      $region19: #{gaze_model_forward.3} parent=11 // pred_region
        _
      $region20: #{gaze_model_forward.3} parent=11 // pred_fallthru
        _
    $region12: #{gaze_model_forward.3} parent=5 // pred_fallthru
      _
    %p138 = scmp.lt.s32.totalorder %s9, 2
    // Predicated region
    $region21: #{gaze_model_forward.3} parent=5 // pred_check
      %p139 = pneg %p138
    $region22: #{gaze_model_forward.3} parent=5 // pred_check_branch
      %141 = sbr.rel (%p139) target = $region24
    $region23: #{gaze_model_forward.3} parent=5 // pred_region
      // Predicated region
      $region25: #{gaze_model_forward.3} parent=23 // pred_check
        %p142 = pneg %p43
      $region26: #{gaze_model_forward.3} parent=23 // pred_check_branch
        %144 = sbr.rel (%p142) target = $region28
      $region27: #{gaze_model_forward.3} parent=23 // pred_region
        %s145 = smul.u32 8, %s16
        %s146 = smul.u32 32, %s17
        %p147 = scmp.lt.s32.totalorder %s145, 15
        %s148 = scalar_select %p147, %s145, 15
        %p149 = scmp.lt.s32.totalorder %s146, 31
        %s150 = scalar_select %p149, %s146, 31
        %s151 = smul.addr %s148, 32
        %s152 = sadd.s32 %s150, %s151
        %s153 = smul.addr %s152, 4
        %s154 = scalar_lea.vmem %s0, %s153
        %s155 = smul.u32 8, %s16
        %s156 = smul.u32 32, %s17
      $region28: #{gaze_model_forward.3} parent=23 // pred_fallthru
        _
    $region24: #{gaze_model_forward.3} parent=5 // pred_fallthru
      _
    %p157 = scmp.le.s32.totalorder 1, %s9
    %p158 = scmp.lt.s32.totalorder %s9, 3
    %p159 = pnand %p157, %p158
    %p160 = pneg %p159
    // Predicated region
    $region29: #{gaze_model_forward.3} parent=5 // pred_check
      _
    $region30: #{gaze_model_forward.3} parent=5 // pred_check_branch
      %162 = sbr.rel (%p159) target = $region32
    $region31: #{gaze_model_forward.3} parent=5 // pred_region
      %s163 = ssub.s32 %s9, 1
      %s164 = smul.u32 8, %s18
      %s165 = smul.u32 32, %s19
      %p166 = scmp.lt.s32.totalorder %s164, 15
      %s167 = scalar_select %p166, %s164, 15
      %p168 = scmp.lt.s32.totalorder %s165, 31
      %s169 = scalar_select %p168, %s165, 31
      %s170 = smul.addr %s167, 32
      %s171 = sadd.s32 %s169, %s170
      %s172 = smul.addr %s171, 4
      %s173 = scalar_lea.vmem %s0, %s172
      %p174 = pneg %p49
      %p175 = pneg %p46
      %p176 = pneg %p70
      %p177 = pneg %p67
      %p178 = pneg %p91
      %p179 = pneg %p88
      %p180 = pneg %p117
      %p181 = pneg %p114
      %p182 = scmp.lt.s32.totalorder %s18, 1
      %s183 = scalar_select %p182, %s18, 1
      %s184 = smul.addr %s183, 8
      %s185 = scalar_lea.vmem %s3, %s184
      %s186 = smul.u32 8, %s18
      %s187 = smul.u32 32, %s19
      %p188 = scmp.lt.s32.totalorder %s186, 15
      %s189 = scalar_select %p188, %s186, 15
      %p190 = scmp.lt.s32.totalorder %s187, 31
      %s191 = scalar_select %p190, %s187, 31
      %s192 = smul.addr %s189, 32
      %s193 = sadd.s32 %s191, %s192
      %s194 = smul.addr %s193, 4
      %s195 = scalar_lea.vmem %s0, %s194
      %s196 = smul.u32 8, %s18
      %s197 = smul.u32 32, %s19
      %p198 = scmp.lt.s32.totalorder %s18, 1
      %s199 = scalar_select %p198, %s18, 1
      %s200 = smul.addr %s199, 8
      %s201 = scalar_lea.vmem %s3, %s200
      %p203 = scmp.eq.s32.totalorder %s19, 0
      // Predicated region
      $region33: #{gaze_model_forward.3} parent=31 // pred_check
        %p204 = pneg %p203
      $region34: #{gaze_model_forward.3} parent=31 // pred_check_branch
        %206 = sbr.rel (%p204) target = $region36
      $region35: #{gaze_model_forward.3} parent=31 // pred_region
        %207 = vst [vmem:[#allocation2] sm:$0xff] 0.0
      $region36: #{gaze_model_forward.3} parent=31 // pred_fallthru
        _
      %v208 = vld [vmem:[%s195] sm:$0xf]
      %v209 = vld [vmem:[%s195 + $0x4] sm:$0xf]
      %v210 = vld [vmem:[%s195 + $0x8] sm:$0xf]
      %v211 = vld [vmem:[%s195 + $0xc] sm:$0xf]
      %v212 = vld [vmem:[%s195 + $0x10] sm:$0xf]
      %v213 = vld [vmem:[%s195 + $0x14] sm:$0xf]
      %v214 = vld [vmem:[%s195 + $0x18] sm:$0xf]
      %v215 = vld [vmem:[%s195 + $0x1c] sm:$0xf]
      %v216 = vld [vmem:[%s195 + $0x20] sm:$0xf]
      %v217 = vld [vmem:[%s195 + $0x24] sm:$0xf]
      %v218 = vld [vmem:[%s195 + $0x28] sm:$0xf]
      %v219 = vld [vmem:[%s195 + $0x2c] sm:$0xf]
      %v220 = vld [vmem:[%s195 + $0x30] sm:$0xf]
      %v221 = vld [vmem:[%s195 + $0x34] sm:$0xf]
      %v222 = vld [vmem:[%s195 + $0x38] sm:$0xf]
      %v223 = vld [vmem:[%s195 + $0x3c] sm:$0xf]
      %v224 = vld [vmem:[%s195 + $0x40] sm:$0xf]
      %v225 = vld [vmem:[%s195 + $0x44] sm:$0xf]
      %v226 = vld [vmem:[%s195 + $0x48] sm:$0xf]
      %v227 = vld [vmem:[%s195 + $0x4c] sm:$0xf]
      %v228 = vld [vmem:[%s195 + $0x50] sm:$0xf]
      %v229 = vld [vmem:[%s195 + $0x54] sm:$0xf]
      %v230 = vld [vmem:[%s195 + $0x58] sm:$0xf]
      %v231 = vld [vmem:[%s195 + $0x5c] sm:$0xf]
      %v232 = vld [vmem:[%s195 + $0x60] sm:$0xf]
      %v233 = vld [vmem:[%s195 + $0x64] sm:$0xf]
      %v234 = vld [vmem:[%s195 + $0x68] sm:$0xf]
      %v235 = vld [vmem:[%s195 + $0x6c] sm:$0xf]
      %v236 = vld [vmem:[%s195 + $0x70] sm:$0xf]
      %v237 = vld [vmem:[%s195 + $0x74] sm:$0xf]
      %v238 = vld [vmem:[%s195 + $0x78] sm:$0xf]
      %v239 = vld [vmem:[%s195 + $0x7c] sm:$0xf]
      %v240 = vld [vmem:[%s195 + $0x80] sm:$0xf]
      %v241 = vld [vmem:[%s195 + $0x84] sm:$0xf]
      %v242 = vld [vmem:[%s195 + $0x88] sm:$0xf]
      %v243 = vld [vmem:[%s195 + $0x8c] sm:$0xf]
      %v244 = vld [vmem:[%s195 + $0x90] sm:$0xf]
      %v245 = vld [vmem:[%s195 + $0x94] sm:$0xf]
      %v246 = vld [vmem:[%s195 + $0x98] sm:$0xf]
      %v247 = vld [vmem:[%s195 + $0x9c] sm:$0xf]
      %v248 = vld [vmem:[%s195 + $0xa0] sm:$0xf]
      %v249 = vld [vmem:[%s195 + $0xa4] sm:$0xf]
      %v250 = vld [vmem:[%s195 + $0xa8] sm:$0xf]
      %v251 = vld [vmem:[%s195 + $0xac] sm:$0xf]
      %v252 = vld [vmem:[%s195 + $0xb0] sm:$0xf]
      %v253 = vld [vmem:[%s195 + $0xb4] sm:$0xf]
      %v254 = vld [vmem:[%s195 + $0xb8] sm:$0xf]
      %v255 = vld [vmem:[%s195 + $0xbc] sm:$0xf]
      %v256 = vld [vmem:[%s195 + $0xc0] sm:$0xf]
      %v257 = vld [vmem:[%s195 + $0xc4] sm:$0xf]
      %v258 = vld [vmem:[%s195 + $0xc8] sm:$0xf]
      %v259 = vld [vmem:[%s195 + $0xcc] sm:$0xf]
      %v260 = vld [vmem:[%s195 + $0xd0] sm:$0xf]
      %v261 = vld [vmem:[%s195 + $0xd4] sm:$0xf]
      %v262 = vld [vmem:[%s195 + $0xd8] sm:$0xf]
      %v263 = vld [vmem:[%s195 + $0xdc] sm:$0xf]
      %v264 = vld [vmem:[%s195 + $0xe0] sm:$0xf]
      %v265 = vld [vmem:[%s195 + $0xe4] sm:$0xf]
      %v266 = vld [vmem:[%s195 + $0xe8] sm:$0xf]
      %v267 = vld [vmem:[%s195 + $0xec] sm:$0xf]
      %v268 = vld [vmem:[%s195 + $0xf0] sm:$0xf]
      %v269 = vld [vmem:[%s195 + $0xf4] sm:$0xf]
      %v270 = vld [vmem:[%s195 + $0xf8] sm:$0xf]
      %v271 = vld [vmem:[%s195 + $0xfc] sm:$0xf]
      %v272 = vld [vmem:[%s195 + $0x100] sm:$0xf]
      %v273 = vld [vmem:[%s195 + $0x104] sm:$0xf]
      %v274 = vld [vmem:[%s195 + $0x108] sm:$0xf]
      %v275 = vld [vmem:[%s195 + $0x10c] sm:$0xf]
      %v276 = vld [vmem:[%s195 + $0x110] sm:$0xf]
      %v277 = vld [vmem:[%s195 + $0x114] sm:$0xf]
      %v278 = vld [vmem:[%s195 + $0x118] sm:$0xf]
      %v279 = vld [vmem:[%s195 + $0x11c] sm:$0xf]
      %v280 = vld [vmem:[%s195 + $0x120] sm:$0xf]
      %v281 = vld [vmem:[%s195 + $0x124] sm:$0xf]
      %v282 = vld [vmem:[%s195 + $0x128] sm:$0xf]
      %v283 = vld [vmem:[%s195 + $0x12c] sm:$0xf]
      %v284 = vld [vmem:[%s195 + $0x130] sm:$0xf]
      %v285 = vld [vmem:[%s195 + $0x134] sm:$0xf]
      %v286 = vld [vmem:[%s195 + $0x138] sm:$0xf]
      %v287 = vld [vmem:[%s195 + $0x13c] sm:$0xf]
      %v288 = vld [vmem:[%s195 + $0x140] sm:$0xf]
      %v289 = vld [vmem:[%s195 + $0x144] sm:$0xf]
      %v290 = vld [vmem:[%s195 + $0x148] sm:$0xf]
      %v291 = vld [vmem:[%s195 + $0x14c] sm:$0xf]
      %v292 = vld [vmem:[%s195 + $0x150] sm:$0xf]
      %v293 = vld [vmem:[%s195 + $0x154] sm:$0xf]
      %v294 = vld [vmem:[%s195 + $0x158] sm:$0xf]
      %v295 = vld [vmem:[%s195 + $0x15c] sm:$0xf]
      %v296 = vld [vmem:[%s195 + $0x160] sm:$0xf]
      %v297 = vld [vmem:[%s195 + $0x164] sm:$0xf]
      %v298 = vld [vmem:[%s195 + $0x168] sm:$0xf]
      %v299 = vld [vmem:[%s195 + $0x16c] sm:$0xf]
      %v300 = vld [vmem:[%s195 + $0x170] sm:$0xf]
      %v301 = vld [vmem:[%s195 + $0x174] sm:$0xf]
      %v302 = vld [vmem:[%s195 + $0x178] sm:$0xf]
      %v303 = vld [vmem:[%s195 + $0x17c] sm:$0xf]
      %v304 = vld [vmem:[%s195 + $0x180] sm:$0xf]
      %v305 = vld [vmem:[%s195 + $0x184] sm:$0xf]
      %v306 = vld [vmem:[%s195 + $0x188] sm:$0xf]
      %v307 = vld [vmem:[%s195 + $0x18c] sm:$0xf]
      %v308 = vld [vmem:[%s195 + $0x190] sm:$0xf]
      %v309 = vld [vmem:[%s195 + $0x194] sm:$0xf]
      %v310 = vld [vmem:[%s195 + $0x198] sm:$0xf]
      %v311 = vld [vmem:[%s195 + $0x19c] sm:$0xf]
      %v312 = vld [vmem:[%s195 + $0x1a0] sm:$0xf]
      %v313 = vld [vmem:[%s195 + $0x1a4] sm:$0xf]
      %v314 = vld [vmem:[%s195 + $0x1a8] sm:$0xf]
      %v315 = vld [vmem:[%s195 + $0x1ac] sm:$0xf]
      %v316 = vld [vmem:[%s195 + $0x1b0] sm:$0xf]
      %v317 = vld [vmem:[%s195 + $0x1b4] sm:$0xf]
      %v318 = vld [vmem:[%s195 + $0x1b8] sm:$0xf]
      %v319 = vld [vmem:[%s195 + $0x1bc] sm:$0xf]
      %v320 = vld [vmem:[%s195 + $0x1c0] sm:$0xf]
      %v321 = vld [vmem:[%s195 + $0x1c4] sm:$0xf]
      %v322 = vld [vmem:[%s195 + $0x1c8] sm:$0xf]
      %v323 = vld [vmem:[%s195 + $0x1cc] sm:$0xf]
      %v324 = vld [vmem:[%s195 + $0x1d0] sm:$0xf]
      %v325 = vld [vmem:[%s195 + $0x1d4] sm:$0xf]
      %v326 = vld [vmem:[%s195 + $0x1d8] sm:$0xf]
      %v327 = vld [vmem:[%s195 + $0x1dc] sm:$0xf]
      %v328 = vld [vmem:[%s195 + $0x1e0] sm:$0xf]
      %v329 = vld [vmem:[%s195 + $0x1e4] sm:$0xf]
      %v330 = vld [vmem:[%s195 + $0x1e8] sm:$0xf]
      %v331 = vld [vmem:[%s195 + $0x1ec] sm:$0xf]
      %v332 = vld [vmem:[%s195 + $0x1f0] sm:$0xf]
      %v333 = vld [vmem:[%s195 + $0x1f4] sm:$0xf]
      %v334 = vld [vmem:[%s195 + $0x1f8] sm:$0xf]
      %v335 = vld [vmem:[%s195 + $0x1fc] sm:$0xf]
      %v336 = vld [vmem:[%s195 + $0x200] sm:$0xf]
      %v337 = vld [vmem:[%s195 + $0x204] sm:$0xf]
      %v338 = vld [vmem:[%s195 + $0x208] sm:$0xf]
      %v339 = vld [vmem:[%s195 + $0x20c] sm:$0xf]
      %v340 = vld [vmem:[%s195 + $0x210] sm:$0xf]
      %v341 = vld [vmem:[%s195 + $0x214] sm:$0xf]
      %v342 = vld [vmem:[%s195 + $0x218] sm:$0xf]
      %v343 = vld [vmem:[%s195 + $0x21c] sm:$0xf]
      %v344 = vld [vmem:[%s195 + $0x220] sm:$0xf]
      %v345 = vld [vmem:[%s195 + $0x224] sm:$0xf]
      %v346 = vld [vmem:[%s195 + $0x228] sm:$0xf]
      %v347 = vld [vmem:[%s195 + $0x22c] sm:$0xf]
      %v348 = vld [vmem:[%s195 + $0x230] sm:$0xf]
      %v349 = vld [vmem:[%s195 + $0x234] sm:$0xf]
      %v350 = vld [vmem:[%s195 + $0x238] sm:$0xf]
      %v351 = vld [vmem:[%s195 + $0x23c] sm:$0xf]
      %v352 = vld [vmem:[%s195 + $0x240] sm:$0xf]
      %v353 = vld [vmem:[%s195 + $0x244] sm:$0xf]
      %v354 = vld [vmem:[%s195 + $0x248] sm:$0xf]
      %v355 = vld [vmem:[%s195 + $0x24c] sm:$0xf]
      %v356 = vld [vmem:[%s195 + $0x250] sm:$0xf]
      %v357 = vld [vmem:[%s195 + $0x254] sm:$0xf]
      %v358 = vld [vmem:[%s195 + $0x258] sm:$0xf]
      %v359 = vld [vmem:[%s195 + $0x25c] sm:$0xf]
      %v360 = vld [vmem:[%s195 + $0x260] sm:$0xf]
      %v361 = vld [vmem:[%s195 + $0x264] sm:$0xf]
      %v362 = vld [vmem:[%s195 + $0x268] sm:$0xf]
      %v363 = vld [vmem:[%s195 + $0x26c] sm:$0xf]
      %v364 = vld [vmem:[%s195 + $0x270] sm:$0xf]
      %v365 = vld [vmem:[%s195 + $0x274] sm:$0xf]
      %v366 = vld [vmem:[%s195 + $0x278] sm:$0xf]
      %v367 = vld [vmem:[%s195 + $0x27c] sm:$0xf]
      %v368 = vld [vmem:[%s195 + $0x280] sm:$0xf]
      %v369 = vld [vmem:[%s195 + $0x284] sm:$0xf]
      %v370 = vld [vmem:[%s195 + $0x288] sm:$0xf]
      %v371 = vld [vmem:[%s195 + $0x28c] sm:$0xf]
      %v372 = vld [vmem:[%s195 + $0x290] sm:$0xf]
      %v373 = vld [vmem:[%s195 + $0x294] sm:$0xf]
      %v374 = vld [vmem:[%s195 + $0x298] sm:$0xf]
      %v375 = vld [vmem:[%s195 + $0x29c] sm:$0xf]
      %v376 = vld [vmem:[%s195 + $0x2a0] sm:$0xf]
      %v377 = vld [vmem:[%s195 + $0x2a4] sm:$0xf]
      %v378 = vld [vmem:[%s195 + $0x2a8] sm:$0xf]
      %v379 = vld [vmem:[%s195 + $0x2ac] sm:$0xf]
      %v380 = vld [vmem:[%s195 + $0x2b0] sm:$0xf]
      %v381 = vld [vmem:[%s195 + $0x2b4] sm:$0xf]
      %v382 = vld [vmem:[%s195 + $0x2b8] sm:$0xf]
      %v383 = vld [vmem:[%s195 + $0x2bc] sm:$0xf]
      %v384 = vld [vmem:[%s195 + $0x2c0] sm:$0xf]
      %v385 = vld [vmem:[%s195 + $0x2c4] sm:$0xf]
      %v386 = vld [vmem:[%s195 + $0x2c8] sm:$0xf]
      %v387 = vld [vmem:[%s195 + $0x2cc] sm:$0xf]
      %v388 = vld [vmem:[%s195 + $0x2d0] sm:$0xf]
      %v389 = vld [vmem:[%s195 + $0x2d4] sm:$0xf]
      %v390 = vld [vmem:[%s195 + $0x2d8] sm:$0xf]
      %v391 = vld [vmem:[%s195 + $0x2dc] sm:$0xf]
      %v392 = vld [vmem:[%s195 + $0x2e0] sm:$0xf]
      %v393 = vld [vmem:[%s195 + $0x2e4] sm:$0xf]
      %v394 = vld [vmem:[%s195 + $0x2e8] sm:$0xf]
      %v395 = vld [vmem:[%s195 + $0x2ec] sm:$0xf]
      %v396 = vld [vmem:[%s195 + $0x2f0] sm:$0xf]
      %v397 = vld [vmem:[%s195 + $0x2f4] sm:$0xf]
      %v398 = vld [vmem:[%s195 + $0x2f8] sm:$0xf]
      %v399 = vld [vmem:[%s195 + $0x2fc] sm:$0xf]
      %v400 = vld [vmem:[%s195 + $0x300] sm:$0xf]
      %v401 = vld [vmem:[%s195 + $0x304] sm:$0xf]
      %v402 = vld [vmem:[%s195 + $0x308] sm:$0xf]
      %v403 = vld [vmem:[%s195 + $0x30c] sm:$0xf]
      %v404 = vld [vmem:[%s195 + $0x310] sm:$0xf]
      %v405 = vld [vmem:[%s195 + $0x314] sm:$0xf]
      %v406 = vld [vmem:[%s195 + $0x318] sm:$0xf]
      %v407 = vld [vmem:[%s195 + $0x31c] sm:$0xf]
      %v408 = vld [vmem:[%s195 + $0x320] sm:$0xf]
      %v409 = vld [vmem:[%s195 + $0x324] sm:$0xf]
      %v410 = vld [vmem:[%s195 + $0x328] sm:$0xf]
      %v411 = vld [vmem:[%s195 + $0x32c] sm:$0xf]
      %v412 = vld [vmem:[%s195 + $0x330] sm:$0xf]
      %v413 = vld [vmem:[%s195 + $0x334] sm:$0xf]
      %v414 = vld [vmem:[%s195 + $0x338] sm:$0xf]
      %v415 = vld [vmem:[%s195 + $0x33c] sm:$0xf]
      %v416 = vld [vmem:[%s195 + $0x340] sm:$0xf]
      %v417 = vld [vmem:[%s195 + $0x344] sm:$0xf]
      %v418 = vld [vmem:[%s195 + $0x348] sm:$0xf]
      %v419 = vld [vmem:[%s195 + $0x34c] sm:$0xf]
      %v420 = vld [vmem:[%s195 + $0x350] sm:$0xf]
      %v421 = vld [vmem:[%s195 + $0x354] sm:$0xf]
      %v422 = vld [vmem:[%s195 + $0x358] sm:$0xf]
      %v423 = vld [vmem:[%s195 + $0x35c] sm:$0xf]
      %v424 = vld [vmem:[%s195 + $0x360] sm:$0xf]
      %v425 = vld [vmem:[%s195 + $0x364] sm:$0xf]
      %v426 = vld [vmem:[%s195 + $0x368] sm:$0xf]
      %v427 = vld [vmem:[%s195 + $0x36c] sm:$0xf]
      %v428 = vld [vmem:[%s195 + $0x370] sm:$0xf]
      %v429 = vld [vmem:[%s195 + $0x374] sm:$0xf]
      %v430 = vld [vmem:[%s195 + $0x378] sm:$0xf]
      %v431 = vld [vmem:[%s195 + $0x37c] sm:$0xf]
      %v432 = vld [vmem:[%s195 + $0x380] sm:$0xf]
      %v433 = vld [vmem:[%s195 + $0x384] sm:$0xf]
      %v434 = vld [vmem:[%s195 + $0x388] sm:$0xf]
      %v435 = vld [vmem:[%s195 + $0x38c] sm:$0xf]
      %v436 = vld [vmem:[%s195 + $0x390] sm:$0xf]
      %v437 = vld [vmem:[%s195 + $0x394] sm:$0xf]
      %v438 = vld [vmem:[%s195 + $0x398] sm:$0xf]
      %v439 = vld [vmem:[%s195 + $0x39c] sm:$0xf]
      %v440 = vld [vmem:[%s195 + $0x3a0] sm:$0xf]
      %v441 = vld [vmem:[%s195 + $0x3a4] sm:$0xf]
      %v442 = vld [vmem:[%s195 + $0x3a8] sm:$0xf]
      %v443 = vld [vmem:[%s195 + $0x3ac] sm:$0xf]
      %v444 = vld [vmem:[%s195 + $0x3b0] sm:$0xf]
      %v445 = vld [vmem:[%s195 + $0x3b4] sm:$0xf]
      %v446 = vld [vmem:[%s195 + $0x3b8] sm:$0xf]
      %v447 = vld [vmem:[%s195 + $0x3bc] sm:$0xf]
      %v448 = vld [vmem:[%s195 + $0x3c0] sm:$0xf]
      %v449 = vld [vmem:[%s195 + $0x3c4] sm:$0xf]
      %v450 = vld [vmem:[%s195 + $0x3c8] sm:$0xf]
      %v451 = vld [vmem:[%s195 + $0x3cc] sm:$0xf]
      %v452 = vld [vmem:[%s195 + $0x3d0] sm:$0xf]
      %v453 = vld [vmem:[%s195 + $0x3d4] sm:$0xf]
      %v454 = vld [vmem:[%s195 + $0x3d8] sm:$0xf]
      %v455 = vld [vmem:[%s195 + $0x3dc] sm:$0xf]
      %v456 = vld [vmem:[%s195 + $0x3e0] sm:$0xf]
      %v457 = vld [vmem:[%s195 + $0x3e4] sm:$0xf]
      %v458 = vld [vmem:[%s195 + $0x3e8] sm:$0xf]
      %v459 = vld [vmem:[%s195 + $0x3ec] sm:$0xf]
      %v460 = vld [vmem:[%s195 + $0x3f0] sm:$0xf]
      %v461 = vld [vmem:[%s195 + $0x3f4] sm:$0xf]
      %v462 = vld [vmem:[%s195 + $0x3f8] sm:$0xf]
      %v463 = vld [vmem:[%s195 + $0x3fc] sm:$0xf]
      %v464 = vld [vmem:[%s1] sm:$0xf]
      %v465 = vld [vmem:[%s1 + $0x4] sm:$0xf]
      %v466 = vld [vmem:[%s1 + $0x8] sm:$0xf]
      %v467 = vld [vmem:[%s1 + $0xc] sm:$0x3]
      %v468 = vld [vmem:[%s2] sm:$0x1]
      %v470 = vlaneseq
      %v471 = vshrl.u32 %v470, 7
      %v472 = vsub.s32 0, %v471
      %v473 = vrot.slane %v468, %v472
      %v731 = vunpack.c.l.b16 %v208
      %v732 = vunpack.c.l.b16 %v209
      %v733 = vunpack.c.l.b16 %v210
      %v734 = vunpack.c.l.b16 %v211
      %v735 = vunpack.c.l.b16 %v212
      %v736 = vunpack.c.l.b16 %v213
      %v737 = vunpack.c.l.b16 %v214
      %v738 = vunpack.c.l.b16 %v215
      %v739 = vunpack.c.l.b16 %v216
      %v740 = vunpack.c.l.b16 %v217
      %v741 = vunpack.c.l.b16 %v218
      %v742 = vunpack.c.l.b16 %v219
      %v743 = vunpack.c.l.b16 %v220
      %v744 = vunpack.c.l.b16 %v221
      %v745 = vunpack.c.l.b16 %v222
      %v746 = vunpack.c.l.b16 %v223
      %v747 = vunpack.c.l.b16 %v224
      %v748 = vunpack.c.l.b16 %v225
      %v749 = vunpack.c.l.b16 %v226
      %v750 = vunpack.c.l.b16 %v227
      %v751 = vunpack.c.l.b16 %v228
      %v752 = vunpack.c.l.b16 %v229
      %v753 = vunpack.c.l.b16 %v230
      %v754 = vunpack.c.l.b16 %v231
      %v755 = vunpack.c.l.b16 %v232
      %v756 = vunpack.c.l.b16 %v233
      %v757 = vunpack.c.l.b16 %v234
      %v758 = vunpack.c.l.b16 %v235
      %v759 = vunpack.c.l.b16 %v236
      %v760 = vunpack.c.l.b16 %v237
      %v761 = vunpack.c.l.b16 %v238
      %v762 = vunpack.c.l.b16 %v239
      %v763 = vunpack.c.l.b16 %v240
      %v764 = vunpack.c.l.b16 %v241
      %v765 = vunpack.c.l.b16 %v242
      %v766 = vunpack.c.l.b16 %v243
      %v767 = vunpack.c.l.b16 %v244
      %v768 = vunpack.c.l.b16 %v245
      %v769 = vunpack.c.l.b16 %v246
      %v770 = vunpack.c.l.b16 %v247
      %v771 = vunpack.c.l.b16 %v248
      %v772 = vunpack.c.l.b16 %v249
      %v773 = vunpack.c.l.b16 %v250
      %v774 = vunpack.c.l.b16 %v251
      %v775 = vunpack.c.l.b16 %v252
      %v776 = vunpack.c.l.b16 %v253
      %v777 = vunpack.c.l.b16 %v254
      %v778 = vunpack.c.l.b16 %v255
      %v779 = vunpack.c.l.b16 %v256
      %v780 = vunpack.c.l.b16 %v257
      %v781 = vunpack.c.l.b16 %v258
      %v782 = vunpack.c.l.b16 %v259
      %v783 = vunpack.c.l.b16 %v260
      %v784 = vunpack.c.l.b16 %v261
      %v785 = vunpack.c.l.b16 %v262
      %v786 = vunpack.c.l.b16 %v263
      %v787 = vunpack.c.l.b16 %v264
      %v788 = vunpack.c.l.b16 %v265
      %v789 = vunpack.c.l.b16 %v266
      %v790 = vunpack.c.l.b16 %v267
      %v791 = vunpack.c.l.b16 %v268
      %v792 = vunpack.c.l.b16 %v269
      %v793 = vunpack.c.l.b16 %v270
      %v794 = vunpack.c.l.b16 %v271
      %v795 = vunpack.c.l.b16 %v272
      %v796 = vunpack.c.l.b16 %v273
      %v797 = vunpack.c.l.b16 %v274
      %v798 = vunpack.c.l.b16 %v275
      %v799 = vunpack.c.l.b16 %v276
      %v800 = vunpack.c.l.b16 %v277
      %v801 = vunpack.c.l.b16 %v278
      %v802 = vunpack.c.l.b16 %v279
      %v803 = vunpack.c.l.b16 %v280
      %v804 = vunpack.c.l.b16 %v281
      %v805 = vunpack.c.l.b16 %v282
      %v806 = vunpack.c.l.b16 %v283
      %v807 = vunpack.c.l.b16 %v284
      %v808 = vunpack.c.l.b16 %v285
      %v809 = vunpack.c.l.b16 %v286
      %v810 = vunpack.c.l.b16 %v287
      %v811 = vunpack.c.l.b16 %v288
      %v812 = vunpack.c.l.b16 %v289
      %v813 = vunpack.c.l.b16 %v290
      %v814 = vunpack.c.l.b16 %v291
      %v815 = vunpack.c.l.b16 %v292
      %v816 = vunpack.c.l.b16 %v293
      %v817 = vunpack.c.l.b16 %v294
      %v818 = vunpack.c.l.b16 %v295
      %v819 = vunpack.c.l.b16 %v296
      %v820 = vunpack.c.l.b16 %v297
      %v821 = vunpack.c.l.b16 %v298
      %v822 = vunpack.c.l.b16 %v299
      %v823 = vunpack.c.l.b16 %v300
      %v824 = vunpack.c.l.b16 %v301
      %v825 = vunpack.c.l.b16 %v302
      %v826 = vunpack.c.l.b16 %v303
      %v827 = vunpack.c.l.b16 %v304
      %v828 = vunpack.c.l.b16 %v305
      %v829 = vunpack.c.l.b16 %v306
      %v830 = vunpack.c.l.b16 %v307
      %v831 = vunpack.c.l.b16 %v308
      %v832 = vunpack.c.l.b16 %v309
      %v833 = vunpack.c.l.b16 %v310
      %v834 = vunpack.c.l.b16 %v311
      %v835 = vunpack.c.l.b16 %v312
      %v836 = vunpack.c.l.b16 %v313
      %v837 = vunpack.c.l.b16 %v314
      %v838 = vunpack.c.l.b16 %v315
      %v839 = vunpack.c.l.b16 %v316
      %v840 = vunpack.c.l.b16 %v317
      %v841 = vunpack.c.l.b16 %v318
      %v842 = vunpack.c.l.b16 %v319
      %v843 = vunpack.c.l.b16 %v320
      %v844 = vunpack.c.l.b16 %v321
      %v845 = vunpack.c.l.b16 %v322
      %v846 = vunpack.c.l.b16 %v323
      %v847 = vunpack.c.l.b16 %v324
      %v848 = vunpack.c.l.b16 %v325
      %v849 = vunpack.c.l.b16 %v326
      %v850 = vunpack.c.l.b16 %v327
      %v851 = vunpack.c.l.b16 %v328
      %v852 = vunpack.c.l.b16 %v329
      %v853 = vunpack.c.l.b16 %v330
      %v854 = vunpack.c.l.b16 %v331
      %v855 = vunpack.c.l.b16 %v332
      %v856 = vunpack.c.l.b16 %v333
      %v857 = vunpack.c.l.b16 %v334
      %v858 = vunpack.c.l.b16 %v335
      %v859 = vunpack.c.l.b16 %v336
      %v860 = vunpack.c.l.b16 %v337
      %v861 = vunpack.c.l.b16 %v338
      %v862 = vunpack.c.l.b16 %v339
      %v863 = vunpack.c.l.b16 %v340
      %v864 = vunpack.c.l.b16 %v341
      %v865 = vunpack.c.l.b16 %v342
      %v866 = vunpack.c.l.b16 %v343
      %v867 = vunpack.c.l.b16 %v344
      %v868 = vunpack.c.l.b16 %v345
      %v869 = vunpack.c.l.b16 %v346
      %v870 = vunpack.c.l.b16 %v347
      %v871 = vunpack.c.l.b16 %v348
      %v872 = vunpack.c.l.b16 %v349
      %v873 = vunpack.c.l.b16 %v350
      %v874 = vunpack.c.l.b16 %v351
      %v875 = vunpack.c.l.b16 %v352
      %v876 = vunpack.c.l.b16 %v353
      %v877 = vunpack.c.l.b16 %v354
      %v878 = vunpack.c.l.b16 %v355
      %v879 = vunpack.c.l.b16 %v356
      %v880 = vunpack.c.l.b16 %v357
      %v881 = vunpack.c.l.b16 %v358
      %v882 = vunpack.c.l.b16 %v359
      %v883 = vunpack.c.l.b16 %v360
      %v884 = vunpack.c.l.b16 %v361
      %v885 = vunpack.c.l.b16 %v362
      %v886 = vunpack.c.l.b16 %v363
      %v887 = vunpack.c.l.b16 %v364
      %v888 = vunpack.c.l.b16 %v365
      %v889 = vunpack.c.l.b16 %v366
      %v890 = vunpack.c.l.b16 %v367
      %v891 = vunpack.c.l.b16 %v368
      %v892 = vunpack.c.l.b16 %v369
      %v893 = vunpack.c.l.b16 %v370
      %v894 = vunpack.c.l.b16 %v371
      %v895 = vunpack.c.l.b16 %v372
      %v896 = vunpack.c.l.b16 %v373
      %v897 = vunpack.c.l.b16 %v374
      %v898 = vunpack.c.l.b16 %v375
      %v899 = vunpack.c.l.b16 %v376
      %v900 = vunpack.c.l.b16 %v377
      %v901 = vunpack.c.l.b16 %v378
      %v902 = vunpack.c.l.b16 %v379
      %v903 = vunpack.c.l.b16 %v380
      %v904 = vunpack.c.l.b16 %v381
      %v905 = vunpack.c.l.b16 %v382
      %v906 = vunpack.c.l.b16 %v383
      %v907 = vunpack.c.l.b16 %v384
      %v908 = vunpack.c.l.b16 %v385
      %v909 = vunpack.c.l.b16 %v386
      %v910 = vunpack.c.l.b16 %v387
      %v911 = vunpack.c.l.b16 %v388
      %v912 = vunpack.c.l.b16 %v389
      %v913 = vunpack.c.l.b16 %v390
      %v914 = vunpack.c.l.b16 %v391
      %v915 = vunpack.c.l.b16 %v392
      %v916 = vunpack.c.l.b16 %v393
      %v917 = vunpack.c.l.b16 %v394
      %v918 = vunpack.c.l.b16 %v395
      %v919 = vunpack.c.l.b16 %v396
      %v920 = vunpack.c.l.b16 %v397
      %v921 = vunpack.c.l.b16 %v398
      %v922 = vunpack.c.l.b16 %v399
      %v923 = vunpack.c.l.b16 %v400
      %v924 = vunpack.c.l.b16 %v401
      %v925 = vunpack.c.l.b16 %v402
      %v926 = vunpack.c.l.b16 %v403
      %v927 = vunpack.c.l.b16 %v404
      %v928 = vunpack.c.l.b16 %v405
      %v929 = vunpack.c.l.b16 %v406
      %v930 = vunpack.c.l.b16 %v407
      %v931 = vunpack.c.l.b16 %v408
      %v932 = vunpack.c.l.b16 %v409
      %v933 = vunpack.c.l.b16 %v410
      %v934 = vunpack.c.l.b16 %v411
      %v935 = vunpack.c.l.b16 %v412
      %v936 = vunpack.c.l.b16 %v413
      %v937 = vunpack.c.l.b16 %v414
      %v938 = vunpack.c.l.b16 %v415
      %v939 = vunpack.c.l.b16 %v416
      %v940 = vunpack.c.l.b16 %v417
      %v941 = vunpack.c.l.b16 %v418
      %v942 = vunpack.c.l.b16 %v419
      %v943 = vunpack.c.l.b16 %v420
      %v944 = vunpack.c.l.b16 %v421
      %v945 = vunpack.c.l.b16 %v422
      %v946 = vunpack.c.l.b16 %v423
      %v947 = vunpack.c.l.b16 %v424
      %v948 = vunpack.c.l.b16 %v425
      %v949 = vunpack.c.l.b16 %v426
      %v950 = vunpack.c.l.b16 %v427
      %v951 = vunpack.c.l.b16 %v428
      %v952 = vunpack.c.l.b16 %v429
      %v953 = vunpack.c.l.b16 %v430
      %v954 = vunpack.c.l.b16 %v431
      %v955 = vunpack.c.l.b16 %v432
      %v956 = vunpack.c.l.b16 %v433
      %v957 = vunpack.c.l.b16 %v434
      %v958 = vunpack.c.l.b16 %v435
      %v959 = vunpack.c.l.b16 %v436
      %v960 = vunpack.c.l.b16 %v437
      %v961 = vunpack.c.l.b16 %v438
      %v962 = vunpack.c.l.b16 %v439
      %v963 = vunpack.c.l.b16 %v440
      %v964 = vunpack.c.l.b16 %v441
      %v965 = vunpack.c.l.b16 %v442
      %v966 = vunpack.c.l.b16 %v443
      %v967 = vunpack.c.l.b16 %v444
      %v968 = vunpack.c.l.b16 %v445
      %v969 = vunpack.c.l.b16 %v446
      %v970 = vunpack.c.l.b16 %v447
      %v971 = vunpack.c.l.b16 %v448
      %v972 = vunpack.c.l.b16 %v449
      %v973 = vunpack.c.l.b16 %v450
      %v974 = vunpack.c.l.b16 %v451
      %v975 = vunpack.c.l.b16 %v452
      %v976 = vunpack.c.l.b16 %v453
      %v977 = vunpack.c.l.b16 %v454
      %v978 = vunpack.c.l.b16 %v455
      %v979 = vunpack.c.l.b16 %v456
      %v980 = vunpack.c.l.b16 %v457
      %v981 = vunpack.c.l.b16 %v458
      %v982 = vunpack.c.l.b16 %v459
      %v983 = vunpack.c.l.b16 %v460
      %v984 = vunpack.c.l.b16 %v461
      %v985 = vunpack.c.l.b16 %v462
      %v986 = vunpack.c.l.b16 %v463
      %v987 = vpack.c.b16 %v732, %v731
      %v988 = vpack.c.b16 %v734, %v733
      %v989 = vpack.c.b16 %v736, %v735
      %v990 = vpack.c.b16 %v738, %v737
      %v991 = vpack.c.b16 %v740, %v739
      %v992 = vpack.c.b16 %v742, %v741
      %v993 = vpack.c.b16 %v744, %v743
      %v994 = vpack.c.b16 %v746, %v745
      %v995 = vpack.c.b16 %v748, %v747
      %v996 = vpack.c.b16 %v750, %v749
      %v997 = vpack.c.b16 %v752, %v751
      %v998 = vpack.c.b16 %v754, %v753
      %v999 = vpack.c.b16 %v756, %v755
      %v1000 = vpack.c.b16 %v758, %v757
      %v1001 = vpack.c.b16 %v760, %v759
      %v1002 = vpack.c.b16 %v762, %v761
      %v1003 = vpack.c.b16 %v764, %v763
      %v1004 = vpack.c.b16 %v766, %v765
      %v1005 = vpack.c.b16 %v768, %v767
      %v1006 = vpack.c.b16 %v770, %v769
      %v1007 = vpack.c.b16 %v772, %v771
      %v1008 = vpack.c.b16 %v774, %v773
      %v1009 = vpack.c.b16 %v776, %v775
      %v1010 = vpack.c.b16 %v778, %v777
      %v1011 = vpack.c.b16 %v780, %v779
      %v1012 = vpack.c.b16 %v782, %v781
      %v1013 = vpack.c.b16 %v784, %v783
      %v1014 = vpack.c.b16 %v786, %v785
      %v1015 = vpack.c.b16 %v788, %v787
      %v1016 = vpack.c.b16 %v790, %v789
      %v1017 = vpack.c.b16 %v792, %v791
      %v1018 = vpack.c.b16 %v794, %v793
      %v1019 = vpack.c.b16 %v796, %v795
      %v1020 = vpack.c.b16 %v798, %v797
      %v1021 = vpack.c.b16 %v800, %v799
      %v1022 = vpack.c.b16 %v802, %v801
      %v1023 = vpack.c.b16 %v804, %v803
      %v1024 = vpack.c.b16 %v806, %v805
      %v1025 = vpack.c.b16 %v808, %v807
      %v1026 = vpack.c.b16 %v810, %v809
      %v1027 = vpack.c.b16 %v812, %v811
      %v1028 = vpack.c.b16 %v814, %v813
      %v1029 = vpack.c.b16 %v816, %v815
      %v1030 = vpack.c.b16 %v818, %v817
      %v1031 = vpack.c.b16 %v820, %v819
      %v1032 = vpack.c.b16 %v822, %v821
      %v1033 = vpack.c.b16 %v824, %v823
      %v1034 = vpack.c.b16 %v826, %v825
      %v1035 = vpack.c.b16 %v828, %v827
      %v1036 = vpack.c.b16 %v830, %v829
      %v1037 = vpack.c.b16 %v832, %v831
      %v1038 = vpack.c.b16 %v834, %v833
      %v1039 = vpack.c.b16 %v836, %v835
      %v1040 = vpack.c.b16 %v838, %v837
      %v1041 = vpack.c.b16 %v840, %v839
      %v1042 = vpack.c.b16 %v842, %v841
      %v1043 = vpack.c.b16 %v844, %v843
      %v1044 = vpack.c.b16 %v846, %v845
      %v1045 = vpack.c.b16 %v848, %v847
      %v1046 = vpack.c.b16 %v850, %v849
      %v1047 = vpack.c.b16 %v852, %v851
      %v1048 = vpack.c.b16 %v854, %v853
      %v1049 = vpack.c.b16 %v856, %v855
      %v1050 = vpack.c.b16 %v858, %v857
      %v1051 = vpack.c.b16 %v860, %v859
      %v1052 = vpack.c.b16 %v862, %v861
      %v1053 = vpack.c.b16 %v864, %v863
      %v1054 = vpack.c.b16 %v866, %v865
      %v1055 = vpack.c.b16 %v868, %v867
      %v1056 = vpack.c.b16 %v870, %v869
      %v1057 = vpack.c.b16 %v872, %v871
      %v1058 = vpack.c.b16 %v874, %v873
      %v1059 = vpack.c.b16 %v876, %v875
      %v1060 = vpack.c.b16 %v878, %v877
      %v1061 = vpack.c.b16 %v880, %v879
      %v1062 = vpack.c.b16 %v882, %v881
      %v1063 = vpack.c.b16 %v884, %v883
      %v1064 = vpack.c.b16 %v886, %v885
      %v1065 = vpack.c.b16 %v888, %v887
      %v1066 = vpack.c.b16 %v890, %v889
      %v1067 = vpack.c.b16 %v892, %v891
      %v1068 = vpack.c.b16 %v894, %v893
      %v1069 = vpack.c.b16 %v896, %v895
      %v1070 = vpack.c.b16 %v898, %v897
      %v1071 = vpack.c.b16 %v900, %v899
      %v1072 = vpack.c.b16 %v902, %v901
      %v1073 = vpack.c.b16 %v904, %v903
      %v1074 = vpack.c.b16 %v906, %v905
      %v1075 = vpack.c.b16 %v908, %v907
      %v1076 = vpack.c.b16 %v910, %v909
      %v1077 = vpack.c.b16 %v912, %v911
      %v1078 = vpack.c.b16 %v914, %v913
      %v1079 = vpack.c.b16 %v916, %v915
      %v1080 = vpack.c.b16 %v918, %v917
      %v1081 = vpack.c.b16 %v920, %v919
      %v1082 = vpack.c.b16 %v922, %v921
      %v1083 = vpack.c.b16 %v924, %v923
      %v1084 = vpack.c.b16 %v926, %v925
      %v1085 = vpack.c.b16 %v928, %v927
      %v1086 = vpack.c.b16 %v930, %v929
      %v1087 = vpack.c.b16 %v932, %v931
      %v1088 = vpack.c.b16 %v934, %v933
      %v1089 = vpack.c.b16 %v936, %v935
      %v1090 = vpack.c.b16 %v938, %v937
      %v1091 = vpack.c.b16 %v940, %v939
      %v1092 = vpack.c.b16 %v942, %v941
      %v1093 = vpack.c.b16 %v944, %v943
      %v1094 = vpack.c.b16 %v946, %v945
      %v1095 = vpack.c.b16 %v948, %v947
      %v1096 = vpack.c.b16 %v950, %v949
      %v1097 = vpack.c.b16 %v952, %v951
      %v1098 = vpack.c.b16 %v954, %v953
      %v1099 = vpack.c.b16 %v956, %v955
      %v1100 = vpack.c.b16 %v958, %v957
      %v1101 = vpack.c.b16 %v960, %v959
      %v1102 = vpack.c.b16 %v962, %v961
      %v1103 = vpack.c.b16 %v964, %v963
      %v1104 = vpack.c.b16 %v966, %v965
      %v1105 = vpack.c.b16 %v968, %v967
      %v1106 = vpack.c.b16 %v970, %v969
      %v1107 = vpack.c.b16 %v972, %v971
      %v1108 = vpack.c.b16 %v974, %v973
      %v1109 = vpack.c.b16 %v976, %v975
      %v1110 = vpack.c.b16 %v978, %v977
      %v1111 = vpack.c.b16 %v980, %v979
      %v1112 = vpack.c.b16 %v982, %v981
      %v1113 = vpack.c.b16 %v984, %v983
      %v1114 = vpack.c.b16 %v986, %v985
      %v1119 = vunpack.c.l.b16 %v464
      %v1120 = vunpack.c.l.b16 %v465
      %v1121 = vunpack.c.l.b16 %v466
      %v1122 = vunpack.c.l.b16 %v467
      %v1123 = vpack.c.b16 %v1120, %v1119
      %v1124 = vpack.c.b16 %v1122, %v1121
      %vm1126 = vcmask 220160
      %v1128 = vsel %vm1126, %v987, 0
      %v1131 = vsel %vm1126, %v988, 0
      %v1134 = vsel %vm1126, %v989, 0
      %v1137 = vsel %vm1126, %v990, 0
      %v1140 = vsel %vm1126, %v991, 0
      %v1143 = vsel %vm1126, %v992, 0
      %v1146 = vsel %vm1126, %v993, 0
      %v1149 = vsel %vm1126, %v994, 0
      %v1152 = vsel %vm1126, %v995, 0
      %v1155 = vsel %vm1126, %v996, 0
      %v1158 = vsel %vm1126, %v997, 0
      %v1161 = vsel %vm1126, %v998, 0
      %v1164 = vsel %vm1126, %v999, 0
      %v1167 = vsel %vm1126, %v1000, 0
      %v1170 = vsel %vm1126, %v1001, 0
      %v1173 = vsel %vm1126, %v1002, 0
      %v1176 = vsel %vm1126, %v1003, 0
      %v1179 = vsel %vm1126, %v1004, 0
      %v1182 = vsel %vm1126, %v1005, 0
      %v1185 = vsel %vm1126, %v1006, 0
      %v1188 = vsel %vm1126, %v1007, 0
      %v1191 = vsel %vm1126, %v1008, 0
      %v1194 = vsel %vm1126, %v1009, 0
      %v1197 = vsel %vm1126, %v1010, 0
      %v1200 = vsel %vm1126, %v1011, 0
      %v1203 = vsel %vm1126, %v1012, 0
      %v1206 = vsel %vm1126, %v1013, 0
      %v1209 = vsel %vm1126, %v1014, 0
      %v1212 = vsel %vm1126, %v1015, 0
      %v1215 = vsel %vm1126, %v1016, 0
      %v1218 = vsel %vm1126, %v1017, 0
      %v1221 = vsel %vm1126, %v1018, 0
      %v1224 = vsel %vm1126, %v1019, 0
      %v1227 = vsel %vm1126, %v1020, 0
      %v1230 = vsel %vm1126, %v1021, 0
      %v1233 = vsel %vm1126, %v1022, 0
      %v1236 = vsel %vm1126, %v1023, 0
      %v1239 = vsel %vm1126, %v1024, 0
      %v1242 = vsel %vm1126, %v1025, 0
      %v1245 = vsel %vm1126, %v1026, 0
      %v1248 = vsel %vm1126, %v1027, 0
      %v1251 = vsel %vm1126, %v1028, 0
      %v1254 = vsel %vm1126, %v1029, 0
      %v1257 = vsel %vm1126, %v1030, 0
      %v1260 = vsel %vm1126, %v1031, 0
      %v1263 = vsel %vm1126, %v1032, 0
      %v1266 = vsel %vm1126, %v1033, 0
      %v1269 = vsel %vm1126, %v1034, 0
      %v1272 = vsel %vm1126, %v1035, 0
      %v1275 = vsel %vm1126, %v1036, 0
      %v1278 = vsel %vm1126, %v1037, 0
      %v1281 = vsel %vm1126, %v1038, 0
      %v1284 = vsel %vm1126, %v1039, 0
      %v1287 = vsel %vm1126, %v1040, 0
      %v1290 = vsel %vm1126, %v1041, 0
      %v1293 = vsel %vm1126, %v1042, 0
      %v1296 = vsel %vm1126, %v1043, 0
      %v1299 = vsel %vm1126, %v1044, 0
      %v1302 = vsel %vm1126, %v1045, 0
      %v1305 = vsel %vm1126, %v1046, 0
      %v1308 = vsel %vm1126, %v1047, 0
      %v1311 = vsel %vm1126, %v1048, 0
      %v1314 = vsel %vm1126, %v1049, 0
      %v1317 = vsel %vm1126, %v1050, 0
      %v1320 = vsel %vm1126, %v1051, 0
      %v1323 = vsel %vm1126, %v1052, 0
      %v1326 = vsel %vm1126, %v1053, 0
      %v1329 = vsel %vm1126, %v1054, 0
      %v1332 = vsel %vm1126, %v1055, 0
      %v1335 = vsel %vm1126, %v1056, 0
      %v1338 = vsel %vm1126, %v1057, 0
      %v1341 = vsel %vm1126, %v1058, 0
      %v1344 = vsel %vm1126, %v1059, 0
      %v1347 = vsel %vm1126, %v1060, 0
      %v1350 = vsel %vm1126, %v1061, 0
      %v1353 = vsel %vm1126, %v1062, 0
      %v1356 = vsel %vm1126, %v1063, 0
      %v1359 = vsel %vm1126, %v1064, 0
      %v1362 = vsel %vm1126, %v1065, 0
      %v1365 = vsel %vm1126, %v1066, 0
      %v1368 = vsel %vm1126, %v1067, 0
      %v1371 = vsel %vm1126, %v1068, 0
      %v1374 = vsel %vm1126, %v1069, 0
      %v1377 = vsel %vm1126, %v1070, 0
      %v1380 = vsel %vm1126, %v1071, 0
      %v1383 = vsel %vm1126, %v1072, 0
      %v1386 = vsel %vm1126, %v1073, 0
      %v1389 = vsel %vm1126, %v1074, 0
      %v1392 = vsel %vm1126, %v1075, 0
      %v1395 = vsel %vm1126, %v1076, 0
      %v1398 = vsel %vm1126, %v1077, 0
      %v1401 = vsel %vm1126, %v1078, 0
      %v1404 = vsel %vm1126, %v1079, 0
      %v1407 = vsel %vm1126, %v1080, 0
      %v1410 = vsel %vm1126, %v1081, 0
      %v1413 = vsel %vm1126, %v1082, 0
      %v1416 = vsel %vm1126, %v1083, 0
      %v1419 = vsel %vm1126, %v1084, 0
      %v1422 = vsel %vm1126, %v1085, 0
      %v1425 = vsel %vm1126, %v1086, 0
      %v1428 = vsel %vm1126, %v1087, 0
      %v1431 = vsel %vm1126, %v1088, 0
      %v1434 = vsel %vm1126, %v1089, 0
      %v1437 = vsel %vm1126, %v1090, 0
      %v1440 = vsel %vm1126, %v1091, 0
      %v1443 = vsel %vm1126, %v1092, 0
      %v1446 = vsel %vm1126, %v1093, 0
      %v1449 = vsel %vm1126, %v1094, 0
      %v1452 = vsel %vm1126, %v1095, 0
      %v1455 = vsel %vm1126, %v1096, 0
      %v1458 = vsel %vm1126, %v1097, 0
      %v1461 = vsel %vm1126, %v1098, 0
      %v1464 = vsel %vm1126, %v1099, 0
      %v1467 = vsel %vm1126, %v1100, 0
      %v1470 = vsel %vm1126, %v1101, 0
      %v1473 = vsel %vm1126, %v1102, 0
      %v1476 = vsel %vm1126, %v1103, 0
      %v1479 = vsel %vm1126, %v1104, 0
      %v1482 = vsel %vm1126, %v1105, 0
      %v1485 = vsel %vm1126, %v1106, 0
      %v1488 = vsel %vm1126, %v1107, 0
      %v1491 = vsel %vm1126, %v1108, 0
      %v1494 = vsel %vm1126, %v1109, 0
      %v1497 = vsel %vm1126, %v1110, 0
      %v1500 = vsel %vm1126, %v1111, 0
      %v1503 = vsel %vm1126, %v1112, 0
      %v1506 = vsel %vm1126, %v1113, 0
      %v1509 = vsel %vm1126, %v1114, 0
      %vm1511 = vcmask 1044480
      %vm1512 = vcmask 1045504
      %v1513 = vsel %vm1511, 4294967295, 65535
      %v1514 = vsel %vm1512, %v1513, 0
      %v1516 = vand.u32 %v1124, %v1514
      %1518 = vmatprep.subr.bf16.mxu0 0
      %1519 = vmatpush1.bf16.msra.mxu0 %v1123
      %1520 = vmatprep.subr.bf16.mxu0 0
      %1521 = vmatpush1.bf16.msra.mxu0 %v1516
      %1522 = vmatprep.subr.bf16.mxu0 0
      %1523 = vmatpush1.bf16.msra.mxu0 0
      %1524 = vmatprep.subr.bf16.mxu0 0
      %1525 = vmatpush1.bf16.msra.mxu0 0
      %1526 = vmatprep.subr.bf16.mxu0 0
      %1527 = vmatpush1.bf16.msra.mxu0 0
      %1528 = vmatprep.subr.bf16.mxu0 0
      %1529 = vmatpush1.bf16.msra.mxu0 0
      %1530 = vmatprep.subr.bf16.mxu0 0
      %1531 = vmatpush1.bf16.msra.mxu0 0
      %1532 = vmatprep.subr.bf16.mxu0 0
      %1533 = vmatpush1.bf16.msra.mxu0 0
      %1534 = vmatprep.subr.bf16.mxu0 0
      %1535 = vmatpush1.bf16.msra.mxu0 0
      %1536 = vmatprep.subr.bf16.mxu0 0
      %1537 = vmatpush1.bf16.msra.mxu0 0
      %1538 = vmatprep.subr.bf16.mxu0 0
      %1539 = vmatpush1.bf16.msra.mxu0 0
      %1540 = vmatprep.subr.bf16.mxu0 0
      %1541 = vmatpush1.bf16.msra.mxu0 0
      %1542 = vmatprep.subr.bf16.mxu0 0
      %1543 = vmatpush1.bf16.msra.mxu0 0
      %1544 = vmatprep.subr.bf16.mxu0 0
      %1545 = vmatpush1.bf16.msra.mxu0 0
      %1546 = vmatprep.subr.bf16.mxu0 0
      %1547 = vmatpush1.bf16.msra.mxu0 0
      %1548 = vmatprep.subr.bf16.mxu0 0
      %1549 = vmatpush1.bf16.msra.mxu0 0
      %1550 = vmatprep.mubr.bf16.mxu0 0
      %1551 = vmatmul.mubr.bf16.gmra.mrb[0].mxu0 %v1128
      %v1552 = vpop.f32.mrb[0].mxu0
      %v1553 = vadd.f32 %v473, %v1552
      %v1554 = vpop.f32.mrb[0].mxu0
      %v1555 = vpop.f32.mrb[0].mxu0
      %v1556 = vadd.f32 %v473, %v1555
      %v1557 = vpop.f32.mrb[0].mxu0
      %1558 = vmatprep.mubr.bf16.mxu0 0
      %1559 = vmatmul.mubr.bf16.gmra.mrb[0].mxu0 %v1131
      %v1560 = vpop.f32.mrb[0].mxu0
      %v1561 = vadd.f32 %v473, %v1560
      %v1562 = vpop.f32.mrb[0].mxu0
      %v1563 = vpop.f32.mrb[0].mxu0
      %v1564 = vadd.f32 %v473, %v1563
      %v1565 = vpop.f32.mrb[0].mxu0
      %1566 = vmatprep.mubr.bf16.mxu0 0
      %1567 = vmatmul.mubr.bf16.gmra.mrb[0].mxu0 %v1134
      %v1568 = vpop.f32.mrb[0].mxu0
      %v1569 = vadd.f32 %v473, %v1568
      %v1570 = vpop.f32.mrb[0].mxu0
      %v1571 = vpop.f32.mrb[0].mxu0
      %v1572 = vadd.f32 %v473, %v1571
      %v1573 = vpop.f32.mrb[0].mxu0
      %1574 = vmatprep.mubr.bf16.mxu0 0
      %1575 = vmatmul.mubr.bf16.gmra.mrb[0].mxu0 %v1137
      %v1576 = vpop.f32.mrb[0].mxu0
      %v1577 = vadd.f32 %v473, %v1576
      %v1578 = vpop.f32.mrb[0].mxu0
      %v1579 = vpop.f32.mrb[0].mxu0
      %v1580 = vadd.f32 %v473, %v1579
      %v1581 = vpop.f32.mrb[0].mxu0
      %1582 = vmatprep.mubr.bf16.mxu0 0
      %1583 = vmatmul.mubr.bf16.gmra.mrb[0].mxu0 %v1140
      %v1584 = vpop.f32.mrb[0].mxu0
      %v1585 = vadd.f32 %v473, %v1584
      %v1586 = vpop.f32.mrb[0].mxu0
      %v1587 = vpop.f32.mrb[0].mxu0
      %v1588 = vadd.f32 %v473, %v1587
      %v1589 = vpop.f32.mrb[0].mxu0
      %1590 = vmatprep.mubr.bf16.mxu0 0
      %1591 = vmatmul.mubr.bf16.gmra.mrb[0].mxu0 %v1143
      %v1592 = vpop.f32.mrb[0].mxu0
      %v1593 = vadd.f32 %v473, %v1592
      %v1594 = vpop.f32.mrb[0].mxu0
      %v1595 = vpop.f32.mrb[0].mxu0
      %v1596 = vadd.f32 %v473, %v1595
      %v1597 = vpop.f32.mrb[0].mxu0
      %1598 = vmatprep.mubr.bf16.mxu0 0
      %1599 = vmatmul.mubr.bf16.gmra.mrb[0].mxu0 %v1146
      %v1600 = vpop.f32.mrb[0].mxu0
      %v1601 = vadd.f32 %v473, %v1600
      %v1602 = vpop.f32.mrb[0].mxu0
      %v1603 = vpop.f32.mrb[0].mxu0
      %v1604 = vadd.f32 %v473, %v1603
      %v1605 = vpop.f32.mrb[0].mxu0
      %1606 = vmatprep.mubr.bf16.mxu0 0
      %1607 = vmatmul.mubr.bf16.gmra.mrb[0].mxu0 %v1149
      %v1608 = vpop.f32.mrb[0].mxu0
      %v1609 = vadd.f32 %v473, %v1608
      %v1610 = vpop.f32.mrb[0].mxu0
      %v1611 = vpop.f32.mrb[0].mxu0
      %v1612 = vadd.f32 %v473, %v1611
      %v1613 = vpop.f32.mrb[0].mxu0
      %1614 = vmatprep.mubr.bf16.mxu0 0
      %1615 = vmatmul.mubr.bf16.gmra.mrb[0].mxu0 %v1152
      %v1616 = vpop.f32.mrb[0].mxu0
      %v1617 = vadd.f32 %v473, %v1616
      %v1618 = vpop.f32.mrb[0].mxu0
      %v1619 = vpop.f32.mrb[0].mxu0
      %v1620 = vadd.f32 %v473, %v1619
      %v1621 = vpop.f32.mrb[0].mxu0
      %1622 = vmatprep.mubr.bf16.mxu0 0
      %1623 = vmatmul.mubr.bf16.gmra.mrb[0].mxu0 %v1155
      %v1624 = vpop.f32.mrb[0].mxu0
      %v1625 = vadd.f32 %v473, %v1624
      %v1626 = vpop.f32.mrb[0].mxu0
      %v1627 = vpop.f32.mrb[0].mxu0
      %v1628 = vadd.f32 %v473, %v1627
      %v1629 = vpop.f32.mrb[0].mxu0
      %1630 = vmatprep.mubr.bf16.mxu0 0
      %1631 = vmatmul.mubr.bf16.gmra.mrb[0].mxu0 %v1158
      %v1632 = vpop.f32.mrb[0].mxu0
      %v1633 = vadd.f32 %v473, %v1632
      %v1634 = vpop.f32.mrb[0].mxu0
      %v1635 = vpop.f32.mrb[0].mxu0
      %v1636 = vadd.f32 %v473, %v1635
      %v1637 = vpop.f32.mrb[0].mxu0
      %1638 = vmatprep.mubr.bf16.mxu0 0
      %1639 = vmatmul.mubr.bf16.gmra.mrb[0].mxu0 %v1161
      %v1640 = vpop.f32.mrb[0].mxu0
      %v1641 = vadd.f32 %v473, %v1640
      %v1642 = vpop.f32.mrb[0].mxu0
      %v1643 = vpop.f32.mrb[0].mxu0
      %v1644 = vadd.f32 %v473, %v1643
      %v1645 = vpop.f32.mrb[0].mxu0
      %1646 = vmatprep.mubr.bf16.mxu0 0
      %1647 = vmatmul.mubr.bf16.gmra.mrb[0].mxu0 %v1164
      %v1648 = vpop.f32.mrb[0].mxu0
      %v1649 = vadd.f32 %v473, %v1648
      %v1650 = vpop.f32.mrb[0].mxu0
      %v1651 = vpop.f32.mrb[0].mxu0
      %v1652 = vadd.f32 %v473, %v1651
      %v1653 = vpop.f32.mrb[0].mxu0
      %1654 = vmatprep.mubr.bf16.mxu0 0
      %1655 = vmatmul.mubr.bf16.gmra.mrb[0].mxu0 %v1167
      %v1656 = vpop.f32.mrb[0].mxu0
      %v1657 = vadd.f32 %v473, %v1656
      %v1658 = vpop.f32.mrb[0].mxu0
      %v1659 = vpop.f32.mrb[0].mxu0
      %v1660 = vadd.f32 %v473, %v1659
      %v1661 = vpop.f32.mrb[0].mxu0
      %1662 = vmatprep.mubr.bf16.mxu0 0
      %1663 = vmatmul.mubr.bf16.gmra.mrb[0].mxu0 %v1170
      %v1664 = vpop.f32.mrb[0].mxu0
      %v1665 = vadd.f32 %v473, %v1664
      %v1666 = vpop.f32.mrb[0].mxu0
      %v1667 = vpop.f32.mrb[0].mxu0
      %v1668 = vadd.f32 %v473, %v1667
      %v1669 = vpop.f32.mrb[0].mxu0
      %1670 = vmatprep.mubr.bf16.mxu0 0
      %1671 = vmatmul.mubr.bf16.gmra.mrb[0].mxu0 %v1173
      %v1672 = vpop.f32.mrb[0].mxu0
      %v1673 = vadd.f32 %v473, %v1672
      %v1674 = vpop.f32.mrb[0].mxu0
      %v1675 = vpop.f32.mrb[0].mxu0
      %v1676 = vadd.f32 %v473, %v1675
      %v1677 = vpop.f32.mrb[0].mxu0
      %1678 = vmatprep.mubr.bf16.mxu0 0
      %1679 = vmatmul.mubr.bf16.gmra.mrb[0].mxu0 %v1176
      %v1680 = vpop.f32.mrb[0].mxu0
      %v1681 = vadd.f32 %v473, %v1680
      %v1682 = vpop.f32.mrb[0].mxu0
      %v1683 = vpop.f32.mrb[0].mxu0
      %v1684 = vadd.f32 %v473, %v1683
      %v1685 = vpop.f32.mrb[0].mxu0
      %1686 = vmatprep.mubr.bf16.mxu0 0
      %1687 = vmatmul.mubr.bf16.gmra.mrb[0].mxu0 %v1179
      %v1688 = vpop.f32.mrb[0].mxu0
      %v1689 = vadd.f32 %v473, %v1688
      %v1690 = vpop.f32.mrb[0].mxu0
      %v1691 = vpop.f32.mrb[0].mxu0
      %v1692 = vadd.f32 %v473, %v1691
      %v1693 = vpop.f32.mrb[0].mxu0
      %1694 = vmatprep.mubr.bf16.mxu0 0
      %1695 = vmatmul.mubr.bf16.gmra.mrb[0].mxu0 %v1182
      %v1696 = vpop.f32.mrb[0].mxu0
      %v1697 = vadd.f32 %v473, %v1696
      %v1698 = vpop.f32.mrb[0].mxu0
      %v1699 = vpop.f32.mrb[0].mxu0
      %v1700 = vadd.f32 %v473, %v1699
      %v1701 = vpop.f32.mrb[0].mxu0
      %1702 = vmatprep.mubr.bf16.mxu0 0
      %1703 = vmatmul.mubr.bf16.gmra.mrb[0].mxu0 %v1185
      %v1704 = vpop.f32.mrb[0].mxu0
      %v1705 = vadd.f32 %v473, %v1704
      %v1706 = vpop.f32.mrb[0].mxu0
      %v1707 = vpop.f32.mrb[0].mxu0
      %v1708 = vadd.f32 %v473, %v1707
      %v1709 = vpop.f32.mrb[0].mxu0
      %1710 = vmatprep.mubr.bf16.mxu0 0
      %1711 = vmatmul.mubr.bf16.gmra.mrb[0].mxu0 %v1188
      %v1712 = vpop.f32.mrb[0].mxu0
      %v1713 = vadd.f32 %v473, %v1712
      %v1714 = vpop.f32.mrb[0].mxu0
      %v1715 = vpop.f32.mrb[0].mxu0
      %v1716 = vadd.f32 %v473, %v1715
      %v1717 = vpop.f32.mrb[0].mxu0
      %1718 = vmatprep.mubr.bf16.mxu0 0
      %1719 = vmatmul.mubr.bf16.gmra.mrb[0].mxu0 %v1191
      %v1720 = vpop.f32.mrb[0].mxu0
      %v1721 = vadd.f32 %v473, %v1720
      %v1722 = vpop.f32.mrb[0].mxu0
      %v1723 = vpop.f32.mrb[0].mxu0
      %v1724 = vadd.f32 %v473, %v1723
      %v1725 = vpop.f32.mrb[0].mxu0
      %1726 = vmatprep.mubr.bf16.mxu0 0
      %1727 = vmatmul.mubr.bf16.gmra.mrb[0].mxu0 %v1194
      %v1728 = vpop.f32.mrb[0].mxu0
      %v1729 = vadd.f32 %v473, %v1728
      %v1730 = vpop.f32.mrb[0].mxu0
      %v1731 = vpop.f32.mrb[0].mxu0
      %v1732 = vadd.f32 %v473, %v1731
      %v1733 = vpop.f32.mrb[0].mxu0
      %1734 = vmatprep.mubr.bf16.mxu0 0
      %1735 = vmatmul.mubr.bf16.gmra.mrb[0].mxu0 %v1197
      %v1736 = vpop.f32.mrb[0].mxu0
      %v1737 = vadd.f32 %v473, %v1736
      %v1738 = vpop.f32.mrb[0].mxu0
      %v1739 = vpop.f32.mrb[0].mxu0
      %v1740 = vadd.f32 %v473, %v1739
      %v1741 = vpop.f32.mrb[0].mxu0
      %1742 = vmatprep.mubr.bf16.mxu0 0
      %1743 = vmatmul.mubr.bf16.gmra.mrb[0].mxu0 %v1200
      %v1744 = vpop.f32.mrb[0].mxu0
      %v1745 = vadd.f32 %v473, %v1744
      %v1746 = vpop.f32.mrb[0].mxu0
      %v1747 = vpop.f32.mrb[0].mxu0
      %v1748 = vadd.f32 %v473, %v1747
      %v1749 = vpop.f32.mrb[0].mxu0
      %1750 = vmatprep.mubr.bf16.mxu0 0
      %1751 = vmatmul.mubr.bf16.gmra.mrb[0].mxu0 %v1203
      %v1752 = vpop.f32.mrb[0].mxu0
      %v1753 = vadd.f32 %v473, %v1752
      %v1754 = vpop.f32.mrb[0].mxu0
      %v1755 = vpop.f32.mrb[0].mxu0
      %v1756 = vadd.f32 %v473, %v1755
      %v1757 = vpop.f32.mrb[0].mxu0
      %1758 = vmatprep.mubr.bf16.mxu0 0
      %1759 = vmatmul.mubr.bf16.gmra.mrb[0].mxu0 %v1206
      %v1760 = vpop.f32.mrb[0].mxu0
      %v1761 = vadd.f32 %v473, %v1760
      %v1762 = vpop.f32.mrb[0].mxu0
      %v1763 = vpop.f32.mrb[0].mxu0
      %v1764 = vadd.f32 %v473, %v1763
      %v1765 = vpop.f32.mrb[0].mxu0
      %1766 = vmatprep.mubr.bf16.mxu0 0
      %1767 = vmatmul.mubr.bf16.gmra.mrb[0].mxu0 %v1209
      %v1768 = vpop.f32.mrb[0].mxu0
      %v1769 = vadd.f32 %v473, %v1768
      %v1770 = vpop.f32.mrb[0].mxu0
      %v1771 = vpop.f32.mrb[0].mxu0
      %v1772 = vadd.f32 %v473, %v1771
      %v1773 = vpop.f32.mrb[0].mxu0
      %1774 = vmatprep.mubr.bf16.mxu0 0
      %1775 = vmatmul.mubr.bf16.gmra.mrb[0].mxu0 %v1212
      %v1776 = vpop.f32.mrb[0].mxu0
      %v1777 = vadd.f32 %v473, %v1776
      %v1778 = vpop.f32.mrb[0].mxu0
      %v1779 = vpop.f32.mrb[0].mxu0
      %v1780 = vadd.f32 %v473, %v1779
      %v1781 = vpop.f32.mrb[0].mxu0
      %1782 = vmatprep.mubr.bf16.mxu0 0
      %1783 = vmatmul.mubr.bf16.gmra.mrb[0].mxu0 %v1215
      %v1784 = vpop.f32.mrb[0].mxu0
      %v1785 = vadd.f32 %v473, %v1784
      %v1786 = vpop.f32.mrb[0].mxu0
      %v1787 = vpop.f32.mrb[0].mxu0
      %v1788 = vadd.f32 %v473, %v1787
      %v1789 = vpop.f32.mrb[0].mxu0
      %1790 = vmatprep.mubr.bf16.mxu0 0
      %1791 = vmatmul.mubr.bf16.gmra.mrb[0].mxu0 %v1218
      %v1792 = vpop.f32.mrb[0].mxu0
      %v1793 = vadd.f32 %v473, %v1792
      %v1794 = vpop.f32.mrb[0].mxu0
      %v1795 = vpop.f32.mrb[0].mxu0
      %v1796 = vadd.f32 %v473, %v1795
      %v1797 = vpop.f32.mrb[0].mxu0
      %1798 = vmatprep.mubr.bf16.mxu0 0
      %1799 = vmatmul.mubr.bf16.gmra.mrb[0].mxu0 %v1221
      %v1800 = vpop.f32.mrb[0].mxu0
      %v1801 = vadd.f32 %v473, %v1800
      %v1802 = vpop.f32.mrb[0].mxu0
      %v1803 = vpop.f32.mrb[0].mxu0
      %v1804 = vadd.f32 %v473, %v1803
      %v1805 = vpop.f32.mrb[0].mxu0
      %1806 = vmatprep.mubr.bf16.mxu0 0
      %1807 = vmatmul.mubr.bf16.gmra.mrb[0].mxu0 %v1224
      %v1808 = vpop.f32.mrb[0].mxu0
      %v1809 = vadd.f32 %v473, %v1808
      %v1810 = vpop.f32.mrb[0].mxu0
      %v1811 = vpop.f32.mrb[0].mxu0
      %v1812 = vadd.f32 %v473, %v1811
      %v1813 = vpop.f32.mrb[0].mxu0
      %1814 = vmatprep.mubr.bf16.mxu0 0
      %1815 = vmatmul.mubr.bf16.gmra.mrb[0].mxu0 %v1227
      %v1816 = vpop.f32.mrb[0].mxu0
      %v1817 = vadd.f32 %v473, %v1816
      %v1818 = vpop.f32.mrb[0].mxu0
      %v1819 = vpop.f32.mrb[0].mxu0
      %v1820 = vadd.f32 %v473, %v1819
      %v1821 = vpop.f32.mrb[0].mxu0
      %1822 = vmatprep.mubr.bf16.mxu0 0
      %1823 = vmatmul.mubr.bf16.gmra.mrb[0].mxu0 %v1230
      %v1824 = vpop.f32.mrb[0].mxu0
      %v1825 = vadd.f32 %v473, %v1824
      %v1826 = vpop.f32.mrb[0].mxu0
      %v1827 = vpop.f32.mrb[0].mxu0
      %v1828 = vadd.f32 %v473, %v1827
      %v1829 = vpop.f32.mrb[0].mxu0
      %1830 = vmatprep.mubr.bf16.mxu0 0
      %1831 = vmatmul.mubr.bf16.gmra.mrb[0].mxu0 %v1233
      %v1832 = vpop.f32.mrb[0].mxu0
      %v1833 = vadd.f32 %v473, %v1832
      %v1834 = vpop.f32.mrb[0].mxu0
      %v1835 = vpop.f32.mrb[0].mxu0
      %v1836 = vadd.f32 %v473, %v1835
      %v1837 = vpop.f32.mrb[0].mxu0
      %1838 = vmatprep.mubr.bf16.mxu0 0
      %1839 = vmatmul.mubr.bf16.gmra.mrb[0].mxu0 %v1236
      %v1840 = vpop.f32.mrb[0].mxu0
      %v1841 = vadd.f32 %v473, %v1840
      %v1842 = vpop.f32.mrb[0].mxu0
      %v1843 = vpop.f32.mrb[0].mxu0
      %v1844 = vadd.f32 %v473, %v1843
      %v1845 = vpop.f32.mrb[0].mxu0
      %1846 = vmatprep.mubr.bf16.mxu0 0
      %1847 = vmatmul.mubr.bf16.gmra.mrb[0].mxu0 %v1239
      %v1848 = vpop.f32.mrb[0].mxu0
      %v1849 = vadd.f32 %v473, %v1848
      %v1850 = vpop.f32.mrb[0].mxu0
      %v1851 = vpop.f32.mrb[0].mxu0
      %v1852 = vadd.f32 %v473, %v1851
      %v1853 = vpop.f32.mrb[0].mxu0
      %1854 = vmatprep.mubr.bf16.mxu0 0
      %1855 = vmatmul.mubr.bf16.gmra.mrb[0].mxu0 %v1242
      %v1856 = vpop.f32.mrb[0].mxu0
      %v1857 = vadd.f32 %v473, %v1856
      %v1858 = vpop.f32.mrb[0].mxu0
      %v1859 = vpop.f32.mrb[0].mxu0
      %v1860 = vadd.f32 %v473, %v1859
      %v1861 = vpop.f32.mrb[0].mxu0
      %1862 = vmatprep.mubr.bf16.mxu0 0
      %1863 = vmatmul.mubr.bf16.gmra.mrb[0].mxu0 %v1245
      %v1864 = vpop.f32.mrb[0].mxu0
      %v1865 = vadd.f32 %v473, %v1864
      %v1866 = vpop.f32.mrb[0].mxu0
      %v1867 = vpop.f32.mrb[0].mxu0
      %v1868 = vadd.f32 %v473, %v1867
      %v1869 = vpop.f32.mrb[0].mxu0
      %1870 = vmatprep.mubr.bf16.mxu0 0
      %1871 = vmatmul.mubr.bf16.gmra.mrb[0].mxu0 %v1248
      %v1872 = vpop.f32.mrb[0].mxu0
      %v1873 = vadd.f32 %v473, %v1872
      %v1874 = vpop.f32.mrb[0].mxu0
      %v1875 = vpop.f32.mrb[0].mxu0
      %v1876 = vadd.f32 %v473, %v1875
      %v1877 = vpop.f32.mrb[0].mxu0
      %1878 = vmatprep.mubr.bf16.mxu0 0
      %1879 = vmatmul.mubr.bf16.gmra.mrb[0].mxu0 %v1251
      %v1880 = vpop.f32.mrb[0].mxu0
      %v1881 = vadd.f32 %v473, %v1880
      %v1882 = vpop.f32.mrb[0].mxu0
      %v1883 = vpop.f32.mrb[0].mxu0
      %v1884 = vadd.f32 %v473, %v1883
      %v1885 = vpop.f32.mrb[0].mxu0
      %1886 = vmatprep.mubr.bf16.mxu0 0
      %1887 = vmatmul.mubr.bf16.gmra.mrb[0].mxu0 %v1254
      %v1888 = vpop.f32.mrb[0].mxu0
      %v1889 = vadd.f32 %v473, %v1888
      %v1890 = vpop.f32.mrb[0].mxu0
      %v1891 = vpop.f32.mrb[0].mxu0
      %v1892 = vadd.f32 %v473, %v1891
      %v1893 = vpop.f32.mrb[0].mxu0
      %1894 = vmatprep.mubr.bf16.mxu0 0
      %1895 = vmatmul.mubr.bf16.gmra.mrb[0].mxu0 %v1257
      %v1896 = vpop.f32.mrb[0].mxu0
      %v1897 = vadd.f32 %v473, %v1896
      %v1898 = vpop.f32.mrb[0].mxu0
      %v1899 = vpop.f32.mrb[0].mxu0
      %v1900 = vadd.f32 %v473, %v1899
      %v1901 = vpop.f32.mrb[0].mxu0
      %1902 = vmatprep.mubr.bf16.mxu0 0
      %1903 = vmatmul.mubr.bf16.gmra.mrb[0].mxu0 %v1260
      %v1904 = vpop.f32.mrb[0].mxu0
      %v1905 = vadd.f32 %v473, %v1904
      %v1906 = vpop.f32.mrb[0].mxu0
      %v1907 = vpop.f32.mrb[0].mxu0
      %v1908 = vadd.f32 %v473, %v1907
      %v1909 = vpop.f32.mrb[0].mxu0
      %1910 = vmatprep.mubr.bf16.mxu0 0
      %1911 = vmatmul.mubr.bf16.gmra.mrb[0].mxu0 %v1263
      %v1912 = vpop.f32.mrb[0].mxu0
      %v1913 = vadd.f32 %v473, %v1912
      %v1914 = vpop.f32.mrb[0].mxu0
      %v1915 = vpop.f32.mrb[0].mxu0
      %v1916 = vadd.f32 %v473, %v1915
      %v1917 = vpop.f32.mrb[0].mxu0
      %1918 = vmatprep.mubr.bf16.mxu0 0
      %1919 = vmatmul.mubr.bf16.gmra.mrb[0].mxu0 %v1266
      %v1920 = vpop.f32.mrb[0].mxu0
      %v1921 = vadd.f32 %v473, %v1920
      %v1922 = vpop.f32.mrb[0].mxu0
      %v1923 = vpop.f32.mrb[0].mxu0
      %v1924 = vadd.f32 %v473, %v1923
      %v1925 = vpop.f32.mrb[0].mxu0
      %1926 = vmatprep.mubr.bf16.mxu0 0
      %1927 = vmatmul.mubr.bf16.gmra.mrb[0].mxu0 %v1269
      %v1928 = vpop.f32.mrb[0].mxu0
      %v1929 = vadd.f32 %v473, %v1928
      %v1930 = vpop.f32.mrb[0].mxu0
      %v1931 = vpop.f32.mrb[0].mxu0
      %v1932 = vadd.f32 %v473, %v1931
      %v1933 = vpop.f32.mrb[0].mxu0
      %1934 = vmatprep.mubr.bf16.mxu0 0
      %1935 = vmatmul.mubr.bf16.gmra.mrb[0].mxu0 %v1272
      %v1936 = vpop.f32.mrb[0].mxu0
      %v1937 = vadd.f32 %v473, %v1936
      %v1938 = vpop.f32.mrb[0].mxu0
      %v1939 = vpop.f32.mrb[0].mxu0
      %v1940 = vadd.f32 %v473, %v1939
      %v1941 = vpop.f32.mrb[0].mxu0
      %1942 = vmatprep.mubr.bf16.mxu0 0
      %1943 = vmatmul.mubr.bf16.gmra.mrb[0].mxu0 %v1275
      %v1944 = vpop.f32.mrb[0].mxu0
      %v1945 = vadd.f32 %v473, %v1944
      %v1946 = vpop.f32.mrb[0].mxu0
      %v1947 = vpop.f32.mrb[0].mxu0
      %v1948 = vadd.f32 %v473, %v1947
      %v1949 = vpop.f32.mrb[0].mxu0
      %1950 = vmatprep.mubr.bf16.mxu0 0
      %1951 = vmatmul.mubr.bf16.gmra.mrb[0].mxu0 %v1278
      %v1952 = vpop.f32.mrb[0].mxu0
      %v1953 = vadd.f32 %v473, %v1952
      %v1954 = vpop.f32.mrb[0].mxu0
      %v1955 = vpop.f32.mrb[0].mxu0
      %v1956 = vadd.f32 %v473, %v1955
      %v1957 = vpop.f32.mrb[0].mxu0
      %1958 = vmatprep.mubr.bf16.mxu0 0
      %1959 = vmatmul.mubr.bf16.gmra.mrb[0].mxu0 %v1281
      %v1960 = vpop.f32.mrb[0].mxu0
      %v1961 = vadd.f32 %v473, %v1960
      %v1962 = vpop.f32.mrb[0].mxu0
      %v1963 = vpop.f32.mrb[0].mxu0
      %v1964 = vadd.f32 %v473, %v1963
      %v1965 = vpop.f32.mrb[0].mxu0
      %1966 = vmatprep.mubr.bf16.mxu0 0
      %1967 = vmatmul.mubr.bf16.gmra.mrb[0].mxu0 %v1284
      %v1968 = vpop.f32.mrb[0].mxu0
      %v1969 = vadd.f32 %v473, %v1968
      %v1970 = vpop.f32.mrb[0].mxu0
      %v1971 = vpop.f32.mrb[0].mxu0
      %v1972 = vadd.f32 %v473, %v1971
      %v1973 = vpop.f32.mrb[0].mxu0
      %1974 = vmatprep.mubr.bf16.mxu0 0
      %1975 = vmatmul.mubr.bf16.gmra.mrb[0].mxu0 %v1287
      %v1976 = vpop.f32.mrb[0].mxu0
      %v1977 = vadd.f32 %v473, %v1976
      %v1978 = vpop.f32.mrb[0].mxu0
      %v1979 = vpop.f32.mrb[0].mxu0
      %v1980 = vadd.f32 %v473, %v1979
      %v1981 = vpop.f32.mrb[0].mxu0
      %1982 = vmatprep.mubr.bf16.mxu0 0
      %1983 = vmatmul.mubr.bf16.gmra.mrb[0].mxu0 %v1290
      %v1984 = vpop.f32.mrb[0].mxu0
      %v1985 = vadd.f32 %v473, %v1984
      %v1986 = vpop.f32.mrb[0].mxu0
      %v1987 = vpop.f32.mrb[0].mxu0
      %v1988 = vadd.f32 %v473, %v1987
      %v1989 = vpop.f32.mrb[0].mxu0
      %1990 = vmatprep.mubr.bf16.mxu0 0
      %1991 = vmatmul.mubr.bf16.gmra.mrb[0].mxu0 %v1293
      %v1992 = vpop.f32.mrb[0].mxu0
      %v1993 = vadd.f32 %v473, %v1992
      %v1994 = vpop.f32.mrb[0].mxu0
      %v1995 = vpop.f32.mrb[0].mxu0
      %v1996 = vadd.f32 %v473, %v1995
      %v1997 = vpop.f32.mrb[0].mxu0
      %1998 = vmatprep.mubr.bf16.mxu0 0
      %1999 = vmatmul.mubr.bf16.gmra.mrb[0].mxu0 %v1296
      %v2000 = vpop.f32.mrb[0].mxu0
      %v2001 = vadd.f32 %v473, %v2000
      %v2002 = vpop.f32.mrb[0].mxu0
      %v2003 = vpop.f32.mrb[0].mxu0
      %v2004 = vadd.f32 %v473, %v2003
      %v2005 = vpop.f32.mrb[0].mxu0
      %2006 = vmatprep.mubr.bf16.mxu0 0
      %2007 = vmatmul.mubr.bf16.gmra.mrb[0].mxu0 %v1299
      %v2008 = vpop.f32.mrb[0].mxu0
      %v2009 = vadd.f32 %v473, %v2008
      %v2010 = vpop.f32.mrb[0].mxu0
      %v2011 = vpop.f32.mrb[0].mxu0
      %v2012 = vadd.f32 %v473, %v2011
      %v2013 = vpop.f32.mrb[0].mxu0
      %2014 = vmatprep.mubr.bf16.mxu0 0
      %2015 = vmatmul.mubr.bf16.gmra.mrb[0].mxu0 %v1302
      %v2016 = vpop.f32.mrb[0].mxu0
      %v2017 = vadd.f32 %v473, %v2016
      %v2018 = vpop.f32.mrb[0].mxu0
      %v2019 = vpop.f32.mrb[0].mxu0
      %v2020 = vadd.f32 %v473, %v2019
      %v2021 = vpop.f32.mrb[0].mxu0
      %2022 = vmatprep.mubr.bf16.mxu0 0
      %2023 = vmatmul.mubr.bf16.gmra.mrb[0].mxu0 %v1305
      %v2024 = vpop.f32.mrb[0].mxu0
      %v2025 = vadd.f32 %v473, %v2024
      %v2026 = vpop.f32.mrb[0].mxu0
      %v2027 = vpop.f32.mrb[0].mxu0
      %v2028 = vadd.f32 %v473, %v2027
      %v2029 = vpop.f32.mrb[0].mxu0
      %2030 = vmatprep.mubr.bf16.mxu0 0
      %2031 = vmatmul.mubr.bf16.gmra.mrb[0].mxu0 %v1308
      %v2032 = vpop.f32.mrb[0].mxu0
      %v2033 = vadd.f32 %v473, %v2032
      %v2034 = vpop.f32.mrb[0].mxu0
      %v2035 = vpop.f32.mrb[0].mxu0
      %v2036 = vadd.f32 %v473, %v2035
      %v2037 = vpop.f32.mrb[0].mxu0
      %2038 = vmatprep.mubr.bf16.mxu0 0
      %2039 = vmatmul.mubr.bf16.gmra.mrb[0].mxu0 %v1311
      %v2040 = vpop.f32.mrb[0].mxu0
      %v2041 = vadd.f32 %v473, %v2040
      %v2042 = vpop.f32.mrb[0].mxu0
      %v2043 = vpop.f32.mrb[0].mxu0
      %v2044 = vadd.f32 %v473, %v2043
      %v2045 = vpop.f32.mrb[0].mxu0
      %2046 = vmatprep.mubr.bf16.mxu0 0
      %2047 = vmatmul.mubr.bf16.gmra.mrb[0].mxu0 %v1314
      %v2048 = vpop.f32.mrb[0].mxu0
      %v2049 = vadd.f32 %v473, %v2048
      %v2050 = vpop.f32.mrb[0].mxu0
      %v2051 = vpop.f32.mrb[0].mxu0
      %v2052 = vadd.f32 %v473, %v2051
      %v2053 = vpop.f32.mrb[0].mxu0
      %2054 = vmatprep.mubr.bf16.mxu0 0
      %2055 = vmatmul.mubr.bf16.gmra.mrb[0].mxu0 %v1317
      %v2056 = vpop.f32.mrb[0].mxu0
      %v2057 = vadd.f32 %v473, %v2056
      %v2058 = vpop.f32.mrb[0].mxu0
      %v2059 = vpop.f32.mrb[0].mxu0
      %v2060 = vadd.f32 %v473, %v2059
      %v2061 = vpop.f32.mrb[0].mxu0
      %2062 = vmatprep.mubr.bf16.mxu0 0
      %2063 = vmatmul.mubr.bf16.gmra.mrb[0].mxu0 %v1320
      %v2064 = vpop.f32.mrb[0].mxu0
      %v2065 = vadd.f32 %v473, %v2064
      %v2066 = vpop.f32.mrb[0].mxu0
      %v2067 = vpop.f32.mrb[0].mxu0
      %v2068 = vadd.f32 %v473, %v2067
      %v2069 = vpop.f32.mrb[0].mxu0
      %2070 = vmatprep.mubr.bf16.mxu0 0
      %2071 = vmatmul.mubr.bf16.gmra.mrb[0].mxu0 %v1323
      %v2072 = vpop.f32.mrb[0].mxu0
      %v2073 = vadd.f32 %v473, %v2072
      %v2074 = vpop.f32.mrb[0].mxu0
      %v2075 = vpop.f32.mrb[0].mxu0
      %v2076 = vadd.f32 %v473, %v2075
      %v2077 = vpop.f32.mrb[0].mxu0
      %2078 = vmatprep.mubr.bf16.mxu0 0
      %2079 = vmatmul.mubr.bf16.gmra.mrb[0].mxu0 %v1326
      %v2080 = vpop.f32.mrb[0].mxu0
      %v2081 = vadd.f32 %v473, %v2080
      %v2082 = vpop.f32.mrb[0].mxu0
      %v2083 = vpop.f32.mrb[0].mxu0
      %v2084 = vadd.f32 %v473, %v2083
      %v2085 = vpop.f32.mrb[0].mxu0
      %2086 = vmatprep.mubr.bf16.mxu0 0
      %2087 = vmatmul.mubr.bf16.gmra.mrb[0].mxu0 %v1329
      %v2088 = vpop.f32.mrb[0].mxu0
      %v2089 = vadd.f32 %v473, %v2088
      %v2090 = vpop.f32.mrb[0].mxu0
      %v2091 = vpop.f32.mrb[0].mxu0
      %v2092 = vadd.f32 %v473, %v2091
      %v2093 = vpop.f32.mrb[0].mxu0
      %2094 = vmatprep.mubr.bf16.mxu0 0
      %2095 = vmatmul.mubr.bf16.gmra.mrb[0].mxu0 %v1332
      %v2096 = vpop.f32.mrb[0].mxu0
      %v2097 = vadd.f32 %v473, %v2096
      %v2098 = vpop.f32.mrb[0].mxu0
      %v2099 = vpop.f32.mrb[0].mxu0
      %v2100 = vadd.f32 %v473, %v2099
      %v2101 = vpop.f32.mrb[0].mxu0
      %2102 = vmatprep.mubr.bf16.mxu0 0
      %2103 = vmatmul.mubr.bf16.gmra.mrb[0].mxu0 %v1335
      %v2104 = vpop.f32.mrb[0].mxu0
      %v2105 = vadd.f32 %v473, %v2104
      %v2106 = vpop.f32.mrb[0].mxu0
      %v2107 = vpop.f32.mrb[0].mxu0
      %v2108 = vadd.f32 %v473, %v2107
      %v2109 = vpop.f32.mrb[0].mxu0
      %2110 = vmatprep.mubr.bf16.mxu0 0
      %2111 = vmatmul.mubr.bf16.gmra.mrb[0].mxu0 %v1338
      %v2112 = vpop.f32.mrb[0].mxu0
      %v2113 = vadd.f32 %v473, %v2112
      %v2114 = vpop.f32.mrb[0].mxu0
      %v2115 = vpop.f32.mrb[0].mxu0
      %v2116 = vadd.f32 %v473, %v2115
      %v2117 = vpop.f32.mrb[0].mxu0
      %2118 = vmatprep.mubr.bf16.mxu0 0
      %2119 = vmatmul.mubr.bf16.gmra.mrb[0].mxu0 %v1341
      %v2120 = vpop.f32.mrb[0].mxu0
      %v2121 = vadd.f32 %v473, %v2120
      %v2122 = vpop.f32.mrb[0].mxu0
      %v2123 = vpop.f32.mrb[0].mxu0
      %v2124 = vadd.f32 %v473, %v2123
      %v2125 = vpop.f32.mrb[0].mxu0
      %2126 = vmatprep.mubr.bf16.mxu0 0
      %2127 = vmatmul.mubr.bf16.gmra.mrb[0].mxu0 %v1344
      %v2128 = vpop.f32.mrb[0].mxu0
      %v2129 = vadd.f32 %v473, %v2128
      %v2130 = vpop.f32.mrb[0].mxu0
      %v2131 = vpop.f32.mrb[0].mxu0
      %v2132 = vadd.f32 %v473, %v2131
      %v2133 = vpop.f32.mrb[0].mxu0
      %2134 = vmatprep.mubr.bf16.mxu0 0
      %2135 = vmatmul.mubr.bf16.gmra.mrb[0].mxu0 %v1347
      %v2136 = vpop.f32.mrb[0].mxu0
      %v2137 = vadd.f32 %v473, %v2136
      %v2138 = vpop.f32.mrb[0].mxu0
      %v2139 = vpop.f32.mrb[0].mxu0
      %v2140 = vadd.f32 %v473, %v2139
      %v2141 = vpop.f32.mrb[0].mxu0
      %2142 = vmatprep.mubr.bf16.mxu0 0
      %2143 = vmatmul.mubr.bf16.gmra.mrb[0].mxu0 %v1350
      %v2144 = vpop.f32.mrb[0].mxu0
      %v2145 = vadd.f32 %v473, %v2144
      %v2146 = vpop.f32.mrb[0].mxu0
      %v2147 = vpop.f32.mrb[0].mxu0
      %v2148 = vadd.f32 %v473, %v2147
      %v2149 = vpop.f32.mrb[0].mxu0
      %2150 = vmatprep.mubr.bf16.mxu0 0
      %2151 = vmatmul.mubr.bf16.gmra.mrb[0].mxu0 %v1353
      %v2152 = vpop.f32.mrb[0].mxu0
      %v2153 = vadd.f32 %v473, %v2152
      %v2154 = vpop.f32.mrb[0].mxu0
      %v2155 = vpop.f32.mrb[0].mxu0
      %v2156 = vadd.f32 %v473, %v2155
      %v2157 = vpop.f32.mrb[0].mxu0
      %2158 = vmatprep.mubr.bf16.mxu0 0
      %2159 = vmatmul.mubr.bf16.gmra.mrb[0].mxu0 %v1356
      %v2160 = vpop.f32.mrb[0].mxu0
      %v2161 = vadd.f32 %v473, %v2160
      %v2162 = vpop.f32.mrb[0].mxu0
      %v2163 = vpop.f32.mrb[0].mxu0
      %v2164 = vadd.f32 %v473, %v2163
      %v2165 = vpop.f32.mrb[0].mxu0
      %2166 = vmatprep.mubr.bf16.mxu0 0
      %2167 = vmatmul.mubr.bf16.gmra.mrb[0].mxu0 %v1359
      %v2168 = vpop.f32.mrb[0].mxu0
      %v2169 = vadd.f32 %v473, %v2168
      %v2170 = vpop.f32.mrb[0].mxu0
      %v2171 = vpop.f32.mrb[0].mxu0
      %v2172 = vadd.f32 %v473, %v2171
      %v2173 = vpop.f32.mrb[0].mxu0
      %2174 = vmatprep.mubr.bf16.mxu0 0
      %2175 = vmatmul.mubr.bf16.gmra.mrb[0].mxu0 %v1362
      %v2176 = vpop.f32.mrb[0].mxu0
      %v2177 = vadd.f32 %v473, %v2176
      %v2178 = vpop.f32.mrb[0].mxu0
      %v2179 = vpop.f32.mrb[0].mxu0
      %v2180 = vadd.f32 %v473, %v2179
      %v2181 = vpop.f32.mrb[0].mxu0
      %2182 = vmatprep.mubr.bf16.mxu0 0
      %2183 = vmatmul.mubr.bf16.gmra.mrb[0].mxu0 %v1365
      %v2184 = vpop.f32.mrb[0].mxu0
      %v2185 = vadd.f32 %v473, %v2184
      %v2186 = vpop.f32.mrb[0].mxu0
      %v2187 = vpop.f32.mrb[0].mxu0
      %v2188 = vadd.f32 %v473, %v2187
      %v2189 = vpop.f32.mrb[0].mxu0
      %2190 = vmatprep.mubr.bf16.mxu0 0
      %2191 = vmatmul.mubr.bf16.gmra.mrb[0].mxu0 %v1368
      %v2192 = vpop.f32.mrb[0].mxu0
      %v2193 = vadd.f32 %v473, %v2192
      %v2194 = vpop.f32.mrb[0].mxu0
      %v2195 = vpop.f32.mrb[0].mxu0
      %v2196 = vadd.f32 %v473, %v2195
      %v2197 = vpop.f32.mrb[0].mxu0
      %2198 = vmatprep.mubr.bf16.mxu0 0
      %2199 = vmatmul.mubr.bf16.gmra.mrb[0].mxu0 %v1371
      %v2200 = vpop.f32.mrb[0].mxu0
      %v2201 = vadd.f32 %v473, %v2200
      %v2202 = vpop.f32.mrb[0].mxu0
      %v2203 = vpop.f32.mrb[0].mxu0
      %v2204 = vadd.f32 %v473, %v2203
      %v2205 = vpop.f32.mrb[0].mxu0
      %2206 = vmatprep.mubr.bf16.mxu0 0
      %2207 = vmatmul.mubr.bf16.gmra.mrb[0].mxu0 %v1374
      %v2208 = vpop.f32.mrb[0].mxu0
      %v2209 = vadd.f32 %v473, %v2208
      %v2210 = vpop.f32.mrb[0].mxu0
      %v2211 = vpop.f32.mrb[0].mxu0
      %v2212 = vadd.f32 %v473, %v2211
      %v2213 = vpop.f32.mrb[0].mxu0
      %2214 = vmatprep.mubr.bf16.mxu0 0
      %2215 = vmatmul.mubr.bf16.gmra.mrb[0].mxu0 %v1377
      %v2216 = vpop.f32.mrb[0].mxu0
      %v2217 = vadd.f32 %v473, %v2216
      %v2218 = vpop.f32.mrb[0].mxu0
      %v2219 = vpop.f32.mrb[0].mxu0
      %v2220 = vadd.f32 %v473, %v2219
      %v2221 = vpop.f32.mrb[0].mxu0
      %2222 = vmatprep.mubr.bf16.mxu0 0
      %2223 = vmatmul.mubr.bf16.gmra.mrb[0].mxu0 %v1380
      %v2224 = vpop.f32.mrb[0].mxu0
      %v2225 = vadd.f32 %v473, %v2224
      %v2226 = vpop.f32.mrb[0].mxu0
      %v2227 = vpop.f32.mrb[0].mxu0
      %v2228 = vadd.f32 %v473, %v2227
      %v2229 = vpop.f32.mrb[0].mxu0
      %2230 = vmatprep.mubr.bf16.mxu0 0
      %2231 = vmatmul.mubr.bf16.gmra.mrb[0].mxu0 %v1383
      %v2232 = vpop.f32.mrb[0].mxu0
      %v2233 = vadd.f32 %v473, %v2232
      %v2234 = vpop.f32.mrb[0].mxu0
      %v2235 = vpop.f32.mrb[0].mxu0
      %v2236 = vadd.f32 %v473, %v2235
      %v2237 = vpop.f32.mrb[0].mxu0
      %2238 = vmatprep.mubr.bf16.mxu0 0
      %2239 = vmatmul.mubr.bf16.gmra.mrb[0].mxu0 %v1386
      %v2240 = vpop.f32.mrb[0].mxu0
      %v2241 = vadd.f32 %v473, %v2240
      %v2242 = vpop.f32.mrb[0].mxu0
      %v2243 = vpop.f32.mrb[0].mxu0
      %v2244 = vadd.f32 %v473, %v2243
      %v2245 = vpop.f32.mrb[0].mxu0
      %2246 = vmatprep.mubr.bf16.mxu0 0
      %2247 = vmatmul.mubr.bf16.gmra.mrb[0].mxu0 %v1389
      %v2248 = vpop.f32.mrb[0].mxu0
      %v2249 = vadd.f32 %v473, %v2248
      %v2250 = vpop.f32.mrb[0].mxu0
      %v2251 = vpop.f32.mrb[0].mxu0
      %v2252 = vadd.f32 %v473, %v2251
      %v2253 = vpop.f32.mrb[0].mxu0
      %2254 = vmatprep.mubr.bf16.mxu0 0
      %2255 = vmatmul.mubr.bf16.gmra.mrb[0].mxu0 %v1392
      %v2256 = vpop.f32.mrb[0].mxu0
      %v2257 = vadd.f32 %v473, %v2256
      %v2258 = vpop.f32.mrb[0].mxu0
      %v2259 = vpop.f32.mrb[0].mxu0
      %v2260 = vadd.f32 %v473, %v2259
      %v2261 = vpop.f32.mrb[0].mxu0
      %2262 = vmatprep.mubr.bf16.mxu0 0
      %2263 = vmatmul.mubr.bf16.gmra.mrb[0].mxu0 %v1395
      %v2264 = vpop.f32.mrb[0].mxu0
      %v2265 = vadd.f32 %v473, %v2264
      %v2266 = vpop.f32.mrb[0].mxu0
      %v2267 = vpop.f32.mrb[0].mxu0
      %v2268 = vadd.f32 %v473, %v2267
      %v2269 = vpop.f32.mrb[0].mxu0
      %2270 = vmatprep.mubr.bf16.mxu0 0
      %2271 = vmatmul.mubr.bf16.gmra.mrb[0].mxu0 %v1398
      %v2272 = vpop.f32.mrb[0].mxu0
      %v2273 = vadd.f32 %v473, %v2272
      %v2274 = vpop.f32.mrb[0].mxu0
      %v2275 = vpop.f32.mrb[0].mxu0
      %v2276 = vadd.f32 %v473, %v2275
      %v2277 = vpop.f32.mrb[0].mxu0
      %2278 = vmatprep.mubr.bf16.mxu0 0
      %2279 = vmatmul.mubr.bf16.gmra.mrb[0].mxu0 %v1401
      %v2280 = vpop.f32.mrb[0].mxu0
      %v2281 = vadd.f32 %v473, %v2280
      %v2282 = vpop.f32.mrb[0].mxu0
      %v2283 = vpop.f32.mrb[0].mxu0
      %v2284 = vadd.f32 %v473, %v2283
      %v2285 = vpop.f32.mrb[0].mxu0
      %2286 = vmatprep.mubr.bf16.mxu0 0
      %2287 = vmatmul.mubr.bf16.gmra.mrb[0].mxu0 %v1404
      %v2288 = vpop.f32.mrb[0].mxu0
      %v2289 = vadd.f32 %v473, %v2288
      %v2290 = vpop.f32.mrb[0].mxu0
      %v2291 = vpop.f32.mrb[0].mxu0
      %v2292 = vadd.f32 %v473, %v2291
      %v2293 = vpop.f32.mrb[0].mxu0
      %2294 = vmatprep.mubr.bf16.mxu0 0
      %2295 = vmatmul.mubr.bf16.gmra.mrb[0].mxu0 %v1407
      %v2296 = vpop.f32.mrb[0].mxu0
      %v2297 = vadd.f32 %v473, %v2296
      %v2298 = vpop.f32.mrb[0].mxu0
      %v2299 = vpop.f32.mrb[0].mxu0
      %v2300 = vadd.f32 %v473, %v2299
      %v2301 = vpop.f32.mrb[0].mxu0
      %2302 = vmatprep.mubr.bf16.mxu0 0
      %2303 = vmatmul.mubr.bf16.gmra.mrb[0].mxu0 %v1410
      %v2304 = vpop.f32.mrb[0].mxu0
      %v2305 = vadd.f32 %v473, %v2304
      %v2306 = vpop.f32.mrb[0].mxu0
      %v2307 = vpop.f32.mrb[0].mxu0
      %v2308 = vadd.f32 %v473, %v2307
      %v2309 = vpop.f32.mrb[0].mxu0
      %2310 = vmatprep.mubr.bf16.mxu0 0
      %2311 = vmatmul.mubr.bf16.gmra.mrb[0].mxu0 %v1413
      %v2312 = vpop.f32.mrb[0].mxu0
      %v2313 = vadd.f32 %v473, %v2312
      %v2314 = vpop.f32.mrb[0].mxu0
      %v2315 = vpop.f32.mrb[0].mxu0
      %v2316 = vadd.f32 %v473, %v2315
      %v2317 = vpop.f32.mrb[0].mxu0
      %2318 = vmatprep.mubr.bf16.mxu0 0
      %2319 = vmatmul.mubr.bf16.gmra.mrb[0].mxu0 %v1416
      %v2320 = vpop.f32.mrb[0].mxu0
      %v2321 = vadd.f32 %v473, %v2320
      %v2322 = vpop.f32.mrb[0].mxu0
      %v2323 = vpop.f32.mrb[0].mxu0
      %v2324 = vadd.f32 %v473, %v2323
      %v2325 = vpop.f32.mrb[0].mxu0
      %2326 = vmatprep.mubr.bf16.mxu0 0
      %2327 = vmatmul.mubr.bf16.gmra.mrb[0].mxu0 %v1419
      %v2328 = vpop.f32.mrb[0].mxu0
      %v2329 = vadd.f32 %v473, %v2328
      %v2330 = vpop.f32.mrb[0].mxu0
      %v2331 = vpop.f32.mrb[0].mxu0
      %v2332 = vadd.f32 %v473, %v2331
      %v2333 = vpop.f32.mrb[0].mxu0
      %2334 = vmatprep.mubr.bf16.mxu0 0
      %2335 = vmatmul.mubr.bf16.gmra.mrb[0].mxu0 %v1422
      %v2336 = vpop.f32.mrb[0].mxu0
      %v2337 = vadd.f32 %v473, %v2336
      %v2338 = vpop.f32.mrb[0].mxu0
      %v2339 = vpop.f32.mrb[0].mxu0
      %v2340 = vadd.f32 %v473, %v2339
      %v2341 = vpop.f32.mrb[0].mxu0
      %2342 = vmatprep.mubr.bf16.mxu0 0
      %2343 = vmatmul.mubr.bf16.gmra.mrb[0].mxu0 %v1425
      %v2344 = vpop.f32.mrb[0].mxu0
      %v2345 = vadd.f32 %v473, %v2344
      %v2346 = vpop.f32.mrb[0].mxu0
      %v2347 = vpop.f32.mrb[0].mxu0
      %v2348 = vadd.f32 %v473, %v2347
      %v2349 = vpop.f32.mrb[0].mxu0
      %2350 = vmatprep.mubr.bf16.mxu0 0
      %2351 = vmatmul.mubr.bf16.gmra.mrb[0].mxu0 %v1428
      %v2352 = vpop.f32.mrb[0].mxu0
      %v2353 = vadd.f32 %v473, %v2352
      %v2354 = vpop.f32.mrb[0].mxu0
      %v2355 = vpop.f32.mrb[0].mxu0
      %v2356 = vadd.f32 %v473, %v2355
      %v2357 = vpop.f32.mrb[0].mxu0
      %2358 = vmatprep.mubr.bf16.mxu0 0
      %2359 = vmatmul.mubr.bf16.gmra.mrb[0].mxu0 %v1431
      %v2360 = vpop.f32.mrb[0].mxu0
      %v2361 = vadd.f32 %v473, %v2360
      %v2362 = vpop.f32.mrb[0].mxu0
      %v2363 = vpop.f32.mrb[0].mxu0
      %v2364 = vadd.f32 %v473, %v2363
      %v2365 = vpop.f32.mrb[0].mxu0
      %2366 = vmatprep.mubr.bf16.mxu0 0
      %2367 = vmatmul.mubr.bf16.gmra.mrb[0].mxu0 %v1434
      %v2368 = vpop.f32.mrb[0].mxu0
      %v2369 = vadd.f32 %v473, %v2368
      %v2370 = vpop.f32.mrb[0].mxu0
      %v2371 = vpop.f32.mrb[0].mxu0
      %v2372 = vadd.f32 %v473, %v2371
      %v2373 = vpop.f32.mrb[0].mxu0
      %2374 = vmatprep.mubr.bf16.mxu0 0
      %2375 = vmatmul.mubr.bf16.gmra.mrb[0].mxu0 %v1437
      %v2376 = vpop.f32.mrb[0].mxu0
      %v2377 = vadd.f32 %v473, %v2376
      %v2378 = vpop.f32.mrb[0].mxu0
      %v2379 = vpop.f32.mrb[0].mxu0
      %v2380 = vadd.f32 %v473, %v2379
      %v2381 = vpop.f32.mrb[0].mxu0
      %2382 = vmatprep.mubr.bf16.mxu0 0
      %2383 = vmatmul.mubr.bf16.gmra.mrb[0].mxu0 %v1440
      %v2384 = vpop.f32.mrb[0].mxu0
      %v2385 = vadd.f32 %v473, %v2384
      %v2386 = vpop.f32.mrb[0].mxu0
      %v2387 = vpop.f32.mrb[0].mxu0
      %v2388 = vadd.f32 %v473, %v2387
      %v2389 = vpop.f32.mrb[0].mxu0
      %2390 = vmatprep.mubr.bf16.mxu0 0
      %2391 = vmatmul.mubr.bf16.gmra.mrb[0].mxu0 %v1443
      %v2392 = vpop.f32.mrb[0].mxu0
      %v2393 = vadd.f32 %v473, %v2392
      %v2394 = vpop.f32.mrb[0].mxu0
      %v2395 = vpop.f32.mrb[0].mxu0
      %v2396 = vadd.f32 %v473, %v2395
      %v2397 = vpop.f32.mrb[0].mxu0
      %2398 = vmatprep.mubr.bf16.mxu0 0
      %2399 = vmatmul.mubr.bf16.gmra.mrb[0].mxu0 %v1446
      %v2400 = vpop.f32.mrb[0].mxu0
      %v2401 = vadd.f32 %v473, %v2400
      %v2402 = vpop.f32.mrb[0].mxu0
      %v2403 = vpop.f32.mrb[0].mxu0
      %v2404 = vadd.f32 %v473, %v2403
      %v2405 = vpop.f32.mrb[0].mxu0
      %2406 = vmatprep.mubr.bf16.mxu0 0
      %2407 = vmatmul.mubr.bf16.gmra.mrb[0].mxu0 %v1449
      %v2408 = vpop.f32.mrb[0].mxu0
      %v2409 = vadd.f32 %v473, %v2408
      %v2410 = vpop.f32.mrb[0].mxu0
      %v2411 = vpop.f32.mrb[0].mxu0
      %v2412 = vadd.f32 %v473, %v2411
      %v2413 = vpop.f32.mrb[0].mxu0
      %2414 = vmatprep.mubr.bf16.mxu0 0
      %2415 = vmatmul.mubr.bf16.gmra.mrb[0].mxu0 %v1452
      %v2416 = vpop.f32.mrb[0].mxu0
      %v2417 = vadd.f32 %v473, %v2416
      %v2418 = vpop.f32.mrb[0].mxu0
      %v2419 = vpop.f32.mrb[0].mxu0
      %v2420 = vadd.f32 %v473, %v2419
      %v2421 = vpop.f32.mrb[0].mxu0
      %2422 = vmatprep.mubr.bf16.mxu0 0
      %2423 = vmatmul.mubr.bf16.gmra.mrb[0].mxu0 %v1455
      %v2424 = vpop.f32.mrb[0].mxu0
      %v2425 = vadd.f32 %v473, %v2424
      %v2426 = vpop.f32.mrb[0].mxu0
      %v2427 = vpop.f32.mrb[0].mxu0
      %v2428 = vadd.f32 %v473, %v2427
      %v2429 = vpop.f32.mrb[0].mxu0
      %2430 = vmatprep.mubr.bf16.mxu0 0
      %2431 = vmatmul.mubr.bf16.gmra.mrb[0].mxu0 %v1458
      %v2432 = vpop.f32.mrb[0].mxu0
      %v2433 = vadd.f32 %v473, %v2432
      %v2434 = vpop.f32.mrb[0].mxu0
      %v2435 = vpop.f32.mrb[0].mxu0
      %v2436 = vadd.f32 %v473, %v2435
      %v2437 = vpop.f32.mrb[0].mxu0
      %2438 = vmatprep.mubr.bf16.mxu0 0
      %2439 = vmatmul.mubr.bf16.gmra.mrb[0].mxu0 %v1461
      %v2440 = vpop.f32.mrb[0].mxu0
      %v2441 = vadd.f32 %v473, %v2440
      %v2442 = vpop.f32.mrb[0].mxu0
      %v2443 = vpop.f32.mrb[0].mxu0
      %v2444 = vadd.f32 %v473, %v2443
      %v2445 = vpop.f32.mrb[0].mxu0
      %2446 = vmatprep.mubr.bf16.mxu0 0
      %2447 = vmatmul.mubr.bf16.gmra.mrb[0].mxu0 %v1464
      %v2448 = vpop.f32.mrb[0].mxu0
      %v2449 = vadd.f32 %v473, %v2448
      %v2450 = vpop.f32.mrb[0].mxu0
      %v2451 = vpop.f32.mrb[0].mxu0
      %v2452 = vadd.f32 %v473, %v2451
      %v2453 = vpop.f32.mrb[0].mxu0
      %2454 = vmatprep.mubr.bf16.mxu0 0
      %2455 = vmatmul.mubr.bf16.gmra.mrb[0].mxu0 %v1467
      %v2456 = vpop.f32.mrb[0].mxu0
      %v2457 = vadd.f32 %v473, %v2456
      %v2458 = vpop.f32.mrb[0].mxu0
      %v2459 = vpop.f32.mrb[0].mxu0
      %v2460 = vadd.f32 %v473, %v2459
      %v2461 = vpop.f32.mrb[0].mxu0
      %2462 = vmatprep.mubr.bf16.mxu0 0
      %2463 = vmatmul.mubr.bf16.gmra.mrb[0].mxu0 %v1470
      %v2464 = vpop.f32.mrb[0].mxu0
      %v2465 = vadd.f32 %v473, %v2464
      %v2466 = vpop.f32.mrb[0].mxu0
      %v2467 = vpop.f32.mrb[0].mxu0
      %v2468 = vadd.f32 %v473, %v2467
      %v2469 = vpop.f32.mrb[0].mxu0
      %2470 = vmatprep.mubr.bf16.mxu0 0
      %2471 = vmatmul.mubr.bf16.gmra.mrb[0].mxu0 %v1473
      %v2472 = vpop.f32.mrb[0].mxu0
      %v2473 = vadd.f32 %v473, %v2472
      %v2474 = vpop.f32.mrb[0].mxu0
      %v2475 = vpop.f32.mrb[0].mxu0
      %v2476 = vadd.f32 %v473, %v2475
      %v2477 = vpop.f32.mrb[0].mxu0
      %2478 = vmatprep.mubr.bf16.mxu0 0
      %2479 = vmatmul.mubr.bf16.gmra.mrb[0].mxu0 %v1476
      %v2480 = vpop.f32.mrb[0].mxu0
      %v2481 = vadd.f32 %v473, %v2480
      %v2482 = vpop.f32.mrb[0].mxu0
      %v2483 = vpop.f32.mrb[0].mxu0
      %v2484 = vadd.f32 %v473, %v2483
      %v2485 = vpop.f32.mrb[0].mxu0
      %2486 = vmatprep.mubr.bf16.mxu0 0
      %2487 = vmatmul.mubr.bf16.gmra.mrb[0].mxu0 %v1479
      %v2488 = vpop.f32.mrb[0].mxu0
      %v2489 = vadd.f32 %v473, %v2488
      %v2490 = vpop.f32.mrb[0].mxu0
      %v2491 = vpop.f32.mrb[0].mxu0
      %v2492 = vadd.f32 %v473, %v2491
      %v2493 = vpop.f32.mrb[0].mxu0
      %2494 = vmatprep.mubr.bf16.mxu0 0
      %2495 = vmatmul.mubr.bf16.gmra.mrb[0].mxu0 %v1482
      %v2496 = vpop.f32.mrb[0].mxu0
      %v2497 = vadd.f32 %v473, %v2496
      %v2498 = vpop.f32.mrb[0].mxu0
      %v2499 = vpop.f32.mrb[0].mxu0
      %v2500 = vadd.f32 %v473, %v2499
      %v2501 = vpop.f32.mrb[0].mxu0
      %2502 = vmatprep.mubr.bf16.mxu0 0
      %2503 = vmatmul.mubr.bf16.gmra.mrb[0].mxu0 %v1485
      %v2504 = vpop.f32.mrb[0].mxu0
      %v2505 = vadd.f32 %v473, %v2504
      %v2506 = vpop.f32.mrb[0].mxu0
      %v2507 = vpop.f32.mrb[0].mxu0
      %v2508 = vadd.f32 %v473, %v2507
      %v2509 = vpop.f32.mrb[0].mxu0
      %2510 = vmatprep.mubr.bf16.mxu0 0
      %2511 = vmatmul.mubr.bf16.gmra.mrb[0].mxu0 %v1488
      %v2512 = vpop.f32.mrb[0].mxu0
      %v2513 = vadd.f32 %v473, %v2512
      %v2514 = vpop.f32.mrb[0].mxu0
      %v2515 = vpop.f32.mrb[0].mxu0
      %v2516 = vadd.f32 %v473, %v2515
      %v2517 = vpop.f32.mrb[0].mxu0
      %2518 = vmatprep.mubr.bf16.mxu0 0
      %2519 = vmatmul.mubr.bf16.gmra.mrb[0].mxu0 %v1491
      %v2520 = vpop.f32.mrb[0].mxu0
      %v2521 = vadd.f32 %v473, %v2520
      %v2522 = vpop.f32.mrb[0].mxu0
      %v2523 = vpop.f32.mrb[0].mxu0
      %v2524 = vadd.f32 %v473, %v2523
      %v2525 = vpop.f32.mrb[0].mxu0
      %2526 = vmatprep.mubr.bf16.mxu0 0
      %2527 = vmatmul.mubr.bf16.gmra.mrb[0].mxu0 %v1494
      %v2528 = vpop.f32.mrb[0].mxu0
      %v2529 = vadd.f32 %v473, %v2528
      %v2530 = vpop.f32.mrb[0].mxu0
      %v2531 = vpop.f32.mrb[0].mxu0
      %v2532 = vadd.f32 %v473, %v2531
      %v2533 = vpop.f32.mrb[0].mxu0
      %2534 = vmatprep.mubr.bf16.mxu0 0
      %2535 = vmatmul.mubr.bf16.gmra.mrb[0].mxu0 %v1497
      %v2536 = vpop.f32.mrb[0].mxu0
      %v2537 = vadd.f32 %v473, %v2536
      %v2538 = vpop.f32.mrb[0].mxu0
      %v2539 = vpop.f32.mrb[0].mxu0
      %v2540 = vadd.f32 %v473, %v2539
      %v2541 = vpop.f32.mrb[0].mxu0
      %2542 = vmatprep.mubr.bf16.mxu0 0
      %2543 = vmatmul.mubr.bf16.gmra.mrb[0].mxu0 %v1500
      %v2544 = vpop.f32.mrb[0].mxu0
      %v2545 = vadd.f32 %v473, %v2544
      %v2546 = vpop.f32.mrb[0].mxu0
      %v2547 = vpop.f32.mrb[0].mxu0
      %v2548 = vadd.f32 %v473, %v2547
      %v2549 = vpop.f32.mrb[0].mxu0
      %2550 = vmatprep.mubr.bf16.mxu0 0
      %2551 = vmatmul.mubr.bf16.gmra.mrb[0].mxu0 %v1503
      %v2552 = vpop.f32.mrb[0].mxu0
      %v2553 = vadd.f32 %v473, %v2552
      %v2554 = vpop.f32.mrb[0].mxu0
      %v2555 = vpop.f32.mrb[0].mxu0
      %v2556 = vadd.f32 %v473, %v2555
      %v2557 = vpop.f32.mrb[0].mxu0
      %2558 = vmatprep.mubr.bf16.mxu0 0
      %2559 = vmatmul.mubr.bf16.gmra.mrb[0].mxu0 %v1506
      %v2560 = vpop.f32.mrb[0].mxu0
      %v2561 = vadd.f32 %v473, %v2560
      %v2562 = vpop.f32.mrb[0].mxu0
      %v2563 = vpop.f32.mrb[0].mxu0
      %v2564 = vadd.f32 %v473, %v2563
      %v2565 = vpop.f32.mrb[0].mxu0
      %2566 = vmatprep.mubr.bf16.mxu0 0
      %2567 = vmatmul.mubr.bf16.gmra.mrb[0].mxu0 %v1509
      %v2568 = vpop.f32.mrb[0].mxu0
      %v2569 = vadd.f32 %v473, %v2568
      %v2570 = vpop.f32.mrb[0].mxu0
      %v2571 = vpop.f32.mrb[0].mxu0
      %v2572 = vadd.f32 %v473, %v2571
      %v2573 = vpop.f32.mrb[0].mxu0
      %2574 = vdwg.mxu0
      %v2575 = vmax.f32 %v1553, 0.0
      %v2576 = vmax.f32 %v1556, 0.0
      %v2577 = vmax.f32 %v1561, 0.0
      %v2578 = vmax.f32 %v1564, 0.0
      %v2579 = vmax.f32 %v1569, 0.0
      %v2580 = vmax.f32 %v1572, 0.0
      %v2581 = vmax.f32 %v1577, 0.0
      %v2582 = vmax.f32 %v1580, 0.0
      %v2583 = vmax.f32 %v1585, 0.0
      %v2584 = vmax.f32 %v1588, 0.0
      %v2585 = vmax.f32 %v1593, 0.0
      %v2586 = vmax.f32 %v1596, 0.0
      %v2587 = vmax.f32 %v1601, 0.0
      %v2588 = vmax.f32 %v1604, 0.0
      %v2589 = vmax.f32 %v1609, 0.0
      %v2590 = vmax.f32 %v1612, 0.0
      %v2591 = vmax.f32 %v1617, 0.0
      %v2592 = vmax.f32 %v1620, 0.0
      %v2593 = vmax.f32 %v1625, 0.0
      %v2594 = vmax.f32 %v1628, 0.0
      %v2595 = vmax.f32 %v1633, 0.0
      %v2596 = vmax.f32 %v1636, 0.0
      %v2597 = vmax.f32 %v1641, 0.0
      %v2598 = vmax.f32 %v1644, 0.0
      %v2599 = vmax.f32 %v1649, 0.0
      %v2600 = vmax.f32 %v1652, 0.0
      %v2601 = vmax.f32 %v1657, 0.0
      %v2602 = vmax.f32 %v1660, 0.0
      %v2603 = vmax.f32 %v1665, 0.0
      %v2604 = vmax.f32 %v1668, 0.0
      %v2605 = vmax.f32 %v1673, 0.0
      %v2606 = vmax.f32 %v1676, 0.0
      %v2607 = vmax.f32 %v1681, 0.0
      %v2608 = vmax.f32 %v1684, 0.0
      %v2609 = vmax.f32 %v1689, 0.0
      %v2610 = vmax.f32 %v1692, 0.0
      %v2611 = vmax.f32 %v1697, 0.0
      %v2612 = vmax.f32 %v1700, 0.0
      %v2613 = vmax.f32 %v1705, 0.0
      %v2614 = vmax.f32 %v1708, 0.0
      %v2615 = vmax.f32 %v1713, 0.0
      %v2616 = vmax.f32 %v1716, 0.0
      %v2617 = vmax.f32 %v1721, 0.0
      %v2618 = vmax.f32 %v1724, 0.0
      %v2619 = vmax.f32 %v1729, 0.0
      %v2620 = vmax.f32 %v1732, 0.0
      %v2621 = vmax.f32 %v1737, 0.0
      %v2622 = vmax.f32 %v1740, 0.0
      %v2623 = vmax.f32 %v1745, 0.0
      %v2624 = vmax.f32 %v1748, 0.0
      %v2625 = vmax.f32 %v1753, 0.0
      %v2626 = vmax.f32 %v1756, 0.0
      %v2627 = vmax.f32 %v1761, 0.0
      %v2628 = vmax.f32 %v1764, 0.0
      %v2629 = vmax.f32 %v1769, 0.0
      %v2630 = vmax.f32 %v1772, 0.0
      %v2631 = vmax.f32 %v1777, 0.0
      %v2632 = vmax.f32 %v1780, 0.0
      %v2633 = vmax.f32 %v1785, 0.0
      %v2634 = vmax.f32 %v1788, 0.0
      %v2635 = vmax.f32 %v1793, 0.0
      %v2636 = vmax.f32 %v1796, 0.0
      %v2637 = vmax.f32 %v1801, 0.0
      %v2638 = vmax.f32 %v1804, 0.0
      %v2639 = vmax.f32 %v1809, 0.0
      %v2640 = vmax.f32 %v1812, 0.0
      %v2641 = vmax.f32 %v1817, 0.0
      %v2642 = vmax.f32 %v1820, 0.0
      %v2643 = vmax.f32 %v1825, 0.0
      %v2644 = vmax.f32 %v1828, 0.0
      %v2645 = vmax.f32 %v1833, 0.0
      %v2646 = vmax.f32 %v1836, 0.0
      %v2647 = vmax.f32 %v1841, 0.0
      %v2648 = vmax.f32 %v1844, 0.0
      %v2649 = vmax.f32 %v1849, 0.0
      %v2650 = vmax.f32 %v1852, 0.0
      %v2651 = vmax.f32 %v1857, 0.0
      %v2652 = vmax.f32 %v1860, 0.0
      %v2653 = vmax.f32 %v1865, 0.0
      %v2654 = vmax.f32 %v1868, 0.0
      %v2655 = vmax.f32 %v1873, 0.0
      %v2656 = vmax.f32 %v1876, 0.0
      %v2657 = vmax.f32 %v1881, 0.0
      %v2658 = vmax.f32 %v1884, 0.0
      %v2659 = vmax.f32 %v1889, 0.0
      %v2660 = vmax.f32 %v1892, 0.0
      %v2661 = vmax.f32 %v1897, 0.0
      %v2662 = vmax.f32 %v1900, 0.0
      %v2663 = vmax.f32 %v1905, 0.0
      %v2664 = vmax.f32 %v1908, 0.0
      %v2665 = vmax.f32 %v1913, 0.0
      %v2666 = vmax.f32 %v1916, 0.0
      %v2667 = vmax.f32 %v1921, 0.0
      %v2668 = vmax.f32 %v1924, 0.0
      %v2669 = vmax.f32 %v1929, 0.0
      %v2670 = vmax.f32 %v1932, 0.0
      %v2671 = vmax.f32 %v1937, 0.0
      %v2672 = vmax.f32 %v1940, 0.0
      %v2673 = vmax.f32 %v1945, 0.0
      %v2674 = vmax.f32 %v1948, 0.0
      %v2675 = vmax.f32 %v1953, 0.0
      %v2676 = vmax.f32 %v1956, 0.0
      %v2677 = vmax.f32 %v1961, 0.0
      %v2678 = vmax.f32 %v1964, 0.0
      %v2679 = vmax.f32 %v1969, 0.0
      %v2680 = vmax.f32 %v1972, 0.0
      %v2681 = vmax.f32 %v1977, 0.0
      %v2682 = vmax.f32 %v1980, 0.0
      %v2683 = vmax.f32 %v1985, 0.0
      %v2684 = vmax.f32 %v1988, 0.0
      %v2685 = vmax.f32 %v1993, 0.0
      %v2686 = vmax.f32 %v1996, 0.0
      %v2687 = vmax.f32 %v2001, 0.0
      %v2688 = vmax.f32 %v2004, 0.0
      %v2689 = vmax.f32 %v2009, 0.0
      %v2690 = vmax.f32 %v2012, 0.0
      %v2691 = vmax.f32 %v2017, 0.0
      %v2692 = vmax.f32 %v2020, 0.0
      %v2693 = vmax.f32 %v2025, 0.0
      %v2694 = vmax.f32 %v2028, 0.0
      %v2695 = vmax.f32 %v2033, 0.0
      %v2696 = vmax.f32 %v2036, 0.0
      %v2697 = vmax.f32 %v2041, 0.0
      %v2698 = vmax.f32 %v2044, 0.0
      %v2699 = vmax.f32 %v2049, 0.0
      %v2700 = vmax.f32 %v2052, 0.0
      %v2701 = vmax.f32 %v2057, 0.0
      %v2702 = vmax.f32 %v2060, 0.0
      %v2703 = vmax.f32 %v2065, 0.0
      %v2704 = vmax.f32 %v2068, 0.0
      %v2705 = vmax.f32 %v2073, 0.0
      %v2706 = vmax.f32 %v2076, 0.0
      %v2707 = vmax.f32 %v2081, 0.0
      %v2708 = vmax.f32 %v2084, 0.0
      %v2709 = vmax.f32 %v2089, 0.0
      %v2710 = vmax.f32 %v2092, 0.0
      %v2711 = vmax.f32 %v2097, 0.0
      %v2712 = vmax.f32 %v2100, 0.0
      %v2713 = vmax.f32 %v2105, 0.0
      %v2714 = vmax.f32 %v2108, 0.0
      %v2715 = vmax.f32 %v2113, 0.0
      %v2716 = vmax.f32 %v2116, 0.0
      %v2717 = vmax.f32 %v2121, 0.0
      %v2718 = vmax.f32 %v2124, 0.0
      %v2719 = vmax.f32 %v2129, 0.0
      %v2720 = vmax.f32 %v2132, 0.0
      %v2721 = vmax.f32 %v2137, 0.0
      %v2722 = vmax.f32 %v2140, 0.0
      %v2723 = vmax.f32 %v2145, 0.0
      %v2724 = vmax.f32 %v2148, 0.0
      %v2725 = vmax.f32 %v2153, 0.0
      %v2726 = vmax.f32 %v2156, 0.0
      %v2727 = vmax.f32 %v2161, 0.0
      %v2728 = vmax.f32 %v2164, 0.0
      %v2729 = vmax.f32 %v2169, 0.0
      %v2730 = vmax.f32 %v2172, 0.0
      %v2731 = vmax.f32 %v2177, 0.0
      %v2732 = vmax.f32 %v2180, 0.0
      %v2733 = vmax.f32 %v2185, 0.0
      %v2734 = vmax.f32 %v2188, 0.0
      %v2735 = vmax.f32 %v2193, 0.0
      %v2736 = vmax.f32 %v2196, 0.0
      %v2737 = vmax.f32 %v2201, 0.0
      %v2738 = vmax.f32 %v2204, 0.0
      %v2739 = vmax.f32 %v2209, 0.0
      %v2740 = vmax.f32 %v2212, 0.0
      %v2741 = vmax.f32 %v2217, 0.0
      %v2742 = vmax.f32 %v2220, 0.0
      %v2743 = vmax.f32 %v2225, 0.0
      %v2744 = vmax.f32 %v2228, 0.0
      %v2745 = vmax.f32 %v2233, 0.0
      %v2746 = vmax.f32 %v2236, 0.0
      %v2747 = vmax.f32 %v2241, 0.0
      %v2748 = vmax.f32 %v2244, 0.0
      %v2749 = vmax.f32 %v2249, 0.0
      %v2750 = vmax.f32 %v2252, 0.0
      %v2751 = vmax.f32 %v2257, 0.0
      %v2752 = vmax.f32 %v2260, 0.0
      %v2753 = vmax.f32 %v2265, 0.0
      %v2754 = vmax.f32 %v2268, 0.0
      %v2755 = vmax.f32 %v2273, 0.0
      %v2756 = vmax.f32 %v2276, 0.0
      %v2757 = vmax.f32 %v2281, 0.0
      %v2758 = vmax.f32 %v2284, 0.0
      %v2759 = vmax.f32 %v2289, 0.0
      %v2760 = vmax.f32 %v2292, 0.0
      %v2761 = vmax.f32 %v2297, 0.0
      %v2762 = vmax.f32 %v2300, 0.0
      %v2763 = vmax.f32 %v2305, 0.0
      %v2764 = vmax.f32 %v2308, 0.0
      %v2765 = vmax.f32 %v2313, 0.0
      %v2766 = vmax.f32 %v2316, 0.0
      %v2767 = vmax.f32 %v2321, 0.0
      %v2768 = vmax.f32 %v2324, 0.0
      %v2769 = vmax.f32 %v2329, 0.0
      %v2770 = vmax.f32 %v2332, 0.0
      %v2771 = vmax.f32 %v2337, 0.0
      %v2772 = vmax.f32 %v2340, 0.0
      %v2773 = vmax.f32 %v2345, 0.0
      %v2774 = vmax.f32 %v2348, 0.0
      %v2775 = vmax.f32 %v2353, 0.0
      %v2776 = vmax.f32 %v2356, 0.0
      %v2777 = vmax.f32 %v2361, 0.0
      %v2778 = vmax.f32 %v2364, 0.0
      %v2779 = vmax.f32 %v2369, 0.0
      %v2780 = vmax.f32 %v2372, 0.0
      %v2781 = vmax.f32 %v2377, 0.0
      %v2782 = vmax.f32 %v2380, 0.0
      %v2783 = vmax.f32 %v2385, 0.0
      %v2784 = vmax.f32 %v2388, 0.0
      %v2785 = vmax.f32 %v2393, 0.0
      %v2786 = vmax.f32 %v2396, 0.0
      %v2787 = vmax.f32 %v2401, 0.0
      %v2788 = vmax.f32 %v2404, 0.0
      %v2789 = vmax.f32 %v2409, 0.0
      %v2790 = vmax.f32 %v2412, 0.0
      %v2791 = vmax.f32 %v2417, 0.0
      %v2792 = vmax.f32 %v2420, 0.0
      %v2793 = vmax.f32 %v2425, 0.0
      %v2794 = vmax.f32 %v2428, 0.0
      %v2795 = vmax.f32 %v2433, 0.0
      %v2796 = vmax.f32 %v2436, 0.0
      %v2797 = vmax.f32 %v2441, 0.0
      %v2798 = vmax.f32 %v2444, 0.0
      %v2799 = vmax.f32 %v2449, 0.0
      %v2800 = vmax.f32 %v2452, 0.0
      %v2801 = vmax.f32 %v2457, 0.0
      %v2802 = vmax.f32 %v2460, 0.0
      %v2803 = vmax.f32 %v2465, 0.0
      %v2804 = vmax.f32 %v2468, 0.0
      %v2805 = vmax.f32 %v2473, 0.0
      %v2806 = vmax.f32 %v2476, 0.0
      %v2807 = vmax.f32 %v2481, 0.0
      %v2808 = vmax.f32 %v2484, 0.0
      %v2809 = vmax.f32 %v2489, 0.0
      %v2810 = vmax.f32 %v2492, 0.0
      %v2811 = vmax.f32 %v2497, 0.0
      %v2812 = vmax.f32 %v2500, 0.0
      %v2813 = vmax.f32 %v2505, 0.0
      %v2814 = vmax.f32 %v2508, 0.0
      %v2815 = vmax.f32 %v2513, 0.0
      %v2816 = vmax.f32 %v2516, 0.0
      %v2817 = vmax.f32 %v2521, 0.0
      %v2818 = vmax.f32 %v2524, 0.0
      %v2819 = vmax.f32 %v2529, 0.0
      %v2820 = vmax.f32 %v2532, 0.0
      %v2821 = vmax.f32 %v2537, 0.0
      %v2822 = vmax.f32 %v2540, 0.0
      %v2823 = vmax.f32 %v2545, 0.0
      %v2824 = vmax.f32 %v2548, 0.0
      %v2825 = vmax.f32 %v2553, 0.0
      %v2826 = vmax.f32 %v2556, 0.0
      %v2827 = vmax.f32 %v2561, 0.0
      %v2828 = vmax.f32 %v2564, 0.0
      %v2829 = vmax.f32 %v2569, 0.0
      %v2830 = vmax.f32 %v2572, 0.0
      %v2831 = vld [vmem:[#allocation2] sm:$0xff]
      %v2832 = vadd.f32 %v2575, %v2576
      %v2833 = vadd.f32 %v2832, %v2577
      %v2834 = vadd.f32 %v2833, %v2578
      %v2835 = vadd.f32 %v2834, %v2579
      %v2836 = vadd.f32 %v2835, %v2580
      %v2837 = vadd.f32 %v2836, %v2581
      %v2838 = vadd.f32 %v2837, %v2582
      %v2839 = vadd.f32 %v2838, %v2583
      %v2840 = vadd.f32 %v2839, %v2584
      %v2841 = vadd.f32 %v2840, %v2585
      %v2842 = vadd.f32 %v2841, %v2586
      %v2843 = vadd.f32 %v2842, %v2587
      %v2844 = vadd.f32 %v2843, %v2588
      %v2845 = vadd.f32 %v2844, %v2589
      %v2846 = vadd.f32 %v2845, %v2590
      %v2847 = vadd.f32 %v2846, %v2591
      %v2848 = vadd.f32 %v2847, %v2592
      %v2849 = vadd.f32 %v2848, %v2593
      %v2850 = vadd.f32 %v2849, %v2594
      %v2851 = vadd.f32 %v2850, %v2595
      %v2852 = vadd.f32 %v2851, %v2596
      %v2853 = vadd.f32 %v2852, %v2597
      %v2854 = vadd.f32 %v2853, %v2598
      %v2855 = vadd.f32 %v2854, %v2599
      %v2856 = vadd.f32 %v2855, %v2600
      %v2857 = vadd.f32 %v2856, %v2601
      %v2858 = vadd.f32 %v2857, %v2602
      %v2859 = vadd.f32 %v2858, %v2603
      %v2860 = vadd.f32 %v2859, %v2604
      %v2861 = vadd.f32 %v2860, %v2605
      %v2862 = vadd.f32 %v2861, %v2606
      %v2863 = vrot.slane %v2862, 4
      %v2864 = vadd.f32 %v2862, %v2863
      %v2865 = vrot.slane %v2864, 2
      %v2866 = vadd.f32 %v2864, %v2865
      %v2867 = vrot.slane %v2866, 1
      %v2868 = vadd.f32 %v2866, %v2867
      %v2869 = vadd.f32 %v2607, %v2608
      %v2870 = vadd.f32 %v2869, %v2609
      %v2871 = vadd.f32 %v2870, %v2610
      %v2872 = vadd.f32 %v2871, %v2611
      %v2873 = vadd.f32 %v2872, %v2612
      %v2874 = vadd.f32 %v2873, %v2613
      %v2875 = vadd.f32 %v2874, %v2614
      %v2876 = vadd.f32 %v2875, %v2615
      %v2877 = vadd.f32 %v2876, %v2616
      %v2878 = vadd.f32 %v2877, %v2617
      %v2879 = vadd.f32 %v2878, %v2618
      %v2880 = vadd.f32 %v2879, %v2619
      %v2881 = vadd.f32 %v2880, %v2620
      %v2882 = vadd.f32 %v2881, %v2621
      %v2883 = vadd.f32 %v2882, %v2622
      %v2884 = vadd.f32 %v2883, %v2623
      %v2885 = vadd.f32 %v2884, %v2624
      %v2886 = vadd.f32 %v2885, %v2625
      %v2887 = vadd.f32 %v2886, %v2626
      %v2888 = vadd.f32 %v2887, %v2627
      %v2889 = vadd.f32 %v2888, %v2628
      %v2890 = vadd.f32 %v2889, %v2629
      %v2891 = vadd.f32 %v2890, %v2630
      %v2892 = vadd.f32 %v2891, %v2631
      %v2893 = vadd.f32 %v2892, %v2632
      %v2894 = vadd.f32 %v2893, %v2633
      %v2895 = vadd.f32 %v2894, %v2634
      %v2896 = vadd.f32 %v2895, %v2635
      %v2897 = vadd.f32 %v2896, %v2636
      %v2898 = vadd.f32 %v2897, %v2637
      %v2899 = vadd.f32 %v2898, %v2638
      %v2900 = vrot.slane %v2899, 4
      %v2901 = vadd.f32 %v2899, %v2900
      %v2902 = vrot.slane %v2901, 2
      %v2903 = vadd.f32 %v2901, %v2902
      %v2904 = vrot.slane %v2903, 1
      %v2905 = vadd.f32 %v2903, %v2904
      %v2906 = vadd.f32 %v2639, %v2640
      %v2907 = vadd.f32 %v2906, %v2641
      %v2908 = vadd.f32 %v2907, %v2642
      %v2909 = vadd.f32 %v2908, %v2643
      %v2910 = vadd.f32 %v2909, %v2644
      %v2911 = vadd.f32 %v2910, %v2645
      %v2912 = vadd.f32 %v2911, %v2646
      %v2913 = vadd.f32 %v2912, %v2647
      %v2914 = vadd.f32 %v2913, %v2648
      %v2915 = vadd.f32 %v2914, %v2649
      %v2916 = vadd.f32 %v2915, %v2650
      %v2917 = vadd.f32 %v2916, %v2651
      %v2918 = vadd.f32 %v2917, %v2652
      %v2919 = vadd.f32 %v2918, %v2653
      %v2920 = vadd.f32 %v2919, %v2654
      %v2921 = vadd.f32 %v2920, %v2655
      %v2922 = vadd.f32 %v2921, %v2656
      %v2923 = vadd.f32 %v2922, %v2657
      %v2924 = vadd.f32 %v2923, %v2658
      %v2925 = vadd.f32 %v2924, %v2659
      %v2926 = vadd.f32 %v2925, %v2660
      %v2927 = vadd.f32 %v2926, %v2661
      %v2928 = vadd.f32 %v2927, %v2662
      %v2929 = vadd.f32 %v2928, %v2663
      %v2930 = vadd.f32 %v2929, %v2664
      %v2931 = vadd.f32 %v2930, %v2665
      %v2932 = vadd.f32 %v2931, %v2666
      %v2933 = vadd.f32 %v2932, %v2667
      %v2934 = vadd.f32 %v2933, %v2668
      %v2935 = vadd.f32 %v2934, %v2669
      %v2936 = vadd.f32 %v2935, %v2670
      %v2937 = vrot.slane %v2936, 4
      %v2938 = vadd.f32 %v2936, %v2937
      %v2939 = vrot.slane %v2938, 2
      %v2940 = vadd.f32 %v2938, %v2939
      %v2941 = vrot.slane %v2940, 1
      %v2942 = vadd.f32 %v2940, %v2941
      %v2943 = vadd.f32 %v2671, %v2672
      %v2944 = vadd.f32 %v2943, %v2673
      %v2945 = vadd.f32 %v2944, %v2674
      %v2946 = vadd.f32 %v2945, %v2675
      %v2947 = vadd.f32 %v2946, %v2676
      %v2948 = vadd.f32 %v2947, %v2677
      %v2949 = vadd.f32 %v2948, %v2678
      %v2950 = vadd.f32 %v2949, %v2679
      %v2951 = vadd.f32 %v2950, %v2680
      %v2952 = vadd.f32 %v2951, %v2681
      %v2953 = vadd.f32 %v2952, %v2682
      %v2954 = vadd.f32 %v2953, %v2683
      %v2955 = vadd.f32 %v2954, %v2684
      %v2956 = vadd.f32 %v2955, %v2685
      %v2957 = vadd.f32 %v2956, %v2686
      %v2958 = vadd.f32 %v2957, %v2687
      %v2959 = vadd.f32 %v2958, %v2688
      %v2960 = vadd.f32 %v2959, %v2689
      %v2961 = vadd.f32 %v2960, %v2690
      %v2962 = vadd.f32 %v2961, %v2691
      %v2963 = vadd.f32 %v2962, %v2692
      %v2964 = vadd.f32 %v2963, %v2693
      %v2965 = vadd.f32 %v2964, %v2694
      %v2966 = vadd.f32 %v2965, %v2695
      %v2967 = vadd.f32 %v2966, %v2696
      %v2968 = vadd.f32 %v2967, %v2697
      %v2969 = vadd.f32 %v2968, %v2698
      %v2970 = vadd.f32 %v2969, %v2699
      %v2971 = vadd.f32 %v2970, %v2700
      %v2972 = vadd.f32 %v2971, %v2701
      %v2973 = vadd.f32 %v2972, %v2702
      %v2974 = vrot.slane %v2973, 4
      %v2975 = vadd.f32 %v2973, %v2974
      %v2976 = vrot.slane %v2975, 2
      %v2977 = vadd.f32 %v2975, %v2976
      %v2978 = vrot.slane %v2977, 1
      %v2979 = vadd.f32 %v2977, %v2978
      %v2980 = vadd.f32 %v2703, %v2704
      %v2981 = vadd.f32 %v2980, %v2705
      %v2982 = vadd.f32 %v2981, %v2706
      %v2983 = vadd.f32 %v2982, %v2707
      %v2984 = vadd.f32 %v2983, %v2708
      %v2985 = vadd.f32 %v2984, %v2709
      %v2986 = vadd.f32 %v2985, %v2710
      %v2987 = vadd.f32 %v2986, %v2711
      %v2988 = vadd.f32 %v2987, %v2712
      %v2989 = vadd.f32 %v2988, %v2713
      %v2990 = vadd.f32 %v2989, %v2714
      %v2991 = vadd.f32 %v2990, %v2715
      %v2992 = vadd.f32 %v2991, %v2716
      %v2993 = vadd.f32 %v2992, %v2717
      %v2994 = vadd.f32 %v2993, %v2718
      %v2995 = vadd.f32 %v2994, %v2719
      %v2996 = vadd.f32 %v2995, %v2720
      %v2997 = vadd.f32 %v2996, %v2721
      %v2998 = vadd.f32 %v2997, %v2722
      %v2999 = vadd.f32 %v2998, %v2723
      %v3000 = vadd.f32 %v2999, %v2724
      %v3001 = vadd.f32 %v3000, %v2725
      %v3002 = vadd.f32 %v3001, %v2726
      %v3003 = vadd.f32 %v3002, %v2727
      %v3004 = vadd.f32 %v3003, %v2728
      %v3005 = vadd.f32 %v3004, %v2729
      %v3006 = vadd.f32 %v3005, %v2730
      %v3007 = vadd.f32 %v3006, %v2731
      %v3008 = vadd.f32 %v3007, %v2732
      %v3009 = vadd.f32 %v3008, %v2733
      %v3010 = vadd.f32 %v3009, %v2734
      %v3011 = vrot.slane %v3010, 4
      %v3012 = vadd.f32 %v3010, %v3011
      %v3013 = vrot.slane %v3012, 2
      %v3014 = vadd.f32 %v3012, %v3013
      %v3015 = vrot.slane %v3014, 1
      %v3016 = vadd.f32 %v3014, %v3015
      %v3017 = vadd.f32 %v2735, %v2736
      %v3018 = vadd.f32 %v3017, %v2737
      %v3019 = vadd.f32 %v3018, %v2738
      %v3020 = vadd.f32 %v3019, %v2739
      %v3021 = vadd.f32 %v3020, %v2740
      %v3022 = vadd.f32 %v3021, %v2741
      %v3023 = vadd.f32 %v3022, %v2742
      %v3024 = vadd.f32 %v3023, %v2743
      %v3025 = vadd.f32 %v3024, %v2744
      %v3026 = vadd.f32 %v3025, %v2745
      %v3027 = vadd.f32 %v3026, %v2746
      %v3028 = vadd.f32 %v3027, %v2747
      %v3029 = vadd.f32 %v3028, %v2748
      %v3030 = vadd.f32 %v3029, %v2749
      %v3031 = vadd.f32 %v3030, %v2750
      %v3032 = vadd.f32 %v3031, %v2751
      %v3033 = vadd.f32 %v3032, %v2752
      %v3034 = vadd.f32 %v3033, %v2753
      %v3035 = vadd.f32 %v3034, %v2754
      %v3036 = vadd.f32 %v3035, %v2755
      %v3037 = vadd.f32 %v3036, %v2756
      %v3038 = vadd.f32 %v3037, %v2757
      %v3039 = vadd.f32 %v3038, %v2758
      %v3040 = vadd.f32 %v3039, %v2759
      %v3041 = vadd.f32 %v3040, %v2760
      %v3042 = vadd.f32 %v3041, %v2761
      %v3043 = vadd.f32 %v3042, %v2762
      %v3044 = vadd.f32 %v3043, %v2763
      %v3045 = vadd.f32 %v3044, %v2764
      %v3046 = vadd.f32 %v3045, %v2765
      %v3047 = vadd.f32 %v3046, %v2766
      %v3048 = vrot.slane %v3047, 4
      %v3049 = vadd.f32 %v3047, %v3048
      %v3050 = vrot.slane %v3049, 2
      %v3051 = vadd.f32 %v3049, %v3050
      %v3052 = vrot.slane %v3051, 1
      %v3053 = vadd.f32 %v3051, %v3052
      %v3054 = vadd.f32 %v2767, %v2768
      %v3055 = vadd.f32 %v3054, %v2769
      %v3056 = vadd.f32 %v3055, %v2770
      %v3057 = vadd.f32 %v3056, %v2771
      %v3058 = vadd.f32 %v3057, %v2772
      %v3059 = vadd.f32 %v3058, %v2773
      %v3060 = vadd.f32 %v3059, %v2774
      %v3061 = vadd.f32 %v3060, %v2775
      %v3062 = vadd.f32 %v3061, %v2776
      %v3063 = vadd.f32 %v3062, %v2777
      %v3064 = vadd.f32 %v3063, %v2778
      %v3065 = vadd.f32 %v3064, %v2779
      %v3066 = vadd.f32 %v3065, %v2780
      %v3067 = vadd.f32 %v3066, %v2781
      %v3068 = vadd.f32 %v3067, %v2782
      %v3069 = vadd.f32 %v3068, %v2783
      %v3070 = vadd.f32 %v3069, %v2784
      %v3071 = vadd.f32 %v3070, %v2785
      %v3072 = vadd.f32 %v3071, %v2786
      %v3073 = vadd.f32 %v3072, %v2787
      %v3074 = vadd.f32 %v3073, %v2788
      %v3075 = vadd.f32 %v3074, %v2789
      %v3076 = vadd.f32 %v3075, %v2790
      %v3077 = vadd.f32 %v3076, %v2791
      %v3078 = vadd.f32 %v3077, %v2792
      %v3079 = vadd.f32 %v3078, %v2793
      %v3080 = vadd.f32 %v3079, %v2794
      %v3081 = vadd.f32 %v3080, %v2795
      %v3082 = vadd.f32 %v3081, %v2796
      %v3083 = vadd.f32 %v3082, %v2797
      %v3084 = vadd.f32 %v3083, %v2798
      %v3085 = vrot.slane %v3084, 4
      %v3086 = vadd.f32 %v3084, %v3085
      %v3087 = vrot.slane %v3086, 2
      %v3088 = vadd.f32 %v3086, %v3087
      %v3089 = vrot.slane %v3088, 1
      %v3090 = vadd.f32 %v3088, %v3089
      %v3091 = vadd.f32 %v2799, %v2800
      %v3092 = vadd.f32 %v3091, %v2801
      %v3093 = vadd.f32 %v3092, %v2802
      %v3094 = vadd.f32 %v3093, %v2803
      %v3095 = vadd.f32 %v3094, %v2804
      %v3096 = vadd.f32 %v3095, %v2805
      %v3097 = vadd.f32 %v3096, %v2806
      %v3098 = vadd.f32 %v3097, %v2807
      %v3099 = vadd.f32 %v3098, %v2808
      %v3100 = vadd.f32 %v3099, %v2809
      %v3101 = vadd.f32 %v3100, %v2810
      %v3102 = vadd.f32 %v3101, %v2811
      %v3103 = vadd.f32 %v3102, %v2812
      %v3104 = vadd.f32 %v3103, %v2813
      %v3105 = vadd.f32 %v3104, %v2814
      %v3106 = vadd.f32 %v3105, %v2815
      %v3107 = vadd.f32 %v3106, %v2816
      %v3108 = vadd.f32 %v3107, %v2817
      %v3109 = vadd.f32 %v3108, %v2818
      %v3110 = vadd.f32 %v3109, %v2819
      %v3111 = vadd.f32 %v3110, %v2820
      %v3112 = vadd.f32 %v3111, %v2821
      %v3113 = vadd.f32 %v3112, %v2822
      %v3114 = vadd.f32 %v3113, %v2823
      %v3115 = vadd.f32 %v3114, %v2824
      %v3116 = vadd.f32 %v3115, %v2825
      %v3117 = vadd.f32 %v3116, %v2826
      %v3118 = vadd.f32 %v3117, %v2827
      %v3119 = vadd.f32 %v3118, %v2828
      %v3120 = vadd.f32 %v3119, %v2829
      %v3121 = vadd.f32 %v3120, %v2830
      %v3122 = vrot.slane %v3121, 4
      %v3123 = vadd.f32 %v3121, %v3122
      %v3124 = vrot.slane %v3123, 2
      %v3125 = vadd.f32 %v3123, %v3124
      %v3126 = vrot.slane %v3125, 1
      %v3127 = vadd.f32 %v3125, %v3126
      %vm3136 = vcmask 1041409
      %v3137 = vsel %vm3136, %v2905, %v2868
      %vm3138 = vcmask 1042434
      %v3139 = vsel %vm3138, %v2942, %v3137
      %vm3140 = vcmask 1043459
      %v3141 = vsel %vm3140, %v2979, %v3139
      %vm3142 = vcmask 1044484
      %v3143 = vsel %vm3142, %v3016, %v3141
      %vm3144 = vcmask 1045509
      %v3145 = vsel %vm3144, %v3053, %v3143
      %vm3146 = vcmask 1046534
      %v3147 = vsel %vm3146, %v3090, %v3145
      %vm3148 = vcmask 1047559
      %v3149 = vsel %vm3148, %v3127, %v3147
      %v3151 = vadd.f32 %v2831, %v3149
      %3152 = vst [vmem:[#allocation2] sm:$0xff] %v3151
      // Predicated region
      $region37: #{gaze_model_forward.3} parent=31 // pred_check
        %p3153 = pneg %p203
      $region38: #{gaze_model_forward.3} parent=31 // pred_check_branch
        %3155 = sbr.rel (%p3153) target = $region40
      $region39: #{gaze_model_forward.3} parent=31 // pred_region
        %v3156 = vld [vmem:[#allocation2] sm:$0xff]
        %v3157 = vmul.f32 %v3156, 0.00390625
        %3158 = vst [vmem:[%s201] sm:$0xff] %v3157
      $region40: #{gaze_model_forward.3} parent=31 // pred_fallthru
        _
      %p3159 = scmp.lt.s32.totalorder %s18, 1
      %s3160 = scalar_select %p3159, %s18, 1
      %s3161 = smul.addr %s3160, 8
      %s3162 = scalar_lea.vmem %s3, %s3161
      // Predicated region
      $region41: #{gaze_model_forward.3} parent=31 // pred_check
        %p3163 = pneg %p114
      $region42: #{gaze_model_forward.3} parent=31 // pred_check_branch
        %3165 = sbr.rel (%p3163) target = $region44
      $region43: #{gaze_model_forward.3} parent=31 // pred_region
        _
      $region44: #{gaze_model_forward.3} parent=31 // pred_fallthru
        _
    $region32: #{gaze_model_forward.3} parent=5 // pred_fallthru
      _
    %p3166 = scmp.le.s32.totalorder 2, %s9
    // Predicated region
    $region45: #{gaze_model_forward.3} parent=5 // pred_check
      %p3167 = pneg %p3166
    $region46: #{gaze_model_forward.3} parent=5 // pred_check_branch
      %3169 = sbr.rel (%p3167) target = $region48
    $region47: #{gaze_model_forward.3} parent=5 // pred_region
      %s3170 = ssub.s32 %s9, 2
      // Predicated region
      $region49: #{gaze_model_forward.3} parent=47 // pred_check
        %p3171 = pneg %p120
      $region50: #{gaze_model_forward.3} parent=47 // pred_check_branch
        %3173 = sbr.rel (%p3171) target = $region52
      $region51: #{gaze_model_forward.3} parent=47 // pred_region
        %p3174 = scmp.lt.s32.totalorder %s20, 1
        %s3175 = scalar_select %p3174, %s20, 1
        %s3176 = smul.addr %s3175, 8
        %s3177 = scalar_lea.vmem %s3, %s3176
      $region52: #{gaze_model_forward.3} parent=47 // pred_fallthru
        _
    $region48: #{gaze_model_forward.3} parent=5 // pred_fallthru
      _
  $region6: #{gaze_model_forward.3} parent=0 // loop_footer
    %s13 = sadd.s32 1, %s9
  $region7: #{gaze_model_forward.3} parent=0 // loop_footer_branch
    %8 = sbr.rel target = $region3
  $region8: #{gaze_model_forward.3} parent=0 // loop_exit
    _

</llo_original>
